<compile_context>
chip_gen: v5e
topology: v5e:2x2
jax: 0.10.0
libtpu: 0.0.40
codegen_flags: <defaults>
</compile_context>

<pallas_src>
import jax
import jax.numpy as jnp
from jax.experimental import pallas as pl
from jax.experimental.pallas import tpu as pltpu

# ----------------------------- config (small, consistent with module) ------------------
B = 2            # batch
C_IN = 4         # channels
IMG = 8          # image_size
DS = 8           # ds_size (== image_size -> no DownScale)
F = 8            # n_filter
LAT = 32         # lat_size
N_CALLS = 2      # n_calls
OC = 3 * F + 1   # out_conv channels (multi_cut split sizes)
HW = IMG * IMG   # 64
L = B * HW       # 128 packed lanes
STATE = F + F * DS + F * DS + DS * DS   # sum(conv_state_size) = 200
EPS = 1e-5       # InstanceNorm2d default eps
LRELU_SLOPE = 0.2
RES_SCALE = 0.1


# ----------------------------- fused Pallas kernel --------------------------------------

def _encoder_kernel(
    leak_ref,                                    # SMEM (1,)
    x_ref,                                       # (F, L) packed input (channels padded)
    shift_ref,                                   # (L, 9*L) block-diag conv tap matrix
    bb_ref,                                      # (L, L) block-diag per-sample mean matrix
    ci_w_ref, ci_b_ref,                          # conv_img        (F, 9F), (F, 1)
    rbi_w0_ref, rbi_b0_ref, rbi_w1_ref,          # rb_img 3x3
    fr1_w0_ref, fr1_b0_ref, fr1_w1_ref,          # frac_conv rb1 (1x1, hidden 4F)
    fr2_w0_ref, fr2_b0_ref, fr2_w1_ref,          # frac_conv rb2 (3x3)
    orb_ws_ref, orb_w0_ref, orb_b0_ref, orb_w1_ref,   # out_conv rb (1x1, learned shortcut)
    p_rep_ref, masks_ref, qb_ref,                # multi_cut state assembly constants
    l1_ws_ref, l1_w0_ref, l1_b0_ref, l1_w1_ref,  # lrb1 (native PyTorch layout)
    l2_w0_ref, l2_b0_ref, l2_w1_ref,             # lrb2
    lin_w_ref, lin_b_ref,                        # final Linear
    emb_ref, lat_ref,                            # outputs
    im2col_ref,                                  # VMEM scratch (9F, L)
):
    def lrelu(t):
        return jnp.where(t > 0, t, LRELU_SLOPE * t)

    def mm(a, b):
        return jnp.dot(a, b, preferred_element_type=jnp.float32)

    def conv3x3(x, w9, bias):
        # One wide matmul builds all 9 shifted taps (lane-blocks of 128), the taps are
        # written into the im2col scratch at static sublane offsets, then a single
        # (O, 9F) @ (9F, L) matmul produces the conv output.
        taps = mm(x, shift_ref[...])                              # (F, 9*L)
        for t in range(9):
            im2col_ref[t * F:(t + 1) * F, :] = taps[:, t * L:(t + 1) * L]
        y = mm(w9, im2col_ref[...])                               # (O, L)
        return y if bias is None else y + bias

    def conv1x1(x, w, bias):
        y = mm(w, x)
        return y if bias is None else y + bias

    def res3(x, w0, b0, w1):
        dx = conv3x3(lrelu(x), w0, b0)
        dx = conv3x3(lrelu(dx), w1, None)
        return x + RES_SCALE * dx

    def res1(x, w0, b0, w1, ws=None):
        sc = x if ws is None else conv1x1(x, ws, None)
        dx = conv1x1(lrelu(x), w0, b0)
        dx = conv1x1(lrelu(dx), w1, None)
        return sc + RES_SCALE * dx

    def inorm(x):
        # Per-sample, per-channel mean/var via the block-diagonal averaging matrix (MXU).
        m = mm(x, bb_ref[...])
        xc = x - m
        v = mm(xc * xc, bb_ref[...])
        return xc * jax.lax.rsqrt(v + EPS)

    leak = jnp.clip(leak_ref[0], 0.001, 1000.0)
    x = x_ref[...]                                                # (F, L)

    # conv_img = Conv2d(C_IN, F, 3,1,1) + ResidualBlock(F, F, None, 3,1,1)
    out = conv3x3(x, ci_w_ref[...], ci_b_ref[...])
    out = res3(out, rbi_w0_ref[...], rbi_b0_ref[...], rbi_w1_ref[...])
    emb_ref[0] = out

    # shared-parameter fractal calls
    for c in range(N_CALLS):
        out_new = inorm(out)                                      # frac_norm[0]
        out_new = res1(out_new, fr1_w0_ref[...], fr1_b0_ref[...], fr1_w1_ref[...])
        out_new = res3(out_new, fr2_w0_ref[...], fr2_b0_ref[...], fr2_w1_ref[...])
        out = out + leak * out_new
        emb_ref[c + 1] = out

    # out_conv = ResidualBlock(F, 3F+1, None, 1,1,0)
    y = res1(out, orb_w0_ref[...], orb_b0_ref[...], orb_w1_ref[...],
             ws=orb_ws_ref[...])                                  # (OC, L)

    # ------- multi_cut conv_state, column form (STATE, B), exact PyTorch ordering -------
    #   rows   0..F-1      : per-channel spatial mean
    #   rows   F..F+F*DS-1 : per-(channel,row) mean over W     (index f*DS + i)
    #   rows   ..+F*DS     : per-(channel,col) mean over H     (index f*DS + j)
    #   rows   last HW     : raw spatial map of the last channel
    qb = qb_ref[...]                                              # (L, B) sample selector
    s_f = mm(y[0:F], qb) * (1.0 / HW)                             # (F, B)
    a_h = mm(p_rep_ref[...], y[F:2 * F])                          # (HW, L) channel-repeat
    cs_h = mm(a_h * masks_ref[0], qb)                             # (F*DS, B)
    a_w = mm(p_rep_ref[...], y[2 * F:3 * F])                      # (HW, L)
    cs_w = mm(a_w * masks_ref[1], qb)                             # (F*DS, B)
    a_p = jnp.broadcast_to(y[3 * F:3 * F + 1], (HW, L))           # (HW, L)
    cs_p = mm(a_p * masks_ref[2], qb)                             # (HW, B)
    cs = jnp.concatenate([s_f, cs_h, cs_w, cs_p], axis=0)         # (STATE, B)

    # ------- out_to_lat: LRB(200,32,64) -> LRB(32,32) -> Linear(32,32), batched on lanes
    xs = mm(l1_ws_ref[...], cs)                                   # (LAT, B)
    d = mm(l1_w0_ref[...], lrelu(cs)) + l1_b0_ref[...]            # (2*LAT, B)
    d = mm(l1_w1_ref[...], lrelu(d))                              # (LAT, B)
    lat = xs + RES_SCALE * d

    d = mm(l2_w0_ref[...], lrelu(lat)) + l2_b0_ref[...]
    d = mm(l2_w1_ref[...], lrelu(d))
    lat = lat + RES_SCALE * d

    lat = mm(lin_w_ref[...], lat) + lin_b_ref[...]                # (LAT, B)
    lat_ref[...] = lat


# ----------------------------- host-side constant / weight prep -------------------------

def _make_shift_wide():
    """(L, 9*L) matrix.  Lane block t of (x @ S) holds tap t: the neighbour-(di,dj)
    shifted image (0 at borders), block-diagonal per sample."""
    p = jnp.arange(HW)
    prow = p[:, None]              # source position
    pcol = p[None, :]              # destination position
    ci = pcol // IMG
    cj = pcol % IMG
    eyeb = jnp.eye(B, dtype=jnp.float32)
    blocks = []
    for di in (-1, 0, 1):
        for dj in (-1, 0, 1):
            s = di * IMG + dj
            ok = ((prow == pcol + s)
                  & (ci + di >= 0) & (ci + di < IMG)
                  & (cj + dj >= 0) & (cj + dj < IMG)).astype(jnp.float32)
            blocks.append(jnp.kron(eyeb, ok))                     # (L, L) block-diag
    return jnp.concatenate(blocks, axis=1)                        # (L, 9*L)


def _make_bb_full():
    """(L, L) block-diagonal per-sample full-mean matrix (for InstanceNorm stats)."""
    return jnp.kron(jnp.eye(B, dtype=jnp.float32),
                    jnp.full((HW, HW), 1.0 / HW, jnp.float32))


def _make_state_consts():
    """Constants for the multi_cut conv_state assembly (all tiny)."""
    p_rep = jnp.repeat(jnp.eye(F, dtype=jnp.float32), DS, axis=0)          # (HW, F)
    l = jnp.arange(L)
    r = jnp.arange(HW)
    i_of_l = (l % HW) // IMG
    j_of_l = (l % HW) % IMG
    p_of_l = l % HW
    mask_h = (i_of_l[None, :] == (r % DS)[:, None]).astype(jnp.float32) / DS   # (HW, L)
    mask_w = (j_of_l[None, :] == (r % DS)[:, None]).astype(jnp.float32) / DS   # (HW, L)
    mask_p = (p_of_l[None, :] == r[:, None]).astype(jnp.float32)               # (HW, L)
    masks = jnp.stack([mask_h, mask_w, mask_p], axis=0)                        # (3, HW, L)
    qb = ((l[:, None] // HW) == jnp.arange(B)[None, :]).astype(jnp.float32)    # (L, B)
    return p_rep, masks, qb


def init_params(key):
    """Parameters in PyTorch layout (same structure as the nn.Module)."""
    ks = iter(jax.random.split(key, 32))
    n = lambda shape: 0.1 * jax.random.normal(next(ks), shape, jnp.float32)
    p = {}
    p["leak"] = jnp.float32(0.1)                                   # nn.Parameter(1*0.1)
    p["conv_img_w"] = n((F, C_IN, 3, 3))
    p["conv_img_b"] = n((F,))
    p["rb_img"] = {"w0": n((F, F, 3, 3)), "b0": n((F,)), "w1": n((F, F, 3, 3))}
    p["frac_rb1"] = {"w0": n((4 * F, F)), "b0": n((4 * F,)), "w1": n((F, 4 * F))}
    p["frac_rb2"] = {"w0": n((F, F, 3, 3)), "b0": n((F,)), "w1": n((F, F, 3, 3))}
    p["out_rb"] = {"ws": n((OC, F)), "w0": n((F, F)), "b0": n((F,)), "w1": n((OC, F))}
    p["lrb1"] = {"ws": n((LAT, STATE)), "w0": n((2 * LAT, STATE)),
                 "b0": n((2 * LAT,)), "w1": n((LAT, 2 * LAT))}
    p["lrb2"] = {"w0": n((LAT, LAT)), "b0": n((LAT,)), "w1": n((LAT, LAT))}
    p["lin_w"] = n((LAT, LAT))
    p["lin_b"] = n((LAT,))
    return p


def prep_params(p):
    """One-time re-layout of all weights into kernel-ready form (hoisted out of forward)."""
    col = lambda b: jnp.asarray(b, jnp.float32).reshape(-1, 1)

    def conv9(w):   # (O, C, 3, 3) -> (O, 9*C), column index = (ki*3 + kj)*C + c
        o, c = w.shape[0], w.shape[1]
        return jnp.transpose(w, (0, 2, 3, 1)).reshape(o, 9 * c).astype(jnp.float32)

    ci_w_pad = jnp.pad(p["conv_img_w"], ((0, 0), (0, F - C_IN), (0, 0), (0, 0)))
    p_rep, masks, qb = _make_state_consts()
    return {
        "leak": jnp.asarray(p["leak"], jnp.float32).reshape(1),
        "shift": _make_shift_wide(),
        "bb": _make_bb_full(),
        "ci_w": conv9(ci_w_pad), "ci_b": col(p["conv_img_b"]),
        "rbi_w0": conv9(p["rb_img"]["w0"]), "rbi_b0": col(p["rb_img"]["b0"]),
        "rbi_w1": conv9(p["rb_img"]["w1"]),
        "fr1_w0": p["frac_rb1"]["w0"].astype(jnp.float32),
        "fr1_b0": col(p["frac_rb1"]["b0"]),
        "fr1_w1": p["frac_rb1"]["w1"].astype(jnp.float32),
        "fr2_w0": conv9(p["frac_rb2"]["w0"]), "fr2_b0": col(p["frac_rb2"]["b0"]),
        "fr2_w1": conv9(p["frac_rb2"]["w1"]),
        "orb_ws": p["out_rb"]["ws"].astype(jnp.float32),
        "orb_w0": p["out_rb"]["w0"].astype(jnp.float32),
        "orb_b0": col(p["out_rb"]["b0"]),
        "orb_w1": p["out_rb"]["w1"].astype(jnp.float32),
        "p_rep": p_rep, "masks": masks, "qb": qb,
        "l1_ws": p["lrb1"]["ws"].astype(jnp.float32),
        "l1_w0": p["lrb1"]["w0"].astype(jnp.float32),
        "l1_b0": col(p["lrb1"]["b0"]),
        "l1_w1": p["lrb1"]["w1"].astype(jnp.float32),
        "l2_w0": p["lrb2"]["w0"].astype(jnp.float32), "l2_b0": col(p["lrb2"]["b0"]),
        "l2_w1": p["lrb2"]["w1"].astype(jnp.float32),
        "lin_w": p["lin_w"].astype(jnp.float32), "lin_b": col(p["lin_b"]),
    }


# ----------------------------- forward (single fused pallas_call, no grid) --------------

@jax.jit
def encoder_forward(kp, x_nchw):
    assert x_nchw.shape[0] == B
    # Pack batch onto the lane axis: (B, C, H, W) -> (F, B*HW), channels padded 4 -> 8.
    x = x_nchw.reshape(B, C_IN, HW).astype(jnp.float32)
    x = jnp.pad(x, ((0, 0), (0, F - C_IN), (0, 0)))
    x_packed = jnp.transpose(x, (1, 0, 2)).reshape(F, L)

    vmem = pl.BlockSpec(memory_space=pltpu.MemorySpace.VMEM)
    smem = pl.BlockSpec(memory_space=pltpu.MemorySpace.SMEM)
    in_specs = [smem] + [vmem] * 30
    out_specs = (vmem, vmem)
    out_shape = (
        jax.ShapeDtypeStruct((N_CALLS + 1, F, L), jnp.float32),   # lane-dense emb stores
        jax.ShapeDtypeStruct((LAT, B), jnp.float32),
    )

    embs, lat_col = pl.pallas_call(
        _encoder_kernel,
        in_specs=in_specs,
        out_specs=out_specs,
        out_shape=out_shape,
        scratch_shapes=[pltpu.VMEM((9 * F, L), jnp.float32)],
    )(kp["leak"], x_packed, kp["shift"], kp["bb"],
      kp["ci_w"], kp["ci_b"],
      kp["rbi_w0"], kp["rbi_b0"], kp["rbi_w1"],
      kp["fr1_w0"], kp["fr1_b0"], kp["fr1_w1"],
      kp["fr2_w0"], kp["fr2_b0"], kp["fr2_w1"],
      kp["orb_ws"], kp["orb_w0"], kp["orb_b0"], kp["orb_w1"],
      kp["p_rep"], kp["masks"], kp["qb"],
      kp["l1_ws"], kp["l1_w0"], kp["l1_b0"], kp["l1_w1"],
      kp["l2_w0"], kp["l2_b0"], kp["l2_w1"],
      kp["lin_w"], kp["lin_b"])

    lat = jnp.transpose(lat_col)                                  # (B, LAT)
    out_embs = [
        jnp.transpose(embs[c].reshape(F, B, HW), (1, 0, 2)).reshape(B, F, IMG, IMG)
        for c in range(N_CALLS + 1)
    ]
    return lat, out_embs, None


# ----------------------------- pure-JAX reference (for a self-check) --------------------

def _lrelu(x):
    return jnp.where(x > 0, x, LRELU_SLOPE * x)


def _conv2d(x, w, b=None, pad=1):
    y = jax.lax.conv_general_dilated(
        x, w, window_strides=(1, 1), padding=[(pad, pad), (pad, pad)],
        dimension_numbers=("NCHW", "OIHW", "NCHW"))
    if b is not None:
        y = y + b.reshape(1, -1, 1, 1)
    return y


def _res_block_ref(x, p, k):
    pad = 1 if k == 3 else 0
    to4 = (lambda w: w) if k == 3 else (lambda w: w[:, :, None, None])
    sc = _conv2d(x, to4(p["ws"]), None, pad) if "ws" in p else x
    dx = _conv2d(_lrelu(x), to4(p["w0"]), p["b0"], pad)
    dx = _conv2d(_lrelu(dx), to4(p["w1"]), None, pad)
    return sc + RES_SCALE * dx


def _lin_res_block_ref(x, p):
    sc = x @ p["ws"].T if "ws" in p else x
    dx = _lrelu(x) @ p["w0"].T + p["b0"]
    dx = _lrelu(dx) @ p["w1"].T
    return sc + RES_SCALE * dx


def encoder_forward_ref(params, x):
    bsz = x.shape[0]
    out = _conv2d(x, params["conv_img_w"], params["conv_img_b"], 1)
    out = _res_block_ref(out, params["rb_img"], 3)
    out_embs = [out]
    leak = jnp.clip(params["leak"], 0.001, 1000.0)
    for _ in range(N_CALLS):
        m = out.mean(axis=(2, 3), keepdims=True)
        v = ((out - m) ** 2).mean(axis=(2, 3), keepdims=True)
        out_new = (out - m) * jax.lax.rsqrt(v + EPS)
        out_new = _res_block_ref(out_new, params["frac_rb1"], 1)
        out_new = _res_block_ref(out_new, params["frac_rb2"], 3)
        out = out + leak * out_new
        out_embs.append(out)
    out = _res_block_ref(out, params["out_rb"], 1)
    f, fh, fw, hw = out[:, :F], out[:, F:2 * F], out[:, 2 * F:3 * F], out[:, 3 * F:]
    conv_state = jnp.concatenate([
        f.mean(axis=(2, 3)),
        fh.mean(axis=3).reshape(bsz, -1),
        fw.mean(axis=2).reshape(bsz, -1),
        hw.reshape(bsz, -1)], axis=1)
    lat = _lin_res_block_ref(conv_state, params["lrb1"])
    lat = _lin_res_block_ref(lat, params["lrb2"])
    lat = lat @ params["lin_w"].T + params["lin_b"]
    return lat, out_embs


# ----------------------------- main ------------------------------------------------------

if __name__ == "__main__":
    key = jax.random.PRNGKey(0)
    kparam_key, kx = jax.random.split(key)
    params = init_params(kparam_key)
    kparams = prep_params(params)                                # one-time weight re-layout
    x = jax.random.normal(kx, (B, C_IN, IMG, IMG), jnp.float32)  # NCHW, like PyTorch

    lat, out_embs, _ = encoder_forward(kparams, x)
    jax.block_until_ready(lat)
    for e in out_embs:
        jax.block_until_ready(e)

    assert lat.shape == (B, LAT)
    assert len(out_embs) == N_CALLS + 1
    assert out_embs[0].shape == (B, F, DS, DS)

    # numerical self-check against a plain-JAX reference of the same module
    with jax.default_matmul_precision("float32"):
        lat_ref, embs_ref = encoder_forward_ref(params, x)
    err = float(jnp.max(jnp.abs(lat - lat_ref)))
    for a, b in zip(out_embs, embs_ref):
        err = max(err, float(jnp.max(jnp.abs(a - b))))
    assert err < 3e-2, f"mismatch vs reference: {err}"

    print("KERNEL_OK")
</pallas_src>

<mosaic_0001>
module attributes {stable_mosaic.version = 11 : i64} {
  func.func @_encoder_kernel(%arg0: memref<1xf32, #tpu.memory_space<smem>>, %arg1: memref<8x128xf32, #tpu.memory_space<vmem>>, %arg2: memref<128x1152xf32, #tpu.memory_space<vmem>>, %arg3: memref<128x128xf32, #tpu.memory_space<vmem>>, %arg4: memref<8x72xf32, #tpu.memory_space<vmem>>, %arg5: memref<8x1xf32, #tpu.memory_space<vmem>>, %arg6: memref<8x72xf32, #tpu.memory_space<vmem>>, %arg7: memref<8x1xf32, #tpu.memory_space<vmem>>, %arg8: memref<8x72xf32, #tpu.memory_space<vmem>>, %arg9: memref<32x8xf32, #tpu.memory_space<vmem>>, %arg10: memref<32x1xf32, #tpu.memory_space<vmem>>, %arg11: memref<8x32xf32, #tpu.memory_space<vmem>>, %arg12: memref<8x72xf32, #tpu.memory_space<vmem>>, %arg13: memref<8x1xf32, #tpu.memory_space<vmem>>, %arg14: memref<8x72xf32, #tpu.memory_space<vmem>>, %arg15: memref<25x8xf32, #tpu.memory_space<vmem>>, %arg16: memref<8x8xf32, #tpu.memory_space<vmem>>, %arg17: memref<8x1xf32, #tpu.memory_space<vmem>>, %arg18: memref<25x8xf32, #tpu.memory_space<vmem>>, %arg19: memref<64x8xf32, #tpu.memory_space<vmem>>, %arg20: memref<3x64x128xf32, #tpu.memory_space<vmem>>, %arg21: memref<128x2xf32, #tpu.memory_space<vmem>>, %arg22: memref<32x200xf32, #tpu.memory_space<vmem>>, %arg23: memref<64x200xf32, #tpu.memory_space<vmem>>, %arg24: memref<64x1xf32, #tpu.memory_space<vmem>>, %arg25: memref<32x64xf32, #tpu.memory_space<vmem>>, %arg26: memref<32x32xf32, #tpu.memory_space<vmem>>, %arg27: memref<32x1xf32, #tpu.memory_space<vmem>>, %arg28: memref<32x32xf32, #tpu.memory_space<vmem>>, %arg29: memref<32x32xf32, #tpu.memory_space<vmem>>, %arg30: memref<32x1xf32, #tpu.memory_space<vmem>>, %arg31: memref<3x8x128xf32, #tpu.memory_space<vmem>>, %arg32: memref<32x2xf32, #tpu.memory_space<vmem>>, %arg33: memref<72x128xf32, #tpu.memory_space<vmem>>) attributes {dimension_semantics = [], scalar_prefetch = 0 : i64, scratch_operands = 1 : i64, tpu.core_type = #tpu.core_type<tc>} {
    %c0 = arith.constant 0 : index
    %0 = memref.load %arg0[%c0] : memref<1xf32, #tpu.memory_space<smem>>
    %cst = arith.constant 1.000000e-03 : f32
    %cst_0 = arith.constant 1.000000e+03 : f32
    %1 = arith.maximumf %cst, %0 : f32
    %2 = arith.minimumf %cst_0, %1 : f32
    %c0_1 = arith.constant 0 : index
    %c0_2 = arith.constant 0 : index
    %3 = vector.load %arg1[%c0_1, %c0_2] : memref<8x128xf32, #tpu.memory_space<vmem>>, vector<8x128xf32>
    %c0_3 = arith.constant 0 : index
    %c0_4 = arith.constant 0 : index
    %4 = vector.load %arg4[%c0_3, %c0_4] : memref<8x72xf32, #tpu.memory_space<vmem>>, vector<8x72xf32>
    %c0_5 = arith.constant 0 : index
    %c0_6 = arith.constant 0 : index
    %5 = vector.load %arg5[%c0_5, %c0_6] : memref<8x1xf32, #tpu.memory_space<vmem>>, vector<8x1xf32>
    %c0_7 = arith.constant 0 : index
    %c0_8 = arith.constant 0 : index
    %6 = vector.load %arg2[%c0_7, %c0_8] : memref<128x1152xf32, #tpu.memory_space<vmem>>, vector<128x1152xf32>
    %cst_9 = arith.constant dense<0.000000e+00> : vector<8x1152xf32>
    %7 = tpu.matmul %3, %6, %cst_9 {dimension_numbers = #tpu.dot_dimension_numbers<[1], [0], [0], [1], [0, 0, 1, 1], [], []>} : vector<8x128xf32>, vector<128x1152xf32>, vector<8x1152xf32> -> vector<8x1152xf32>
    %8 = vector.extract_strided_slice %7 {offsets = [0, 0], sizes = [8, 128], strides = [1, 1]} : vector<8x1152xf32> to vector<8x128xf32>
    %c0_10 = arith.constant 0 : index
    %c0_11 = arith.constant 0 : index
    %9 = vector.load %arg33[%c0_10, %c0_11] : memref<72x128xf32, #tpu.memory_space<vmem>>, vector<8x128xf32>
    tpu.vector_store %arg33[%c0_10, %c0_11], %8 {strides = array<i32>} : memref<72x128xf32, #tpu.memory_space<vmem>>, vector<8x128xf32>,
    %10 = vector.extract_strided_slice %7 {offsets = [0, 128], sizes = [8, 128], strides = [1, 1]} : vector<8x1152xf32> to vector<8x128xf32>
    %c8 = arith.constant 8 : index
    %c0_12 = arith.constant 0 : index
    %11 = vector.load %arg33[%c8, %c0_12] : memref<72x128xf32, #tpu.memory_space<vmem>>, vector<8x128xf32>
    tpu.vector_store %arg33[%c8, %c0_12], %10 {strides = array<i32>} : memref<72x128xf32, #tpu.memory_space<vmem>>, vector<8x128xf32>,
    %12 = vector.extract_strided_slice %7 {offsets = [0, 256], sizes = [8, 128], strides = [1, 1]} : vector<8x1152xf32> to vector<8x128xf32>
    %c16 = arith.constant 16 : index
    %c0_13 = arith.constant 0 : index
    %13 = vector.load %arg33[%c16, %c0_13] : memref<72x128xf32, #tpu.memory_space<vmem>>, vector<8x128xf32>
    tpu.vector_store %arg33[%c16, %c0_13], %12 {strides = array<i32>} : memref<72x128xf32, #tpu.memory_space<vmem>>, vector<8x128xf32>,
    %14 = vector.extract_strided_slice %7 {offsets = [0, 384], sizes = [8, 128], strides = [1, 1]} : vector<8x1152xf32> to vector<8x128xf32>
    %c24 = arith.constant 24 : index
    %c0_14 = arith.constant 0 : index
    %15 = vector.load %arg33[%c24, %c0_14] : memref<72x128xf32, #tpu.memory_space<vmem>>, vector<8x128xf32>
    tpu.vector_store %arg33[%c24, %c0_14], %14 {strides = array<i32>} : memref<72x128xf32, #tpu.memory_space<vmem>>, vector<8x128xf32>,
    %16 = vector.extract_strided_slice %7 {offsets = [0, 512], sizes = [8, 128], strides = [1, 1]} : vector<8x1152xf32> to vector<8x128xf32>
    %c32 = arith.constant 32 : index
    %c0_15 = arith.constant 0 : index
    %17 = vector.load %arg33[%c32, %c0_15] : memref<72x128xf32, #tpu.memory_space<vmem>>, vector<8x128xf32>
    tpu.vector_store %arg33[%c32, %c0_15], %16 {strides = array<i32>} : memref<72x128xf32, #tpu.memory_space<vmem>>, vector<8x128xf32>,
    %18 = vector.extract_strided_slice %7 {offsets = [0, 640], sizes = [8, 128], strides = [1, 1]} : vector<8x1152xf32> to vector<8x128xf32>
    %c40 = arith.constant 40 : index
    %c0_16 = arith.constant 0 : index
    %19 = vector.load %arg33[%c40, %c0_16] : memref<72x128xf32, #tpu.memory_space<vmem>>, vector<8x128xf32>
    tpu.vector_store %arg33[%c40, %c0_16], %18 {strides = array<i32>} : memref<72x128xf32, #tpu.memory_space<vmem>>, vector<8x128xf32>,
    %20 = vector.extract_strided_slice %7 {offsets = [0, 768], sizes = [8, 128], strides = [1, 1]} : vector<8x1152xf32> to vector<8x128xf32>
    %c48 = arith.constant 48 : index
    %c0_17 = arith.constant 0 : index
    %21 = vector.load %arg33[%c48, %c0_17] : memref<72x128xf32, #tpu.memory_space<vmem>>, vector<8x128xf32>
    tpu.vector_store %arg33[%c48, %c0_17], %20 {strides = array<i32>} : memref<72x128xf32, #tpu.memory_space<vmem>>, vector<8x128xf32>,
    %22 = vector.extract_strided_slice %7 {offsets = [0, 896], sizes = [8, 128], strides = [1, 1]} : vector<8x1152xf32> to vector<8x128xf32>
    %c56 = arith.constant 56 : index
    %c0_18 = arith.constant 0 : index
    %23 = vector.load %arg33[%c56, %c0_18] : memref<72x128xf32, #tpu.memory_space<vmem>>, vector<8x128xf32>
    tpu.vector_store %arg33[%c56, %c0_18], %22 {strides = array<i32>} : memref<72x128xf32, #tpu.memory_space<vmem>>, vector<8x128xf32>,
    %24 = vector.extract_strided_slice %7 {offsets = [0, 1024], sizes = [8, 128], strides = [1, 1]} : vector<8x1152xf32> to vector<8x128xf32>
    %c64 = arith.constant 64 : index
    %c0_19 = arith.constant 0 : index
    %25 = vector.load %arg33[%c64, %c0_19] : memref<72x128xf32, #tpu.memory_space<vmem>>, vector<8x128xf32>
    tpu.vector_store %arg33[%c64, %c0_19], %24 {strides = array<i32>} : memref<72x128xf32, #tpu.memory_space<vmem>>, vector<8x128xf32>,
    %c0_20 = arith.constant 0 : index
    %c0_21 = arith.constant 0 : index
    %26 = vector.load %arg33[%c0_20, %c0_21] : memref<72x128xf32, #tpu.memory_space<vmem>>, vector<72x128xf32>
    %cst_22 = arith.constant dense<0.000000e+00> : vector<8x128xf32>
    %27 = tpu.matmul %4, %26, %cst_22 {dimension_numbers = #tpu.dot_dimension_numbers<[1], [0], [0], [1], [0, 0, 1, 1], [], []>} : vector<8x72xf32>, vector<72x128xf32>, vector<8x128xf32> -> vector<8x128xf32>
    %28 = vector.broadcast %5 : vector<8x1xf32> to vector<8x128xf32>
    %29 = arith.addf %27, %28 : vector<8x128xf32>
    %c0_23 = arith.constant 0 : index
    %c0_24 = arith.constant 0 : index
    %30 = vector.load %arg6[%c0_23, %c0_24] : memref<8x72xf32, #tpu.memory_space<vmem>>, vector<8x72xf32>
    %c0_25 = arith.constant 0 : index
    %c0_26 = arith.constant 0 : index
    %31 = vector.load %arg7[%c0_25, %c0_26] : memref<8x1xf32, #tpu.memory_space<vmem>>, vector<8x1xf32>
    %c0_27 = arith.constant 0 : index
    %c0_28 = arith.constant 0 : index
    %32 = vector.load %arg8[%c0_27, %c0_28] : memref<8x72xf32, #tpu.memory_space<vmem>>, vector<8x72xf32>
    %cst_29 = arith.constant 0.000000e+00 : f32
    %33 = vector.broadcast %cst_29 : f32 to vector<8x128xf32>
    %34 = arith.cmpf ogt, %29, %33 : vector<8x128xf32>
    %cst_30 = arith.constant 2.000000e-01 : f32
    %35 = vector.broadcast %cst_30 : f32 to vector<8x128xf32>
    %36 = arith.mulf %35, %29 : vector<8x128xf32>
    %37 = arith.select %34, %29, %36 : vector<8x128xi1>, vector<8x128xf32>
    %c0_31 = arith.constant 0 : index
    %c0_32 = arith.constant 0 : index
    %38 = vector.load %arg2[%c0_31, %c0_32] : memref<128x1152xf32, #tpu.memory_space<vmem>>, vector<128x1152xf32>
    %cst_33 = arith.constant dense<0.000000e+00> : vector<8x1152xf32>
    %39 = tpu.matmul %37, %38, %cst_33 {dimension_numbers = #tpu.dot_dimension_numbers<[1], [0], [0], [1], [0, 0, 1, 1], [], []>} : vector<8x128xf32>, vector<128x1152xf32>, vector<8x1152xf32> -> vector<8x1152xf32>
    %40 = vector.extract_strided_slice %39 {offsets = [0, 0], sizes = [8, 128], strides = [1, 1]} : vector<8x1152xf32> to vector<8x128xf32>
    %c0_34 = arith.constant 0 : index
    %c0_35 = arith.constant 0 : index
    %41 = vector.load %arg33[%c0_34, %c0_35] : memref<72x128xf32, #tpu.memory_space<vmem>>, vector<8x128xf32>
    tpu.vector_store %arg33[%c0_34, %c0_35], %40 {strides = array<i32>} : memref<72x128xf32, #tpu.memory_space<vmem>>, vector<8x128xf32>,
    %42 = vector.extract_strided_slice %39 {offsets = [0, 128], sizes = [8, 128], strides = [1, 1]} : vector<8x1152xf32> to vector<8x128xf32>
    %c8_36 = arith.constant 8 : index
    %c0_37 = arith.constant 0 : index
    %43 = vector.load %arg33[%c8_36, %c0_37] : memref<72x128xf32, #tpu.memory_space<vmem>>, vector<8x128xf32>
    tpu.vector_store %arg33[%c8_36, %c0_37], %42 {strides = array<i32>} : memref<72x128xf32, #tpu.memory_space<vmem>>, vector<8x128xf32>,
    %44 = vector.extract_strided_slice %39 {offsets = [0, 256], sizes = [8, 128], strides = [1, 1]} : vector<8x1152xf32> to vector<8x128xf32>
    %c16_38 = arith.constant 16 : index
    %c0_39 = arith.constant 0 : index
    %45 = vector.load %arg33[%c16_38, %c0_39] : memref<72x128xf32, #tpu.memory_space<vmem>>, vector<8x128xf32>
    tpu.vector_store %arg33[%c16_38, %c0_39], %44 {strides = array<i32>} : memref<72x128xf32, #tpu.memory_space<vmem>>, vector<8x128xf32>,
    %46 = vector.extract_strided_slice %39 {offsets = [0, 384], sizes = [8, 128], strides = [1, 1]} : vector<8x1152xf32> to vector<8x128xf32>
    %c24_40 = arith.constant 24 : index
    %c0_41 = arith.constant 0 : index
    %47 = vector.load %arg33[%c24_40, %c0_41] : memref<72x128xf32, #tpu.memory_space<vmem>>, vector<8x128xf32>
    tpu.vector_store %arg33[%c24_40, %c0_41], %46 {strides = array<i32>} : memref<72x128xf32, #tpu.memory_space<vmem>>, vector<8x128xf32>,
    %48 = vector.extract_strided_slice %39 {offsets = [0, 512], sizes = [8, 128], strides = [1, 1]} : vector<8x1152xf32> to vector<8x128xf32>
    %c32_42 = arith.constant 32 : index
    %c0_43 = arith.constant 0 : index
    %49 = vector.load %arg33[%c32_42, %c0_43] : memref<72x128xf32, #tpu.memory_space<vmem>>, vector<8x128xf32>
    tpu.vector_store %arg33[%c32_42, %c0_43], %48 {strides = array<i32>} : memref<72x128xf32, #tpu.memory_space<vmem>>, vector<8x128xf32>,
    %50 = vector.extract_strided_slice %39 {offsets = [0, 640], sizes = [8, 128], strides = [1, 1]} : vector<8x1152xf32> to vector<8x128xf32>
    %c40_44 = arith.constant 40 : index
    %c0_45 = arith.constant 0 : index
    %51 = vector.load %arg33[%c40_44, %c0_45] : memref<72x128xf32, #tpu.memory_space<vmem>>, vector<8x128xf32>
    tpu.vector_store %arg33[%c40_44, %c0_45], %50 {strides = array<i32>} : memref<72x128xf32, #tpu.memory_space<vmem>>, vector<8x128xf32>,
    %52 = vector.extract_strided_slice %39 {offsets = [0, 768], sizes = [8, 128], strides = [1, 1]} : vector<8x1152xf32> to vector<8x128xf32>
    %c48_46 = arith.constant 48 : index
    %c0_47 = arith.constant 0 : index
    %53 = vector.load %arg33[%c48_46, %c0_47] : memref<72x128xf32, #tpu.memory_space<vmem>>, vector<8x128xf32>
    tpu.vector_store %arg33[%c48_46, %c0_47], %52 {strides = array<i32>} : memref<72x128xf32, #tpu.memory_space<vmem>>, vector<8x128xf32>,
    %54 = vector.extract_strided_slice %39 {offsets = [0, 896], sizes = [8, 128], strides = [1, 1]} : vector<8x1152xf32> to vector<8x128xf32>
    %c56_48 = arith.constant 56 : index
    %c0_49 = arith.constant 0 : index
    %55 = vector.load %arg33[%c56_48, %c0_49] : memref<72x128xf32, #tpu.memory_space<vmem>>, vector<8x128xf32>
    tpu.vector_store %arg33[%c56_48, %c0_49], %54 {strides = array<i32>} : memref<72x128xf32, #tpu.memory_space<vmem>>, vector<8x128xf32>,
    %56 = vector.extract_strided_slice %39 {offsets = [0, 1024], sizes = [8, 128], strides = [1, 1]} : vector<8x1152xf32> to vector<8x128xf32>
    %c64_50 = arith.constant 64 : index
    %c0_51 = arith.constant 0 : index
    %57 = vector.load %arg33[%c64_50, %c0_51] : memref<72x128xf32, #tpu.memory_space<vmem>>, vector<8x128xf32>
    tpu.vector_store %arg33[%c64_50, %c0_51], %56 {strides = array<i32>} : memref<72x128xf32, #tpu.memory_space<vmem>>, vector<8x128xf32>,
    %c0_52 = arith.constant 0 : index
    %c0_53 = arith.constant 0 : index
    %58 = vector.load %arg33[%c0_52, %c0_53] : memref<72x128xf32, #tpu.memory_space<vmem>>, vector<72x128xf32>
    %cst_54 = arith.constant dense<0.000000e+00> : vector<8x128xf32>
    %59 = tpu.matmul %30, %58, %cst_54 {dimension_numbers = #tpu.dot_dimension_numbers<[1], [0], [0], [1], [0, 0, 1, 1], [], []>} : vector<8x72xf32>, vector<72x128xf32>, vector<8x128xf32> -> vector<8x128xf32>
    %60 = vector.broadcast %31 : vector<8x1xf32> to vector<8x128xf32>
    %61 = arith.addf %59, %60 : vector<8x128xf32>
    %cst_55 = arith.constant 0.000000e+00 : f32
    %62 = vector.broadcast %cst_55 : f32 to vector<8x128xf32>
    %63 = arith.cmpf ogt, %61, %62 : vector<8x128xf32>
    %cst_56 = arith.constant 2.000000e-01 : f32
    %64 = vector.broadcast %cst_56 : f32 to vector<8x128xf32>
    %65 = arith.mulf %64, %61 : vector<8x128xf32>
    %66 = arith.select %63, %61, %65 : vector<8x128xi1>, vector<8x128xf32>
    %c0_57 = arith.constant 0 : index
    %c0_58 = arith.constant 0 : index
    %67 = vector.load %arg2[%c0_57, %c0_58] : memref<128x1152xf32, #tpu.memory_space<vmem>>, vector<128x1152xf32>
    %cst_59 = arith.constant dense<0.000000e+00> : vector<8x1152xf32>
    %68 = tpu.matmul %66, %67, %cst_59 {dimension_numbers = #tpu.dot_dimension_numbers<[1], [0], [0], [1], [0, 0, 1, 1], [], []>} : vector<8x128xf32>, vector<128x1152xf32>, vector<8x1152xf32> -> vector<8x1152xf32>
    %69 = vector.extract_strided_slice %68 {offsets = [0, 0], sizes = [8, 128], strides = [1, 1]} : vector<8x1152xf32> to vector<8x128xf32>
    %c0_60 = arith.constant 0 : index
    %c0_61 = arith.constant 0 : index
    %70 = vector.load %arg33[%c0_60, %c0_61] : memref<72x128xf32, #tpu.memory_space<vmem>>, vector<8x128xf32>
    tpu.vector_store %arg33[%c0_60, %c0_61], %69 {strides = array<i32>} : memref<72x128xf32, #tpu.memory_space<vmem>>, vector<8x128xf32>,
    %71 = vector.extract_strided_slice %68 {offsets = [0, 128], sizes = [8, 128], strides = [1, 1]} : vector<8x1152xf32> to vector<8x128xf32>
    %c8_62 = arith.constant 8 : index
    %c0_63 = arith.constant 0 : index
    %72 = vector.load %arg33[%c8_62, %c0_63] : memref<72x128xf32, #tpu.memory_space<vmem>>, vector<8x128xf32>
    tpu.vector_store %arg33[%c8_62, %c0_63], %71 {strides = array<i32>} : memref<72x128xf32, #tpu.memory_space<vmem>>, vector<8x128xf32>,
    %73 = vector.extract_strided_slice %68 {offsets = [0, 256], sizes = [8, 128], strides = [1, 1]} : vector<8x1152xf32> to vector<8x128xf32>
    %c16_64 = arith.constant 16 : index
    %c0_65 = arith.constant 0 : index
    %74 = vector.load %arg33[%c16_64, %c0_65] : memref<72x128xf32, #tpu.memory_space<vmem>>, vector<8x128xf32>
    tpu.vector_store %arg33[%c16_64, %c0_65], %73 {strides = array<i32>} : memref<72x128xf32, #tpu.memory_space<vmem>>, vector<8x128xf32>,
    %75 = vector.extract_strided_slice %68 {offsets = [0, 384], sizes = [8, 128], strides = [1, 1]} : vector<8x1152xf32> to vector<8x128xf32>
    %c24_66 = arith.constant 24 : index
    %c0_67 = arith.constant 0 : index
    %76 = vector.load %arg33[%c24_66, %c0_67] : memref<72x128xf32, #tpu.memory_space<vmem>>, vector<8x128xf32>
    tpu.vector_store %arg33[%c24_66, %c0_67], %75 {strides = array<i32>} : memref<72x128xf32, #tpu.memory_space<vmem>>, vector<8x128xf32>,
    %77 = vector.extract_strided_slice %68 {offsets = [0, 512], sizes = [8, 128], strides = [1, 1]} : vector<8x1152xf32> to vector<8x128xf32>
    %c32_68 = arith.constant 32 : index
    %c0_69 = arith.constant 0 : index
    %78 = vector.load %arg33[%c32_68, %c0_69] : memref<72x128xf32, #tpu.memory_space<vmem>>, vector<8x128xf32>
    tpu.vector_store %arg33[%c32_68, %c0_69], %77 {strides = array<i32>} : memref<72x128xf32, #tpu.memory_space<vmem>>, vector<8x128xf32>,
    %79 = vector.extract_strided_slice %68 {offsets = [0, 640], sizes = [8, 128], strides = [1, 1]} : vector<8x1152xf32> to vector<8x128xf32>
    %c40_70 = arith.constant 40 : index
    %c0_71 = arith.constant 0 : index
    %80 = vector.load %arg33[%c40_70, %c0_71] : memref<72x128xf32, #tpu.memory_space<vmem>>, vector<8x128xf32>
    tpu.vector_store %arg33[%c40_70, %c0_71], %79 {strides = array<i32>} : memref<72x128xf32, #tpu.memory_space<vmem>>, vector<8x128xf32>,
    %81 = vector.extract_strided_slice %68 {offsets = [0, 768], sizes = [8, 128], strides = [1, 1]} : vector<8x1152xf32> to vector<8x128xf32>
    %c48_72 = arith.constant 48 : index
    %c0_73 = arith.constant 0 : index
    %82 = vector.load %arg33[%c48_72, %c0_73] : memref<72x128xf32, #tpu.memory_space<vmem>>, vector<8x128xf32>
    tpu.vector_store %arg33[%c48_72, %c0_73], %81 {strides = array<i32>} : memref<72x128xf32, #tpu.memory_space<vmem>>, vector<8x128xf32>,
    %83 = vector.extract_strided_slice %68 {offsets = [0, 896], sizes = [8, 128], strides = [1, 1]} : vector<8x1152xf32> to vector<8x128xf32>
    %c56_74 = arith.constant 56 : index
    %c0_75 = arith.constant 0 : index
    %84 = vector.load %arg33[%c56_74, %c0_75] : memref<72x128xf32, #tpu.memory_space<vmem>>, vector<8x128xf32>
    tpu.vector_store %arg33[%c56_74, %c0_75], %83 {strides = array<i32>} : memref<72x128xf32, #tpu.memory_space<vmem>>, vector<8x128xf32>,
    %85 = vector.extract_strided_slice %68 {offsets = [0, 1024], sizes = [8, 128], strides = [1, 1]} : vector<8x1152xf32> to vector<8x128xf32>
    %c64_76 = arith.constant 64 : index
    %c0_77 = arith.constant 0 : index
    %86 = vector.load %arg33[%c64_76, %c0_77] : memref<72x128xf32, #tpu.memory_space<vmem>>, vector<8x128xf32>
    tpu.vector_store %arg33[%c64_76, %c0_77], %85 {strides = array<i32>} : memref<72x128xf32, #tpu.memory_space<vmem>>, vector<8x128xf32>,
    %c0_78 = arith.constant 0 : index
    %c0_79 = arith.constant 0 : index
    %87 = vector.load %arg33[%c0_78, %c0_79] : memref<72x128xf32, #tpu.memory_space<vmem>>, vector<72x128xf32>
    %cst_80 = arith.constant dense<0.000000e+00> : vector<8x128xf32>
    %88 = tpu.matmul %32, %87, %cst_80 {dimension_numbers = #tpu.dot_dimension_numbers<[1], [0], [0], [1], [0, 0, 1, 1], [], []>} : vector<8x72xf32>, vector<72x128xf32>, vector<8x128xf32> -> vector<8x128xf32>
    %cst_81 = arith.constant 1.000000e-01 : f32
    %89 = vector.broadcast %cst_81 : f32 to vector<8x128xf32>
    %90 = arith.mulf %89, %88 : vector<8x128xf32>
    %91 = arith.addf %29, %90 : vector<8x128xf32>
    %c0_82 = arith.constant 0 : index
    %c0_83 = arith.constant 0 : index
    %c0_84 = arith.constant 0 : index
    %92 = vector.load %arg31[%c0_82, %c0_83, %c0_84] : memref<3x8x128xf32, #tpu.memory_space<vmem>>, vector<1x8x128xf32>
    %93 = vector.shape_cast %92 : vector<1x8x128xf32> to vector<8x128xf32>
    %94 = vector.shape_cast %91 : vector<8x128xf32> to vector<1x8x128xf32>
    tpu.vector_store %arg31[%c0_82, %c0_83, %c0_84], %94 {strides = array<i32>} : memref<3x8x128xf32, #tpu.memory_space<vmem>>, vector<1x8x128xf32>,
    %c0_85 = arith.constant 0 : index
    %c0_86 = arith.constant 0 : index
    %95 = vector.load %arg3[%c0_85, %c0_86] : memref<128x128xf32, #tpu.memory_space<vmem>>, vector<128x128xf32>
    %cst_87 = arith.constant dense<0.000000e+00> : vector<8x128xf32>
    %96 = tpu.matmul %91, %95, %cst_87 {dimension_numbers = #tpu.dot_dimension_numbers<[1], [0], [0], [1], [0, 0, 1, 1], [], []>} : vector<8x128xf32>, vector<128x128xf32>, vector<8x128xf32> -> vector<8x128xf32>
    %97 = arith.subf %91, %96 : vector<8x128xf32>
    %98 = arith.mulf %97, %97 : vector<8x128xf32>
    %c0_88 = arith.constant 0 : index
    %c0_89 = arith.constant 0 : index
    %99 = vector.load %arg3[%c0_88, %c0_89] : memref<128x128xf32, #tpu.memory_space<vmem>>, vector<128x128xf32>
    %cst_90 = arith.constant dense<0.000000e+00> : vector<8x128xf32>
    %100 = tpu.matmul %98, %99, %cst_90 {dimension_numbers = #tpu.dot_dimension_numbers<[1], [0], [0], [1], [0, 0, 1, 1], [], []>} : vector<8x128xf32>, vector<128x128xf32>, vector<8x128xf32> -> vector<8x128xf32>
    %cst_91 = arith.constant 9.99999974E-6 : f32
    %101 = vector.broadcast %cst_91 : f32 to vector<8x128xf32>
    %102 = arith.addf %100, %101 : vector<8x128xf32>
    %103 = math.rsqrt %102 : vector<8x128xf32>
    %104 = arith.mulf %97, %103 : vector<8x128xf32>
    %c0_92 = arith.constant 0 : index
    %c0_93 = arith.constant 0 : index
    %105 = vector.load %arg9[%c0_92, %c0_93] : memref<32x8xf32, #tpu.memory_space<vmem>>, vector<32x8xf32>
    %c0_94 = arith.constant 0 : index
    %c0_95 = arith.constant 0 : index
    %106 = vector.load %arg10[%c0_94, %c0_95] : memref<32x1xf32, #tpu.memory_space<vmem>>, vector<32x1xf32>
    %c0_96 = arith.constant 0 : index
    %c0_97 = arith.constant 0 : index
    %107 = vector.load %arg11[%c0_96, %c0_97] : memref<8x32xf32, #tpu.memory_space<vmem>>, vector<8x32xf32>
    %cst_98 = arith.constant 0.000000e+00 : f32
    %108 = vector.broadcast %cst_98 : f32 to vector<8x128xf32>
    %109 = arith.cmpf ogt, %104, %108 : vector<8x128xf32>
    %cst_99 = arith.constant 2.000000e-01 : f32
    %110 = vector.broadcast %cst_99 : f32 to vector<8x128xf32>
    %111 = arith.mulf %110, %104 : vector<8x128xf32>
    %112 = arith.select %109, %104, %111 : vector<8x128xi1>, vector<8x128xf32>
    %cst_100 = arith.constant dense<0.000000e+00> : vector<32x128xf32>
    %113 = tpu.matmul %105, %112, %cst_100 {dimension_numbers = #tpu.dot_dimension_numbers<[1], [0], [0], [1], [0, 0, 1, 1], [], []>} : vector<32x8xf32>, vector<8x128xf32>, vector<32x128xf32> -> vector<32x128xf32>
    %114 = vector.broadcast %106 : vector<32x1xf32> to vector<32x128xf32>
    %115 = arith.addf %113, %114 : vector<32x128xf32>
    %cst_101 = arith.constant 0.000000e+00 : f32
    %116 = vector.broadcast %cst_101 : f32 to vector<32x128xf32>
    %117 = arith.cmpf ogt, %115, %116 : vector<32x128xf32>
    %cst_102 = arith.constant 2.000000e-01 : f32
    %118 = vector.broadcast %cst_102 : f32 to vector<32x128xf32>
    %119 = arith.mulf %118, %115 : vector<32x128xf32>
    %120 = arith.select %117, %115, %119 : vector<32x128xi1>, vector<32x128xf32>
    %cst_103 = arith.constant dense<0.000000e+00> : vector<8x128xf32>
    %121 = tpu.matmul %107, %120, %cst_103 {dimension_numbers = #tpu.dot_dimension_numbers<[1], [0], [0], [1], [0, 0, 1, 1], [], []>} : vector<8x32xf32>, vector<32x128xf32>, vector<8x128xf32> -> vector<8x128xf32>
    %cst_104 = arith.constant 1.000000e-01 : f32
    %122 = vector.broadcast %cst_104 : f32 to vector<8x128xf32>
    %123 = arith.mulf %122, %121 : vector<8x128xf32>
    %124 = arith.addf %104, %123 : vector<8x128xf32>
    %c0_105 = arith.constant 0 : index
    %c0_106 = arith.constant 0 : index
    %125 = vector.load %arg12[%c0_105, %c0_106] : memref<8x72xf32, #tpu.memory_space<vmem>>, vector<8x72xf32>
    %c0_107 = arith.constant 0 : index
    %c0_108 = arith.constant 0 : index
    %126 = vector.load %arg13[%c0_107, %c0_108] : memref<8x1xf32, #tpu.memory_space<vmem>>, vector<8x1xf32>
    %c0_109 = arith.constant 0 : index
    %c0_110 = arith.constant 0 : index
    %127 = vector.load %arg14[%c0_109, %c0_110] : memref<8x72xf32, #tpu.memory_space<vmem>>, vector<8x72xf32>
    %cst_111 = arith.constant 0.000000e+00 : f32
    %128 = vector.broadcast %cst_111 : f32 to vector<8x128xf32>
    %129 = arith.cmpf ogt, %124, %128 : vector<8x128xf32>
    %cst_112 = arith.constant 2.000000e-01 : f32
    %130 = vector.broadcast %cst_112 : f32 to vector<8x128xf32>
    %131 = arith.mulf %130, %124 : vector<8x128xf32>
    %132 = arith.select %129, %124, %131 : vector<8x128xi1>, vector<8x128xf32>
    %c0_113 = arith.constant 0 : index
    %c0_114 = arith.constant 0 : index
    %133 = vector.load %arg2[%c0_113, %c0_114] : memref<128x1152xf32, #tpu.memory_space<vmem>>, vector<128x1152xf32>
    %cst_115 = arith.constant dense<0.000000e+00> : vector<8x1152xf32>
    %134 = tpu.matmul %132, %133, %cst_115 {dimension_numbers = #tpu.dot_dimension_numbers<[1], [0], [0], [1], [0, 0, 1, 1], [], []>} : vector<8x128xf32>, vector<128x1152xf32>, vector<8x1152xf32> -> vector<8x1152xf32>
    %135 = vector.extract_strided_slice %134 {offsets = [0, 0], sizes = [8, 128], strides = [1, 1]} : vector<8x1152xf32> to vector<8x128xf32>
    %c0_116 = arith.constant 0 : index
    %c0_117 = arith.constant 0 : index
    %136 = vector.load %arg33[%c0_116, %c0_117] : memref<72x128xf32, #tpu.memory_space<vmem>>, vector<8x128xf32>
    tpu.vector_store %arg33[%c0_116, %c0_117], %135 {strides = array<i32>} : memref<72x128xf32, #tpu.memory_space<vmem>>, vector<8x128xf32>,
    %137 = vector.extract_strided_slice %134 {offsets = [0, 128], sizes = [8, 128], strides = [1, 1]} : vector<8x1152xf32> to vector<8x128xf32>
    %c8_118 = arith.constant 8 : index
    %c0_119 = arith.constant 0 : index
    %138 = vector.load %arg33[%c8_118, %c0_119] : memref<72x128xf32, #tpu.memory_space<vmem>>, vector<8x128xf32>
    tpu.vector_store %arg33[%c8_118, %c0_119], %137 {strides = array<i32>} : memref<72x128xf32, #tpu.memory_space<vmem>>, vector<8x128xf32>,
    %139 = vector.extract_strided_slice %134 {offsets = [0, 256], sizes = [8, 128], strides = [1, 1]} : vector<8x1152xf32> to vector<8x128xf32>
    %c16_120 = arith.constant 16 : index
    %c0_121 = arith.constant 0 : index
    %140 = vector.load %arg33[%c16_120, %c0_121] : memref<72x128xf32, #tpu.memory_space<vmem>>, vector<8x128xf32>
    tpu.vector_store %arg33[%c16_120, %c0_121], %139 {strides = array<i32>} : memref<72x128xf32, #tpu.memory_space<vmem>>, vector<8x128xf32>,
    %141 = vector.extract_strided_slice %134 {offsets = [0, 384], sizes = [8, 128], strides = [1, 1]} : vector<8x1152xf32> to vector<8x128xf32>
    %c24_122 = arith.constant 24 : index
    %c0_123 = arith.constant 0 : index
    %142 = vector.load %arg33[%c24_122, %c0_123] : memref<72x128xf32, #tpu.memory_space<vmem>>, vector<8x128xf32>
    tpu.vector_store %arg33[%c24_122, %c0_123], %141 {strides = array<i32>} : memref<72x128xf32, #tpu.memory_space<vmem>>, vector<8x128xf32>,
    %143 = vector.extract_strided_slice %134 {offsets = [0, 512], sizes = [8, 128], strides = [1, 1]} : vector<8x1152xf32> to vector<8x128xf32>
    %c32_124 = arith.constant 32 : index
    %c0_125 = arith.constant 0 : index
    %144 = vector.load %arg33[%c32_124, %c0_125] : memref<72x128xf32, #tpu.memory_space<vmem>>, vector<8x128xf32>
    tpu.vector_store %arg33[%c32_124, %c0_125], %143 {strides = array<i32>} : memref<72x128xf32, #tpu.memory_space<vmem>>, vector<8x128xf32>,
    %145 = vector.extract_strided_slice %134 {offsets = [0, 640], sizes = [8, 128], strides = [1, 1]} : vector<8x1152xf32> to vector<8x128xf32>
    %c40_126 = arith.constant 40 : index
    %c0_127 = arith.constant 0 : index
    %146 = vector.load %arg33[%c40_126, %c0_127] : memref<72x128xf32, #tpu.memory_space<vmem>>, vector<8x128xf32>
    tpu.vector_store %arg33[%c40_126, %c0_127], %145 {strides = array<i32>} : memref<72x128xf32, #tpu.memory_space<vmem>>, vector<8x128xf32>,
    %147 = vector.extract_strided_slice %134 {offsets = [0, 768], sizes = [8, 128], strides = [1, 1]} : vector<8x1152xf32> to vector<8x128xf32>
    %c48_128 = arith.constant 48 : index
    %c0_129 = arith.constant 0 : index
    %148 = vector.load %arg33[%c48_128, %c0_129] : memref<72x128xf32, #tpu.memory_space<vmem>>, vector<8x128xf32>
    tpu.vector_store %arg33[%c48_128, %c0_129], %147 {strides = array<i32>} : memref<72x128xf32, #tpu.memory_space<vmem>>, vector<8x128xf32>,
    %149 = vector.extract_strided_slice %134 {offsets = [0, 896], sizes = [8, 128], strides = [1, 1]} : vector<8x1152xf32> to vector<8x128xf32>
    %c56_130 = arith.constant 56 : index
    %c0_131 = arith.constant 0 : index
    %150 = vector.load %arg33[%c56_130, %c0_131] : memref<72x128xf32, #tpu.memory_space<vmem>>, vector<8x128xf32>
    tpu.vector_store %arg33[%c56_130, %c0_131], %149 {strides = array<i32>} : memref<72x128xf32, #tpu.memory_space<vmem>>, vector<8x128xf32>,
    %151 = vector.extract_strided_slice %134 {offsets = [0, 1024], sizes = [8, 128], strides = [1, 1]} : vector<8x1152xf32> to vector<8x128xf32>
    %c64_132 = arith.constant 64 : index
    %c0_133 = arith.constant 0 : index
    %152 = vector.load %arg33[%c64_132, %c0_133] : memref<72x128xf32, #tpu.memory_space<vmem>>, vector<8x128xf32>
    tpu.vector_store %arg33[%c64_132, %c0_133], %151 {strides = array<i32>} : memref<72x128xf32, #tpu.memory_space<vmem>>, vector<8x128xf32>,
    %c0_134 = arith.constant 0 : index
    %c0_135 = arith.constant 0 : index
    %153 = vector.load %arg33[%c0_134, %c0_135] : memref<72x128xf32, #tpu.memory_space<vmem>>, vector<72x128xf32>
    %cst_136 = arith.constant dense<0.000000e+00> : vector<8x128xf32>
    %154 = tpu.matmul %125, %153, %cst_136 {dimension_numbers = #tpu.dot_dimension_numbers<[1], [0], [0], [1], [0, 0, 1, 1], [], []>} : vector<8x72xf32>, vector<72x128xf32>, vector<8x128xf32> -> vector<8x128xf32>
    %155 = vector.broadcast %126 : vector<8x1xf32> to vector<8x128xf32>
    %156 = arith.addf %154, %155 : vector<8x128xf32>
    %cst_137 = arith.constant 0.000000e+00 : f32
    %157 = vector.broadcast %cst_137 : f32 to vector<8x128xf32>
    %158 = arith.cmpf ogt, %156, %157 : vector<8x128xf32>
    %cst_138 = arith.constant 2.000000e-01 : f32
    %159 = vector.broadcast %cst_138 : f32 to vector<8x128xf32>
    %160 = arith.mulf %159, %156 : vector<8x128xf32>
    %161 = arith.select %158, %156, %160 : vector<8x128xi1>, vector<8x128xf32>
    %c0_139 = arith.constant 0 : index
    %c0_140 = arith.constant 0 : index
    %162 = vector.load %arg2[%c0_139, %c0_140] : memref<128x1152xf32, #tpu.memory_space<vmem>>, vector<128x1152xf32>
    %cst_141 = arith.constant dense<0.000000e+00> : vector<8x1152xf32>
    %163 = tpu.matmul %161, %162, %cst_141 {dimension_numbers = #tpu.dot_dimension_numbers<[1], [0], [0], [1], [0, 0, 1, 1], [], []>} : vector<8x128xf32>, vector<128x1152xf32>, vector<8x1152xf32> -> vector<8x1152xf32>
    %164 = vector.extract_strided_slice %163 {offsets = [0, 0], sizes = [8, 128], strides = [1, 1]} : vector<8x1152xf32> to vector<8x128xf32>
    %c0_142 = arith.constant 0 : index
    %c0_143 = arith.constant 0 : index
    %165 = vector.load %arg33[%c0_142, %c0_143] : memref<72x128xf32, #tpu.memory_space<vmem>>, vector<8x128xf32>
    tpu.vector_store %arg33[%c0_142, %c0_143], %164 {strides = array<i32>} : memref<72x128xf32, #tpu.memory_space<vmem>>, vector<8x128xf32>,
    %166 = vector.extract_strided_slice %163 {offsets = [0, 128], sizes = [8, 128], strides = [1, 1]} : vector<8x1152xf32> to vector<8x128xf32>
    %c8_144 = arith.constant 8 : index
    %c0_145 = arith.constant 0 : index
    %167 = vector.load %arg33[%c8_144, %c0_145] : memref<72x128xf32, #tpu.memory_space<vmem>>, vector<8x128xf32>
    tpu.vector_store %arg33[%c8_144, %c0_145], %166 {strides = array<i32>} : memref<72x128xf32, #tpu.memory_space<vmem>>, vector<8x128xf32>,
    %168 = vector.extract_strided_slice %163 {offsets = [0, 256], sizes = [8, 128], strides = [1, 1]} : vector<8x1152xf32> to vector<8x128xf32>
    %c16_146 = arith.constant 16 : index
    %c0_147 = arith.constant 0 : index
    %169 = vector.load %arg33[%c16_146, %c0_147] : memref<72x128xf32, #tpu.memory_space<vmem>>, vector<8x128xf32>
    tpu.vector_store %arg33[%c16_146, %c0_147], %168 {strides = array<i32>} : memref<72x128xf32, #tpu.memory_space<vmem>>, vector<8x128xf32>,
    %170 = vector.extract_strided_slice %163 {offsets = [0, 384], sizes = [8, 128], strides = [1, 1]} : vector<8x1152xf32> to vector<8x128xf32>
    %c24_148 = arith.constant 24 : index
    %c0_149 = arith.constant 0 : index
    %171 = vector.load %arg33[%c24_148, %c0_149] : memref<72x128xf32, #tpu.memory_space<vmem>>, vector<8x128xf32>
    tpu.vector_store %arg33[%c24_148, %c0_149], %170 {strides = array<i32>} : memref<72x128xf32, #tpu.memory_space<vmem>>, vector<8x128xf32>,
    %172 = vector.extract_strided_slice %163 {offsets = [0, 512], sizes = [8, 128], strides = [1, 1]} : vector<8x1152xf32> to vector<8x128xf32>
    %c32_150 = arith.constant 32 : index
    %c0_151 = arith.constant 0 : index
    %173 = vector.load %arg33[%c32_150, %c0_151] : memref<72x128xf32, #tpu.memory_space<vmem>>, vector<8x128xf32>
    tpu.vector_store %arg33[%c32_150, %c0_151], %172 {strides = array<i32>} : memref<72x128xf32, #tpu.memory_space<vmem>>, vector<8x128xf32>,
    %174 = vector.extract_strided_slice %163 {offsets = [0, 640], sizes = [8, 128], strides = [1, 1]} : vector<8x1152xf32> to vector<8x128xf32>
    %c40_152 = arith.constant 40 : index
    %c0_153 = arith.constant 0 : index
    %175 = vector.load %arg33[%c40_152, %c0_153] : memref<72x128xf32, #tpu.memory_space<vmem>>, vector<8x128xf32>
    tpu.vector_store %arg33[%c40_152, %c0_153], %174 {strides = array<i32>} : memref<72x128xf32, #tpu.memory_space<vmem>>, vector<8x128xf32>,
    %176 = vector.extract_strided_slice %163 {offsets = [0, 768], sizes = [8, 128], strides = [1, 1]} : vector<8x1152xf32> to vector<8x128xf32>
    %c48_154 = arith.constant 48 : index
    %c0_155 = arith.constant 0 : index
    %177 = vector.load %arg33[%c48_154, %c0_155] : memref<72x128xf32, #tpu.memory_space<vmem>>, vector<8x128xf32>
    tpu.vector_store %arg33[%c48_154, %c0_155], %176 {strides = array<i32>} : memref<72x128xf32, #tpu.memory_space<vmem>>, vector<8x128xf32>,
    %178 = vector.extract_strided_slice %163 {offsets = [0, 896], sizes = [8, 128], strides = [1, 1]} : vector<8x1152xf32> to vector<8x128xf32>
    %c56_156 = arith.constant 56 : index
    %c0_157 = arith.constant 0 : index
    %179 = vector.load %arg33[%c56_156, %c0_157] : memref<72x128xf32, #tpu.memory_space<vmem>>, vector<8x128xf32>
    tpu.vector_store %arg33[%c56_156, %c0_157], %178 {strides = array<i32>} : memref<72x128xf32, #tpu.memory_space<vmem>>, vector<8x128xf32>,
    %180 = vector.extract_strided_slice %163 {offsets = [0, 1024], sizes = [8, 128], strides = [1, 1]} : vector<8x1152xf32> to vector<8x128xf32>
    %c64_158 = arith.constant 64 : index
    %c0_159 = arith.constant 0 : index
    %181 = vector.load %arg33[%c64_158, %c0_159] : memref<72x128xf32, #tpu.memory_space<vmem>>, vector<8x128xf32>
    tpu.vector_store %arg33[%c64_158, %c0_159], %180 {strides = array<i32>} : memref<72x128xf32, #tpu.memory_space<vmem>>, vector<8x128xf32>,
    %c0_160 = arith.constant 0 : index
    %c0_161 = arith.constant 0 : index
    %182 = vector.load %arg33[%c0_160, %c0_161] : memref<72x128xf32, #tpu.memory_space<vmem>>, vector<72x128xf32>
    %cst_162 = arith.constant dense<0.000000e+00> : vector<8x128xf32>
    %183 = tpu.matmul %127, %182, %cst_162 {dimension_numbers = #tpu.dot_dimension_numbers<[1], [0], [0], [1], [0, 0, 1, 1], [], []>} : vector<8x72xf32>, vector<72x128xf32>, vector<8x128xf32> -> vector<8x128xf32>
    %cst_163 = arith.constant 1.000000e-01 : f32
    %184 = vector.broadcast %cst_163 : f32 to vector<8x128xf32>
    %185 = arith.mulf %184, %183 : vector<8x128xf32>
    %186 = arith.addf %124, %185 : vector<8x128xf32>
    %187 = vector.broadcast %2 : f32 to vector<8x128xf32>
    %188 = arith.mulf %187, %186 : vector<8x128xf32>
    %189 = arith.addf %91, %188 : vector<8x128xf32>
    %c1 = arith.constant 1 : index
    %c0_164 = arith.constant 0 : index
    %c0_165 = arith.constant 0 : index
    %190 = vector.load %arg31[%c1, %c0_164, %c0_165] : memref<3x8x128xf32, #tpu.memory_space<vmem>>, vector<1x8x128xf32>
    %191 = vector.shape_cast %190 : vector<1x8x128xf32> to vector<8x128xf32>
    %192 = vector.shape_cast %189 : vector<8x128xf32> to vector<1x8x128xf32>
    tpu.vector_store %arg31[%c1, %c0_164, %c0_165], %192 {strides = array<i32>} : memref<3x8x128xf32, #tpu.memory_space<vmem>>, vector<1x8x128xf32>,
    %c0_166 = arith.constant 0 : index
    %c0_167 = arith.constant 0 : index
    %193 = vector.load %arg3[%c0_166, %c0_167] : memref<128x128xf32, #tpu.memory_space<vmem>>, vector<128x128xf32>
    %cst_168 = arith.constant dense<0.000000e+00> : vector<8x128xf32>
    %194 = tpu.matmul %189, %193, %cst_168 {dimension_numbers = #tpu.dot_dimension_numbers<[1], [0], [0], [1], [0, 0, 1, 1], [], []>} : vector<8x128xf32>, vector<128x128xf32>, vector<8x128xf32> -> vector<8x128xf32>
    %195 = arith.subf %189, %194 : vector<8x128xf32>
    %196 = arith.mulf %195, %195 : vector<8x128xf32>
    %c0_169 = arith.constant 0 : index
    %c0_170 = arith.constant 0 : index
    %197 = vector.load %arg3[%c0_169, %c0_170] : memref<128x128xf32, #tpu.memory_space<vmem>>, vector<128x128xf32>
    %cst_171 = arith.constant dense<0.000000e+00> : vector<8x128xf32>
    %198 = tpu.matmul %196, %197, %cst_171 {dimension_numbers = #tpu.dot_dimension_numbers<[1], [0], [0], [1], [0, 0, 1, 1], [], []>} : vector<8x128xf32>, vector<128x128xf32>, vector<8x128xf32> -> vector<8x128xf32>
    %cst_172 = arith.constant 9.99999974E-6 : f32
    %199 = vector.broadcast %cst_172 : f32 to vector<8x128xf32>
    %200 = arith.addf %198, %199 : vector<8x128xf32>
    %201 = math.rsqrt %200 : vector<8x128xf32>
    %202 = arith.mulf %195, %201 : vector<8x128xf32>
    %c0_173 = arith.constant 0 : index
    %c0_174 = arith.constant 0 : index
    %203 = vector.load %arg9[%c0_173, %c0_174] : memref<32x8xf32, #tpu.memory_space<vmem>>, vector<32x8xf32>
    %c0_175 = arith.constant 0 : index
    %c0_176 = arith.constant 0 : index
    %204 = vector.load %arg10[%c0_175, %c0_176] : memref<32x1xf32, #tpu.memory_space<vmem>>, vector<32x1xf32>
    %c0_177 = arith.constant 0 : index
    %c0_178 = arith.constant 0 : index
    %205 = vector.load %arg11[%c0_177, %c0_178] : memref<8x32xf32, #tpu.memory_space<vmem>>, vector<8x32xf32>
    %cst_179 = arith.constant 0.000000e+00 : f32
    %206 = vector.broadcast %cst_179 : f32 to vector<8x128xf32>
    %207 = arith.cmpf ogt, %202, %206 : vector<8x128xf32>
    %cst_180 = arith.constant 2.000000e-01 : f32
    %208 = vector.broadcast %cst_180 : f32 to vector<8x128xf32>
    %209 = arith.mulf %208, %202 : vector<8x128xf32>
    %210 = arith.select %207, %202, %209 : vector<8x128xi1>, vector<8x128xf32>
    %cst_181 = arith.constant dense<0.000000e+00> : vector<32x128xf32>
    %211 = tpu.matmul %203, %210, %cst_181 {dimension_numbers = #tpu.dot_dimension_numbers<[1], [0], [0], [1], [0, 0, 1, 1], [], []>} : vector<32x8xf32>, vector<8x128xf32>, vector<32x128xf32> -> vector<32x128xf32>
    %212 = vector.broadcast %204 : vector<32x1xf32> to vector<32x128xf32>
    %213 = arith.addf %211, %212 : vector<32x128xf32>
    %cst_182 = arith.constant 0.000000e+00 : f32
    %214 = vector.broadcast %cst_182 : f32 to vector<32x128xf32>
    %215 = arith.cmpf ogt, %213, %214 : vector<32x128xf32>
    %cst_183 = arith.constant 2.000000e-01 : f32
    %216 = vector.broadcast %cst_183 : f32 to vector<32x128xf32>
    %217 = arith.mulf %216, %213 : vector<32x128xf32>
    %218 = arith.select %215, %213, %217 : vector<32x128xi1>, vector<32x128xf32>
    %cst_184 = arith.constant dense<0.000000e+00> : vector<8x128xf32>
    %219 = tpu.matmul %205, %218, %cst_184 {dimension_numbers = #tpu.dot_dimension_numbers<[1], [0], [0], [1], [0, 0, 1, 1], [], []>} : vector<8x32xf32>, vector<32x128xf32>, vector<8x128xf32> -> vector<8x128xf32>
    %cst_185 = arith.constant 1.000000e-01 : f32
    %220 = vector.broadcast %cst_185 : f32 to vector<8x128xf32>
    %221 = arith.mulf %220, %219 : vector<8x128xf32>
    %222 = arith.addf %202, %221 : vector<8x128xf32>
    %c0_186 = arith.constant 0 : index
    %c0_187 = arith.constant 0 : index
    %223 = vector.load %arg12[%c0_186, %c0_187] : memref<8x72xf32, #tpu.memory_space<vmem>>, vector<8x72xf32>
    %c0_188 = arith.constant 0 : index
    %c0_189 = arith.constant 0 : index
    %224 = vector.load %arg13[%c0_188, %c0_189] : memref<8x1xf32, #tpu.memory_space<vmem>>, vector<8x1xf32>
    %c0_190 = arith.constant 0 : index
    %c0_191 = arith.constant 0 : index
    %225 = vector.load %arg14[%c0_190, %c0_191] : memref<8x72xf32, #tpu.memory_space<vmem>>, vector<8x72xf32>
    %cst_192 = arith.constant 0.000000e+00 : f32
    %226 = vector.broadcast %cst_192 : f32 to vector<8x128xf32>
    %227 = arith.cmpf ogt, %222, %226 : vector<8x128xf32>
    %cst_193 = arith.constant 2.000000e-01 : f32
    %228 = vector.broadcast %cst_193 : f32 to vector<8x128xf32>
    %229 = arith.mulf %228, %222 : vector<8x128xf32>
    %230 = arith.select %227, %222, %229 : vector<8x128xi1>, vector<8x128xf32>
    %c0_194 = arith.constant 0 : index
    %c0_195 = arith.constant 0 : index
    %231 = vector.load %arg2[%c0_194, %c0_195] : memref<128x1152xf32, #tpu.memory_space<vmem>>, vector<128x1152xf32>
    %cst_196 = arith.constant dense<0.000000e+00> : vector<8x1152xf32>
    %232 = tpu.matmul %230, %231, %cst_196 {dimension_numbers = #tpu.dot_dimension_numbers<[1], [0], [0], [1], [0, 0, 1, 1], [], []>} : vector<8x128xf32>, vector<128x1152xf32>, vector<8x1152xf32> -> vector<8x1152xf32>
    %233 = vector.extract_strided_slice %232 {offsets = [0, 0], sizes = [8, 128], strides = [1, 1]} : vector<8x1152xf32> to vector<8x128xf32>
    %c0_197 = arith.constant 0 : index
    %c0_198 = arith.constant 0 : index
    %234 = vector.load %arg33[%c0_197, %c0_198] : memref<72x128xf32, #tpu.memory_space<vmem>>, vector<8x128xf32>
    tpu.vector_store %arg33[%c0_197, %c0_198], %233 {strides = array<i32>} : memref<72x128xf32, #tpu.memory_space<vmem>>, vector<8x128xf32>,
    %235 = vector.extract_strided_slice %232 {offsets = [0, 128], sizes = [8, 128], strides = [1, 1]} : vector<8x1152xf32> to vector<8x128xf32>
    %c8_199 = arith.constant 8 : index
    %c0_200 = arith.constant 0 : index
    %236 = vector.load %arg33[%c8_199, %c0_200] : memref<72x128xf32, #tpu.memory_space<vmem>>, vector<8x128xf32>
    tpu.vector_store %arg33[%c8_199, %c0_200], %235 {strides = array<i32>} : memref<72x128xf32, #tpu.memory_space<vmem>>, vector<8x128xf32>,
    %237 = vector.extract_strided_slice %232 {offsets = [0, 256], sizes = [8, 128], strides = [1, 1]} : vector<8x1152xf32> to vector<8x128xf32>
    %c16_201 = arith.constant 16 : index
    %c0_202 = arith.constant 0 : index
    %238 = vector.load %arg33[%c16_201, %c0_202] : memref<72x128xf32, #tpu.memory_space<vmem>>, vector<8x128xf32>
    tpu.vector_store %arg33[%c16_201, %c0_202], %237 {strides = array<i32>} : memref<72x128xf32, #tpu.memory_space<vmem>>, vector<8x128xf32>,
    %239 = vector.extract_strided_slice %232 {offsets = [0, 384], sizes = [8, 128], strides = [1, 1]} : vector<8x1152xf32> to vector<8x128xf32>
    %c24_203 = arith.constant 24 : index
    %c0_204 = arith.constant 0 : index
    %240 = vector.load %arg33[%c24_203, %c0_204] : memref<72x128xf32, #tpu.memory_space<vmem>>, vector<8x128xf32>
    tpu.vector_store %arg33[%c24_203, %c0_204], %239 {strides = array<i32>} : memref<72x128xf32, #tpu.memory_space<vmem>>, vector<8x128xf32>,
    %241 = vector.extract_strided_slice %232 {offsets = [0, 512], sizes = [8, 128], strides = [1, 1]} : vector<8x1152xf32> to vector<8x128xf32>
    %c32_205 = arith.constant 32 : index
    %c0_206 = arith.constant 0 : index
    %242 = vector.load %arg33[%c32_205, %c0_206] : memref<72x128xf32, #tpu.memory_space<vmem>>, vector<8x128xf32>
    tpu.vector_store %arg33[%c32_205, %c0_206], %241 {strides = array<i32>} : memref<72x128xf32, #tpu.memory_space<vmem>>, vector<8x128xf32>,
    %243 = vector.extract_strided_slice %232 {offsets = [0, 640], sizes = [8, 128], strides = [1, 1]} : vector<8x1152xf32> to vector<8x128xf32>
    %c40_207 = arith.constant 40 : index
    %c0_208 = arith.constant 0 : index
    %244 = vector.load %arg33[%c40_207, %c0_208] : memref<72x128xf32, #tpu.memory_space<vmem>>, vector<8x128xf32>
    tpu.vector_store %arg33[%c40_207, %c0_208], %243 {strides = array<i32>} : memref<72x128xf32, #tpu.memory_space<vmem>>, vector<8x128xf32>,
    %245 = vector.extract_strided_slice %232 {offsets = [0, 768], sizes = [8, 128], strides = [1, 1]} : vector<8x1152xf32> to vector<8x128xf32>
    %c48_209 = arith.constant 48 : index
    %c0_210 = arith.constant 0 : index
    %246 = vector.load %arg33[%c48_209, %c0_210] : memref<72x128xf32, #tpu.memory_space<vmem>>, vector<8x128xf32>
    tpu.vector_store %arg33[%c48_209, %c0_210], %245 {strides = array<i32>} : memref<72x128xf32, #tpu.memory_space<vmem>>, vector<8x128xf32>,
    %247 = vector.extract_strided_slice %232 {offsets = [0, 896], sizes = [8, 128], strides = [1, 1]} : vector<8x1152xf32> to vector<8x128xf32>
    %c56_211 = arith.constant 56 : index
    %c0_212 = arith.constant 0 : index
    %248 = vector.load %arg33[%c56_211, %c0_212] : memref<72x128xf32, #tpu.memory_space<vmem>>, vector<8x128xf32>
    tpu.vector_store %arg33[%c56_211, %c0_212], %247 {strides = array<i32>} : memref<72x128xf32, #tpu.memory_space<vmem>>, vector<8x128xf32>,
    %249 = vector.extract_strided_slice %232 {offsets = [0, 1024], sizes = [8, 128], strides = [1, 1]} : vector<8x1152xf32> to vector<8x128xf32>
    %c64_213 = arith.constant 64 : index
    %c0_214 = arith.constant 0 : index
    %250 = vector.load %arg33[%c64_213, %c0_214] : memref<72x128xf32, #tpu.memory_space<vmem>>, vector<8x128xf32>
    tpu.vector_store %arg33[%c64_213, %c0_214], %249 {strides = array<i32>} : memref<72x128xf32, #tpu.memory_space<vmem>>, vector<8x128xf32>,
    %c0_215 = arith.constant 0 : index
    %c0_216 = arith.constant 0 : index
    %251 = vector.load %arg33[%c0_215, %c0_216] : memref<72x128xf32, #tpu.memory_space<vmem>>, vector<72x128xf32>
    %cst_217 = arith.constant dense<0.000000e+00> : vector<8x128xf32>
    %252 = tpu.matmul %223, %251, %cst_217 {dimension_numbers = #tpu.dot_dimension_numbers<[1], [0], [0], [1], [0, 0, 1, 1], [], []>} : vector<8x72xf32>, vector<72x128xf32>, vector<8x128xf32> -> vector<8x128xf32>
    %253 = vector.broadcast %224 : vector<8x1xf32> to vector<8x128xf32>
    %254 = arith.addf %252, %253 : vector<8x128xf32>
    %cst_218 = arith.constant 0.000000e+00 : f32
    %255 = vector.broadcast %cst_218 : f32 to vector<8x128xf32>
    %256 = arith.cmpf ogt, %254, %255 : vector<8x128xf32>
    %cst_219 = arith.constant 2.000000e-01 : f32
    %257 = vector.broadcast %cst_219 : f32 to vector<8x128xf32>
    %258 = arith.mulf %257, %254 : vector<8x128xf32>
    %259 = arith.select %256, %254, %258 : vector<8x128xi1>, vector<8x128xf32>
    %c0_220 = arith.constant 0 : index
    %c0_221 = arith.constant 0 : index
    %260 = vector.load %arg2[%c0_220, %c0_221] : memref<128x1152xf32, #tpu.memory_space<vmem>>, vector<128x1152xf32>
    %cst_222 = arith.constant dense<0.000000e+00> : vector<8x1152xf32>
    %261 = tpu.matmul %259, %260, %cst_222 {dimension_numbers = #tpu.dot_dimension_numbers<[1], [0], [0], [1], [0, 0, 1, 1], [], []>} : vector<8x128xf32>, vector<128x1152xf32>, vector<8x1152xf32> -> vector<8x1152xf32>
    %262 = vector.extract_strided_slice %261 {offsets = [0, 0], sizes = [8, 128], strides = [1, 1]} : vector<8x1152xf32> to vector<8x128xf32>
    %c0_223 = arith.constant 0 : index
    %c0_224 = arith.constant 0 : index
    %263 = vector.load %arg33[%c0_223, %c0_224] : memref<72x128xf32, #tpu.memory_space<vmem>>, vector<8x128xf32>
    tpu.vector_store %arg33[%c0_223, %c0_224], %262 {strides = array<i32>} : memref<72x128xf32, #tpu.memory_space<vmem>>, vector<8x128xf32>,
    %264 = vector.extract_strided_slice %261 {offsets = [0, 128], sizes = [8, 128], strides = [1, 1]} : vector<8x1152xf32> to vector<8x128xf32>
    %c8_225 = arith.constant 8 : index
    %c0_226 = arith.constant 0 : index
    %265 = vector.load %arg33[%c8_225, %c0_226] : memref<72x128xf32, #tpu.memory_space<vmem>>, vector<8x128xf32>
    tpu.vector_store %arg33[%c8_225, %c0_226], %264 {strides = array<i32>} : memref<72x128xf32, #tpu.memory_space<vmem>>, vector<8x128xf32>,
    %266 = vector.extract_strided_slice %261 {offsets = [0, 256], sizes = [8, 128], strides = [1, 1]} : vector<8x1152xf32> to vector<8x128xf32>
    %c16_227 = arith.constant 16 : index
    %c0_228 = arith.constant 0 : index
    %267 = vector.load %arg33[%c16_227, %c0_228] : memref<72x128xf32, #tpu.memory_space<vmem>>, vector<8x128xf32>
    tpu.vector_store %arg33[%c16_227, %c0_228], %266 {strides = array<i32>} : memref<72x128xf32, #tpu.memory_space<vmem>>, vector<8x128xf32>,
    %268 = vector.extract_strided_slice %261 {offsets = [0, 384], sizes = [8, 128], strides = [1, 1]} : vector<8x1152xf32> to vector<8x128xf32>
    %c24_229 = arith.constant 24 : index
    %c0_230 = arith.constant 0 : index
    %269 = vector.load %arg33[%c24_229, %c0_230] : memref<72x128xf32, #tpu.memory_space<vmem>>, vector<8x128xf32>
    tpu.vector_store %arg33[%c24_229, %c0_230], %268 {strides = array<i32>} : memref<72x128xf32, #tpu.memory_space<vmem>>, vector<8x128xf32>,
    %270 = vector.extract_strided_slice %261 {offsets = [0, 512], sizes = [8, 128], strides = [1, 1]} : vector<8x1152xf32> to vector<8x128xf32>
    %c32_231 = arith.constant 32 : index
    %c0_232 = arith.constant 0 : index
    %271 = vector.load %arg33[%c32_231, %c0_232] : memref<72x128xf32, #tpu.memory_space<vmem>>, vector<8x128xf32>
    tpu.vector_store %arg33[%c32_231, %c0_232], %270 {strides = array<i32>} : memref<72x128xf32, #tpu.memory_space<vmem>>, vector<8x128xf32>,
    %272 = vector.extract_strided_slice %261 {offsets = [0, 640], sizes = [8, 128], strides = [1, 1]} : vector<8x1152xf32> to vector<8x128xf32>
    %c40_233 = arith.constant 40 : index
    %c0_234 = arith.constant 0 : index
    %273 = vector.load %arg33[%c40_233, %c0_234] : memref<72x128xf32, #tpu.memory_space<vmem>>, vector<8x128xf32>
    tpu.vector_store %arg33[%c40_233, %c0_234], %272 {strides = array<i32>} : memref<72x128xf32, #tpu.memory_space<vmem>>, vector<8x128xf32>,
    %274 = vector.extract_strided_slice %261 {offsets = [0, 768], sizes = [8, 128], strides = [1, 1]} : vector<8x1152xf32> to vector<8x128xf32>
    %c48_235 = arith.constant 48 : index
    %c0_236 = arith.constant 0 : index
    %275 = vector.load %arg33[%c48_235, %c0_236] : memref<72x128xf32, #tpu.memory_space<vmem>>, vector<8x128xf32>
    tpu.vector_store %arg33[%c48_235, %c0_236], %274 {strides = array<i32>} : memref<72x128xf32, #tpu.memory_space<vmem>>, vector<8x128xf32>,
    %276 = vector.extract_strided_slice %261 {offsets = [0, 896], sizes = [8, 128], strides = [1, 1]} : vector<8x1152xf32> to vector<8x128xf32>
    %c56_237 = arith.constant 56 : index
    %c0_238 = arith.constant 0 : index
    %277 = vector.load %arg33[%c56_237, %c0_238] : memref<72x128xf32, #tpu.memory_space<vmem>>, vector<8x128xf32>
    tpu.vector_store %arg33[%c56_237, %c0_238], %276 {strides = array<i32>} : memref<72x128xf32, #tpu.memory_space<vmem>>, vector<8x128xf32>,
    %278 = vector.extract_strided_slice %261 {offsets = [0, 1024], sizes = [8, 128], strides = [1, 1]} : vector<8x1152xf32> to vector<8x128xf32>
    %c64_239 = arith.constant 64 : index
    %c0_240 = arith.constant 0 : index
    %279 = vector.load %arg33[%c64_239, %c0_240] : memref<72x128xf32, #tpu.memory_space<vmem>>, vector<8x128xf32>
    tpu.vector_store %arg33[%c64_239, %c0_240], %278 {strides = array<i32>} : memref<72x128xf32, #tpu.memory_space<vmem>>, vector<8x128xf32>,
    %c0_241 = arith.constant 0 : index
    %c0_242 = arith.constant 0 : index
    %280 = vector.load %arg33[%c0_241, %c0_242] : memref<72x128xf32, #tpu.memory_space<vmem>>, vector<72x128xf32>
    %cst_243 = arith.constant dense<0.000000e+00> : vector<8x128xf32>
    %281 = tpu.matmul %225, %280, %cst_243 {dimension_numbers = #tpu.dot_dimension_numbers<[1], [0], [0], [1], [0, 0, 1, 1], [], []>} : vector<8x72xf32>, vector<72x128xf32>, vector<8x128xf32> -> vector<8x128xf32>
    %cst_244 = arith.constant 1.000000e-01 : f32
    %282 = vector.broadcast %cst_244 : f32 to vector<8x128xf32>
    %283 = arith.mulf %282, %281 : vector<8x128xf32>
    %284 = arith.addf %222, %283 : vector<8x128xf32>
    %285 = vector.broadcast %2 : f32 to vector<8x128xf32>
    %286 = arith.mulf %285, %284 : vector<8x128xf32>
    %287 = arith.addf %189, %286 : vector<8x128xf32>
    %c2 = arith.constant 2 : index
    %c0_245 = arith.constant 0 : index
    %c0_246 = arith.constant 0 : index
    %288 = vector.load %arg31[%c2, %c0_245, %c0_246] : memref<3x8x128xf32, #tpu.memory_space<vmem>>, vector<1x8x128xf32>
    %289 = vector.shape_cast %288 : vector<1x8x128xf32> to vector<8x128xf32>
    %290 = vector.shape_cast %287 : vector<8x128xf32> to vector<1x8x128xf32>
    tpu.vector_store %arg31[%c2, %c0_245, %c0_246], %290 {strides = array<i32>} : memref<3x8x128xf32, #tpu.memory_space<vmem>>, vector<1x8x128xf32>,
    %c0_247 = arith.constant 0 : index
    %c0_248 = arith.constant 0 : index
    %291 = vector.load %arg16[%c0_247, %c0_248] : memref<8x8xf32, #tpu.memory_space<vmem>>, vector<8x8xf32>
    %c0_249 = arith.constant 0 : index
    %c0_250 = arith.constant 0 : index
    %292 = vector.load %arg17[%c0_249, %c0_250] : memref<8x1xf32, #tpu.memory_space<vmem>>, vector<8x1xf32>
    %c0_251 = arith.constant 0 : index
    %c0_252 = arith.constant 0 : index
    %293 = vector.load %arg18[%c0_251, %c0_252] : memref<25x8xf32, #tpu.memory_space<vmem>>, vector<25x8xf32>
    %c0_253 = arith.constant 0 : index
    %c0_254 = arith.constant 0 : index
    %294 = vector.load %arg15[%c0_253, %c0_254] : memref<25x8xf32, #tpu.memory_space<vmem>>, vector<25x8xf32>
    %cst_255 = arith.constant dense<0.000000e+00> : vector<25x128xf32>
    %295 = tpu.matmul %294, %287, %cst_255 {dimension_numbers = #tpu.dot_dimension_numbers<[1], [0], [0], [1], [0, 0, 1, 1], [], []>} : vector<25x8xf32>, vector<8x128xf32>, vector<25x128xf32> -> vector<25x128xf32>
    %cst_256 = arith.constant 0.000000e+00 : f32
    %296 = vector.broadcast %cst_256 : f32 to vector<8x128xf32>
    %297 = arith.cmpf ogt, %287, %296 : vector<8x128xf32>
    %cst_257 = arith.constant 2.000000e-01 : f32
    %298 = vector.broadcast %cst_257 : f32 to vector<8x128xf32>
    %299 = arith.mulf %298, %287 : vector<8x128xf32>
    %300 = arith.select %297, %287, %299 : vector<8x128xi1>, vector<8x128xf32>
    %cst_258 = arith.constant dense<0.000000e+00> : vector<8x128xf32>
    %301 = tpu.matmul %291, %300, %cst_258 {dimension_numbers = #tpu.dot_dimension_numbers<[1], [0], [0], [1], [0, 0, 1, 1], [], []>} : vector<8x8xf32>, vector<8x128xf32>, vector<8x128xf32> -> vector<8x128xf32>
    %302 = vector.broadcast %292 : vector<8x1xf32> to vector<8x128xf32>
    %303 = arith.addf %301, %302 : vector<8x128xf32>
    %cst_259 = arith.constant 0.000000e+00 : f32
    %304 = vector.broadcast %cst_259 : f32 to vector<8x128xf32>
    %305 = arith.cmpf ogt, %303, %304 : vector<8x128xf32>
    %cst_260 = arith.constant 2.000000e-01 : f32
    %306 = vector.broadcast %cst_260 : f32 to vector<8x128xf32>
    %307 = arith.mulf %306, %303 : vector<8x128xf32>
    %308 = arith.select %305, %303, %307 : vector<8x128xi1>, vector<8x128xf32>
    %cst_261 = arith.constant dense<0.000000e+00> : vector<25x128xf32>
    %309 = tpu.matmul %293, %308, %cst_261 {dimension_numbers = #tpu.dot_dimension_numbers<[1], [0], [0], [1], [0, 0, 1, 1], [], []>} : vector<25x8xf32>, vector<8x128xf32>, vector<25x128xf32> -> vector<25x128xf32>
    %cst_262 = arith.constant 1.000000e-01 : f32
    %310 = vector.broadcast %cst_262 : f32 to vector<25x128xf32>
    %311 = arith.mulf %310, %309 : vector<25x128xf32>
    %312 = arith.addf %295, %311 : vector<25x128xf32>
    %c0_263 = arith.constant 0 : index
    %c0_264 = arith.constant 0 : index
    %313 = vector.load %arg21[%c0_263, %c0_264] : memref<128x2xf32, #tpu.memory_space<vmem>>, vector<128x2xf32>
    %314 = vector.extract_strided_slice %312 {offsets = [0, 0], sizes = [8, 128], strides = [1, 1]} : vector<25x128xf32> to vector<8x128xf32>
    %cst_265 = arith.constant dense<0.000000e+00> : vector<8x2xf32>
    %315 = tpu.matmul %314, %313, %cst_265 {dimension_numbers = #tpu.dot_dimension_numbers<[1], [0], [0], [1], [0, 0, 1, 1], [], []>} : vector<8x128xf32>, vector<128x2xf32>, vector<8x2xf32> -> vector<8x2xf32>
    %cst_266 = arith.constant 1.562500e-02 : f32
    %316 = vector.broadcast %cst_266 : f32 to vector<8x2xf32>
    %317 = arith.mulf %315, %316 : vector<8x2xf32>
    %c0_267 = arith.constant 0 : index
    %c0_268 = arith.constant 0 : index
    %318 = vector.load %arg19[%c0_267, %c0_268] : memref<64x8xf32, #tpu.memory_space<vmem>>, vector<64x8xf32>
    %319 = vector.extract_strided_slice %312 {offsets = [8, 0], sizes = [8, 128], strides = [1, 1]} : vector<25x128xf32> to vector<8x128xf32>
    %cst_269 = arith.constant dense<0.000000e+00> : vector<64x128xf32>
    %320 = tpu.matmul %318, %319, %cst_269 {dimension_numbers = #tpu.dot_dimension_numbers<[1], [0], [0], [1], [0, 0, 1, 1], [], []>} : vector<64x8xf32>, vector<8x128xf32>, vector<64x128xf32> -> vector<64x128xf32>
    %c0_270 = arith.constant 0 : index
    %c0_271 = arith.constant 0 : index
    %c0_272 = arith.constant 0 : index
    %321 = vector.load %arg20[%c0_270, %c0_271, %c0_272] : memref<3x64x128xf32, #tpu.memory_space<vmem>>, vector<1x64x128xf32>
    %322 = vector.shape_cast %321 : vector<1x64x128xf32> to vector<64x128xf32>
    %323 = arith.mulf %320, %322 : vector<64x128xf32>
    %cst_273 = arith.constant dense<0.000000e+00> : vector<64x2xf32>
    %324 = tpu.matmul %323, %313, %cst_273 {dimension_numbers = #tpu.dot_dimension_numbers<[1], [0], [0], [1], [0, 0, 1, 1], [], []>} : vector<64x128xf32>, vector<128x2xf32>, vector<64x2xf32> -> vector<64x2xf32>
    %c0_274 = arith.constant 0 : index
    %c0_275 = arith.constant 0 : index
    %325 = vector.load %arg19[%c0_274, %c0_275] : memref<64x8xf32, #tpu.memory_space<vmem>>, vector<64x8xf32>
    %326 = vector.extract_strided_slice %312 {offsets = [16, 0], sizes = [8, 128], strides = [1, 1]} : vector<25x128xf32> to vector<8x128xf32>
    %cst_276 = arith.constant dense<0.000000e+00> : vector<64x128xf32>
    %327 = tpu.matmul %325, %326, %cst_276 {dimension_numbers = #tpu.dot_dimension_numbers<[1], [0], [0], [1], [0, 0, 1, 1], [], []>} : vector<64x8xf32>, vector<8x128xf32>, vector<64x128xf32> -> vector<64x128xf32>
    %c1_277 = arith.constant 1 : index
    %c0_278 = arith.constant 0 : index
    %c0_279 = arith.constant 0 : index
    %328 = vector.load %arg20[%c1_277, %c0_278, %c0_279] : memref<3x64x128xf32, #tpu.memory_space<vmem>>, vector<1x64x128xf32>
    %329 = vector.shape_cast %328 : vector<1x64x128xf32> to vector<64x128xf32>
    %330 = arith.mulf %327, %329 : vector<64x128xf32>
    %cst_280 = arith.constant dense<0.000000e+00> : vector<64x2xf32>
    %331 = tpu.matmul %330, %313, %cst_280 {dimension_numbers = #tpu.dot_dimension_numbers<[1], [0], [0], [1], [0, 0, 1, 1], [], []>} : vector<64x128xf32>, vector<128x2xf32>, vector<64x2xf32> -> vector<64x2xf32>
    %332 = vector.extract_strided_slice %312 {offsets = [24, 0], sizes = [1, 128], strides = [1, 1]} : vector<25x128xf32> to vector<1x128xf32>
    %333 = vector.shape_cast %332 : vector<1x128xf32> to vector<1x128xf32>
    %334 = vector.broadcast %333 : vector<1x128xf32> to vector<64x128xf32>
    %c2_281 = arith.constant 2 : index
    %c0_282 = arith.constant 0 : index
    %c0_283 = arith.constant 0 : index
    %335 = vector.load %arg20[%c2_281, %c0_282, %c0_283] : memref<3x64x128xf32, #tpu.memory_space<vmem>>, vector<1x64x128xf32>
    %336 = vector.shape_cast %335 : vector<1x64x128xf32> to vector<64x128xf32>
    %337 = arith.mulf %334, %336 : vector<64x128xf32>
    %cst_284 = arith.constant dense<0.000000e+00> : vector<64x2xf32>
    %338 = tpu.matmul %337, %313, %cst_284 {dimension_numbers = #tpu.dot_dimension_numbers<[1], [0], [0], [1], [0, 0, 1, 1], [], []>} : vector<64x128xf32>, vector<128x2xf32>, vector<64x2xf32> -> vector<64x2xf32>
    %339 = tpu.concatenate %317, %324, %331, %338 in 0 : vector<8x2xf32>, vector<64x2xf32>, vector<64x2xf32>, vector<64x2xf32> -> vector<200x2xf32>
    %c0_285 = arith.constant 0 : index
    %c0_286 = arith.constant 0 : index
    %340 = vector.load %arg22[%c0_285, %c0_286] : memref<32x200xf32, #tpu.memory_space<vmem>>, vector<32x200xf32>
    %cst_287 = arith.constant dense<0.000000e+00> : vector<32x2xf32>
    %341 = tpu.matmul %340, %339, %cst_287 {dimension_numbers = #tpu.dot_dimension_numbers<[1], [0], [0], [1], [0, 0, 1, 1], [], []>} : vector<32x200xf32>, vector<200x2xf32>, vector<32x2xf32> -> vector<32x2xf32>
    %c0_288 = arith.constant 0 : index
    %c0_289 = arith.constant 0 : index
    %342 = vector.load %arg23[%c0_288, %c0_289] : memref<64x200xf32, #tpu.memory_space<vmem>>, vector<64x200xf32>
    %cst_290 = arith.constant 0.000000e+00 : f32
    %343 = vector.broadcast %cst_290 : f32 to vector<200x2xf32>
    %344 = arith.cmpf ogt, %339, %343 : vector<200x2xf32>
    %cst_291 = arith.constant 2.000000e-01 : f32
    %345 = vector.broadcast %cst_291 : f32 to vector<200x2xf32>
    %346 = arith.mulf %345, %339 : vector<200x2xf32>
    %347 = arith.select %344, %339, %346 : vector<200x2xi1>, vector<200x2xf32>
    %cst_292 = arith.constant dense<0.000000e+00> : vector<64x2xf32>
    %348 = tpu.matmul %342, %347, %cst_292 {dimension_numbers = #tpu.dot_dimension_numbers<[1], [0], [0], [1], [0, 0, 1, 1], [], []>} : vector<64x200xf32>, vector<200x2xf32>, vector<64x2xf32> -> vector<64x2xf32>
    %c0_293 = arith.constant 0 : index
    %c0_294 = arith.constant 0 : index
    %349 = vector.load %arg24[%c0_293, %c0_294] : memref<64x1xf32, #tpu.memory_space<vmem>>, vector<64x1xf32>
    %350 = vector.broadcast %349 : vector<64x1xf32> to vector<64x2xf32>
    %351 = arith.addf %348, %350 : vector<64x2xf32>
    %c0_295 = arith.constant 0 : index
    %c0_296 = arith.constant 0 : index
    %352 = vector.load %arg25[%c0_295, %c0_296] : memref<32x64xf32, #tpu.memory_space<vmem>>, vector<32x64xf32>
    %cst_297 = arith.constant 0.000000e+00 : f32
    %353 = vector.broadcast %cst_297 : f32 to vector<64x2xf32>
    %354 = arith.cmpf ogt, %351, %353 : vector<64x2xf32>
    %cst_298 = arith.constant 2.000000e-01 : f32
    %355 = vector.broadcast %cst_298 : f32 to vector<64x2xf32>
    %356 = arith.mulf %355, %351 : vector<64x2xf32>
    %357 = arith.select %354, %351, %356 : vector<64x2xi1>, vector<64x2xf32>
    %cst_299 = arith.constant dense<0.000000e+00> : vector<32x2xf32>
    %358 = tpu.matmul %352, %357, %cst_299 {dimension_numbers = #tpu.dot_dimension_numbers<[1], [0], [0], [1], [0, 0, 1, 1], [], []>} : vector<32x64xf32>, vector<64x2xf32>, vector<32x2xf32> -> vector<32x2xf32>
    %cst_300 = arith.constant 1.000000e-01 : f32
    %359 = vector.broadcast %cst_300 : f32 to vector<32x2xf32>
    %360 = arith.mulf %359, %358 : vector<32x2xf32>
    %361 = arith.addf %341, %360 : vector<32x2xf32>
    %c0_301 = arith.constant 0 : index
    %c0_302 = arith.constant 0 : index
    %362 = vector.load %arg26[%c0_301, %c0_302] : memref<32x32xf32, #tpu.memory_space<vmem>>, vector<32x32xf32>
    %cst_303 = arith.constant 0.000000e+00 : f32
    %363 = vector.broadcast %cst_303 : f32 to vector<32x2xf32>
    %364 = arith.cmpf ogt, %361, %363 : vector<32x2xf32>
    %cst_304 = arith.constant 2.000000e-01 : f32
    %365 = vector.broadcast %cst_304 : f32 to vector<32x2xf32>
    %366 = arith.mulf %365, %361 : vector<32x2xf32>
    %367 = arith.select %364, %361, %366 : vector<32x2xi1>, vector<32x2xf32>
    %cst_305 = arith.constant dense<0.000000e+00> : vector<32x2xf32>
    %368 = tpu.matmul %362, %367, %cst_305 {dimension_numbers = #tpu.dot_dimension_numbers<[1], [0], [0], [1], [0, 0, 1, 1], [], []>} : vector<32x32xf32>, vector<32x2xf32>, vector<32x2xf32> -> vector<32x2xf32>
    %c0_306 = arith.constant 0 : index
    %c0_307 = arith.constant 0 : index
    %369 = vector.load %arg27[%c0_306, %c0_307] : memref<32x1xf32, #tpu.memory_space<vmem>>, vector<32x1xf32>
    %370 = vector.broadcast %369 : vector<32x1xf32> to vector<32x2xf32>
    %371 = arith.addf %368, %370 : vector<32x2xf32>
    %c0_308 = arith.constant 0 : index
    %c0_309 = arith.constant 0 : index
    %372 = vector.load %arg28[%c0_308, %c0_309] : memref<32x32xf32, #tpu.memory_space<vmem>>, vector<32x32xf32>
    %cst_310 = arith.constant 0.000000e+00 : f32
    %373 = vector.broadcast %cst_310 : f32 to vector<32x2xf32>
    %374 = arith.cmpf ogt, %371, %373 : vector<32x2xf32>
    %cst_311 = arith.constant 2.000000e-01 : f32
    %375 = vector.broadcast %cst_311 : f32 to vector<32x2xf32>
    %376 = arith.mulf %375, %371 : vector<32x2xf32>
    %377 = arith.select %374, %371, %376 : vector<32x2xi1>, vector<32x2xf32>
    %cst_312 = arith.constant dense<0.000000e+00> : vector<32x2xf32>
    %378 = tpu.matmul %372, %377, %cst_312 {dimension_numbers = #tpu.dot_dimension_numbers<[1], [0], [0], [1], [0, 0, 1, 1], [], []>} : vector<32x32xf32>, vector<32x2xf32>, vector<32x2xf32> -> vector<32x2xf32>
    %cst_313 = arith.constant 1.000000e-01 : f32
    %379 = vector.broadcast %cst_313 : f32 to vector<32x2xf32>
    %380 = arith.mulf %379, %378 : vector<32x2xf32>
    %381 = arith.addf %361, %380 : vector<32x2xf32>
    %c0_314 = arith.constant 0 : index
    %c0_315 = arith.constant 0 : index
    %382 = vector.load %arg29[%c0_314, %c0_315] : memref<32x32xf32, #tpu.memory_space<vmem>>, vector<32x32xf32>
    %cst_316 = arith.constant dense<0.000000e+00> : vector<32x2xf32>
    %383 = tpu.matmul %382, %381, %cst_316 {dimension_numbers = #tpu.dot_dimension_numbers<[1], [0], [0], [1], [0, 0, 1, 1], [], []>} : vector<32x32xf32>, vector<32x2xf32>, vector<32x2xf32> -> vector<32x2xf32>
    %c0_317 = arith.constant 0 : index
    %c0_318 = arith.constant 0 : index
    %384 = vector.load %arg30[%c0_317, %c0_318] : memref<32x1xf32, #tpu.memory_space<vmem>>, vector<32x1xf32>
    %385 = vector.broadcast %384 : vector<32x1xf32> to vector<32x2xf32>
    %386 = arith.addf %383, %385 : vector<32x2xf32>
    %c0_319 = arith.constant 0 : index
    %c0_320 = arith.constant 0 : index
    %387 = vector.load %arg32[%c0_319, %c0_320] : memref<32x2xf32, #tpu.memory_space<vmem>>, vector<32x2xf32>
    tpu.vector_store %arg32[%c0_319, %c0_320], %386 {strides = array<i32>} : memref<32x2xf32, #tpu.memory_space<vmem>>, vector<32x2xf32>,
    return
  }
}

</mosaic_0001>

<llo_original>
// kernel: squeeze.5
$region0: #{squeeze.5}
  %s0 = inlined_call_operand.vmem [shape: f32[1,8,128], index: 0, kind: input, shape index: {}]
  %s1 = inlined_call_operand.vmem [shape: f32[8,2,64], index: 1, kind: output, shape index: {}]
  $region1: #{squeeze.5} parent=0
    #allocation0 [shape = 'u8[32768]{0}', space=vmem, size = 0x8000, scoped, tag = 'scoped mem for output reshape']
    %v2 = vld [vmem:[%s0] sm:$0xff]
    %vm3 = vcmask 523264
    %4 = vst.msk [vmem:[#allocation0] ss:$8 sm:$0xf] %vm3, %v2
    %5 = vst.msk [vmem:[#allocation0] ss:$8 sm:$0xf0] %vm3, %v2
    %v6 = vld [vmem:[%s0] sm:$0xff]
    %7 = vrot.lane.b32.xlu0 %v6, 64
    %v8 = vpop.permute.xlu0 %7
    %vm9 = vcmask 523264
    %s10 = scalar_lea.vmem [#allocation0], 1
    %11 = vst.msk [vmem:[%s10] ss:$8 sm:$0xf] %vm9, %v8
    %s12 = scalar_lea.vmem [#allocation0], 1
    %13 = vst.msk [vmem:[%s12] ss:$8 sm:$0xf0] %vm9, %v8
    %s15 = ssub.s32 4, 1
    %v16 = vld [vmem:[#allocation0] sm:%s15]
    %s18 = ssub.s32 4, 1
    %19 = vst [vmem:[%s1] sm:%s18] %v16
    %s20 = scalar_lea.vmem [#allocation0], 8
    %v21 = vld [vmem:[%s20] sm:%s15]
    %s23 = ssub.s32 4, 1
    %s24 = scalar_lea.vmem %s1, 2
    %25 = vst [vmem:[%s24] sm:%s23] %v21
    %s26 = scalar_lea.vmem [#allocation0], 16
    %v27 = vld [vmem:[%s26] sm:%s15]
    %s29 = ssub.s32 4, 1
    %s30 = scalar_lea.vmem %s1, 4
    %31 = vst [vmem:[%s30] sm:%s29] %v27
    %s32 = scalar_lea.vmem [#allocation0], 24
    %v33 = vld [vmem:[%s32] sm:%s15]
    %s35 = ssub.s32 4, 1
    %s36 = scalar_lea.vmem %s1, 6
    %37 = vst [vmem:[%s36] sm:%s35] %v33
    %s38 = scalar_lea.vmem [#allocation0], 32
    %v39 = vld [vmem:[%s38] sm:%s15]
    %s41 = ssub.s32 4, 1
    %s42 = scalar_lea.vmem %s1, 8
    %43 = vst [vmem:[%s42] sm:%s41] %v39
    %s44 = scalar_lea.vmem [#allocation0], 40
    %v45 = vld [vmem:[%s44] sm:%s15]
    %s47 = ssub.s32 4, 1
    %s48 = scalar_lea.vmem %s1, 10
    %49 = vst [vmem:[%s48] sm:%s47] %v45
    %s50 = scalar_lea.vmem [#allocation0], 48
    %v51 = vld [vmem:[%s50] sm:%s15]
    %s53 = ssub.s32 4, 1
    %s54 = scalar_lea.vmem %s1, 12
    %55 = vst [vmem:[%s54] sm:%s53] %v51
    %s56 = scalar_lea.vmem [#allocation0], 56
    %v57 = vld [vmem:[%s56] sm:%s15]
    %s59 = ssub.s32 4, 1
    %s60 = scalar_lea.vmem %s1, 14
    %61 = vst [vmem:[%s60] sm:%s59] %v57

// kernel: encoder_forward.1
$region0: #{encoder_forward.1}
  #allocation0 [shape = 'u32[]', space=smem, size = 0x4, offset = 0x4, fixed_abs, tag = 'smem constant byte address 0x4 - core index']
  #allocation1 [shape = 'u32[72,128]{1,0:T(1,128)}', space=vmem, size = 0x9000, scoped, tag = 'internal scratch']
  #allocation2 [shape = 'f32[72,128]{1,0:T(8,128)}', space=vmem, size = 0x9000, scoped, tag = 'scratch operand']
  #allocation3 [shape = 'f32[1]{0:T(128)S(6)}', space=smem, size = 0x200, scoped, tag = 'scoped memory for encoder_forward.1']
  %s0 = inlined_call_operand.smem [shape: u32[33], index: -1, kind: input, shape index: {}]
  %s1 = sld [smem:[%s0]]
  %s2 = scalar_lea.smem %s0, 1
  %s3 = sld [smem:[%s2]]
  %s4 = scalar_lea.smem %s0, 2
  %s5 = sld [smem:[%s4]]
  %s6 = scalar_lea.smem %s0, 3
  %s7 = sld [smem:[%s6]]
  %s8 = scalar_lea.smem %s0, 4
  %s9 = sld [smem:[%s8]]
  %s10 = scalar_lea.smem %s0, 5
  %s11 = sld [smem:[%s10]]
  %s12 = scalar_lea.smem %s0, 6
  %s13 = sld [smem:[%s12]]
  %s14 = scalar_lea.smem %s0, 7
  %s15 = sld [smem:[%s14]]
  %s16 = scalar_lea.smem %s0, 8
  %s17 = sld [smem:[%s16]]
  %s18 = scalar_lea.smem %s0, 9
  %s19 = sld [smem:[%s18]]
  %s20 = scalar_lea.smem %s0, 10
  %s21 = sld [smem:[%s20]]
  %s22 = scalar_lea.smem %s0, 11
  %s23 = sld [smem:[%s22]]
  %s24 = scalar_lea.smem %s0, 12
  %s25 = sld [smem:[%s24]]
  %s26 = scalar_lea.smem %s0, 13
  %s27 = sld [smem:[%s26]]
  %s28 = scalar_lea.smem %s0, 14
  %s29 = sld [smem:[%s28]]
  %s30 = scalar_lea.smem %s0, 15
  %s31 = sld [smem:[%s30]]
  %s32 = scalar_lea.smem %s0, 16
  %s33 = sld [smem:[%s32]]
  %s34 = scalar_lea.smem %s0, 17
  %s35 = sld [smem:[%s34]]
  %s36 = scalar_lea.smem %s0, 18
  %s37 = sld [smem:[%s36]]
  %s38 = scalar_lea.smem %s0, 19
  %s39 = sld [smem:[%s38]]
  %s40 = scalar_lea.smem %s0, 20
  %s41 = sld [smem:[%s40]]
  %s42 = scalar_lea.smem %s0, 21
  %s43 = sld [smem:[%s42]]
  %s44 = scalar_lea.smem %s0, 22
  %s45 = sld [smem:[%s44]]
  %s46 = scalar_lea.smem %s0, 23
  %s47 = sld [smem:[%s46]]
  %s48 = scalar_lea.smem %s0, 24
  %s49 = sld [smem:[%s48]]
  %s50 = scalar_lea.smem %s0, 25
  %s51 = sld [smem:[%s50]]
  %s52 = scalar_lea.smem %s0, 26
  %s53 = sld [smem:[%s52]]
  %s54 = scalar_lea.smem %s0, 27
  %s55 = sld [smem:[%s54]]
  %s56 = scalar_lea.smem %s0, 28
  %s57 = sld [smem:[%s56]]
  %s58 = scalar_lea.smem %s0, 29
  %s59 = sld [smem:[%s58]]
  %s60 = scalar_lea.smem %s0, 30
  %s61 = sld [smem:[%s60]]
  %s62 = scalar_lea.smem %s0, 31
  %s63 = sld [smem:[%s62]]
  %s64 = scalar_lea.smem %s0, 32
  %s65 = sld [smem:[%s64]]
  %66 = xla_tuple %s63, %s65
  %s67 = sld [smem:[#allocation0]]
  $region150: #{encoder_forward.1} parent=0
    _
  %s69 = ssub.s32 1, %s67
  %s70 = scalar_select 0, %s69, %s67
  %71 = sst [smem:[#allocation3]] %s1
  $region1: #{encoder_forward.1} parent=0
    #allocation4 [shape = 'u8[589824]{0}', space=vmem, size = 0x90000, scoped, tag = 'input window, operand 2, single buffered']
    #allocation5 [shape = 's32[1]{0}', space=sflag, size = 0x4, scoped, tag = 'scoped memory for encoder_forward.1']
    #allocation6 [shape = 'u8[65536]{0}', space=vmem, size = 0x10000, scoped, tag = 'input window, operand 23, single buffered']
    #allocation7 [shape = 's32[1]{0}', space=sflag, size = 0x4, scoped, tag = 'scoped memory for encoder_forward.1']
    %72 = vsyncpa [#allocation5], 0
    %73 = vsyncpa [#allocation7], 0
    // Predicated region
    $region2: #{encoder_forward.1} parent=1 // pred_check
      _
    $region3: #{encoder_forward.1} parent=1 // pred_check_branch
      %75 = sbr.rel (0) target = $region5
    $region4: #{encoder_forward.1} parent=1 // pred_region
      _
    $region5: #{encoder_forward.1} parent=1 // pred_fallthru
      _
    // Predicated region
    $region6: #{encoder_forward.1} parent=1 // pred_check
      _
    $region7: #{encoder_forward.1} parent=1 // pred_check_branch
      %77 = sbr.rel (0) target = $region9
    $region8: #{encoder_forward.1} parent=1 // pred_region
      _
    $region9: #{encoder_forward.1} parent=1 // pred_fallthru
      _
    // Predicated region
    $region10: #{encoder_forward.1} parent=1 // pred_check
      _
    $region11: #{encoder_forward.1} parent=1 // pred_check_branch
      %79 = sbr.rel (0) target = $region13
    $region12: #{encoder_forward.1} parent=1 // pred_region
      %81 = vsyncadd [#allocation5], 0
      %s82 = sshll.u32 %s5, 4
      %s83 = int_to_ptr.hbm [resolvable:$true] %s82
      %s84 = sshll.u32 [#allocation4], 4
      %s85 = int_to_ptr.vmem [resolvable:$true] %s84
      %90 = dma.hbm_to_vmem [thread:$0]  %s83, 18432, %s85, [#allocation5], 1152, 1152, 72
    $region13: #{encoder_forward.1} parent=1 // pred_fallthru
      _
    // Predicated region
    $region14: #{encoder_forward.1} parent=1 // pred_check
      _
    $region15: #{encoder_forward.1} parent=1 // pred_check_branch
      %92 = sbr.rel (0) target = $region17
    $region16: #{encoder_forward.1} parent=1 // pred_region
      _
    $region17: #{encoder_forward.1} parent=1 // pred_fallthru
      _
    // Predicated region
    $region18: #{encoder_forward.1} parent=1 // pred_check
      _
    $region19: #{encoder_forward.1} parent=1 // pred_check_branch
      %94 = sbr.rel (0) target = $region21
    $region20: #{encoder_forward.1} parent=1 // pred_region
      _
    $region21: #{encoder_forward.1} parent=1 // pred_fallthru
      _
    // Predicated region
    $region22: #{encoder_forward.1} parent=1 // pred_check
      _
    $region23: #{encoder_forward.1} parent=1 // pred_check_branch
      %96 = sbr.rel (0) target = $region25
    $region24: #{encoder_forward.1} parent=1 // pred_region
      _
    $region25: #{encoder_forward.1} parent=1 // pred_fallthru
      _
    // Predicated region
    $region26: #{encoder_forward.1} parent=1 // pred_check
      _
    $region27: #{encoder_forward.1} parent=1 // pred_check_branch
      %98 = sbr.rel (0) target = $region29
    $region28: #{encoder_forward.1} parent=1 // pred_region
      _
    $region29: #{encoder_forward.1} parent=1 // pred_fallthru
      _
    // Predicated region
    $region30: #{encoder_forward.1} parent=1 // pred_check
      _
    $region31: #{encoder_forward.1} parent=1 // pred_check_branch
      %100 = sbr.rel (0) target = $region33
    $region32: #{encoder_forward.1} parent=1 // pred_region
      _
    $region33: #{encoder_forward.1} parent=1 // pred_fallthru
      _
    // Predicated region
    $region34: #{encoder_forward.1} parent=1 // pred_check
      _
    $region35: #{encoder_forward.1} parent=1 // pred_check_branch
      %102 = sbr.rel (0) target = $region37
    $region36: #{encoder_forward.1} parent=1 // pred_region
      _
    $region37: #{encoder_forward.1} parent=1 // pred_fallthru
      _
    // Predicated region
    $region38: #{encoder_forward.1} parent=1 // pred_check
      _
    $region39: #{encoder_forward.1} parent=1 // pred_check_branch
      %104 = sbr.rel (0) target = $region41
    $region40: #{encoder_forward.1} parent=1 // pred_region
      _
    $region41: #{encoder_forward.1} parent=1 // pred_fallthru
      _
    // Predicated region
    $region42: #{encoder_forward.1} parent=1 // pred_check
      _
    $region43: #{encoder_forward.1} parent=1 // pred_check_branch
      %106 = sbr.rel (0) target = $region45
    $region44: #{encoder_forward.1} parent=1 // pred_region
      _
    $region45: #{encoder_forward.1} parent=1 // pred_fallthru
      _
    // Predicated region
    $region46: #{encoder_forward.1} parent=1 // pred_check
      _
    $region47: #{encoder_forward.1} parent=1 // pred_check_branch
      %108 = sbr.rel (0) target = $region49
    $region48: #{encoder_forward.1} parent=1 // pred_region
      _
    $region49: #{encoder_forward.1} parent=1 // pred_fallthru
      _
    // Predicated region
    $region50: #{encoder_forward.1} parent=1 // pred_check
      _
    $region51: #{encoder_forward.1} parent=1 // pred_check_branch
      %110 = sbr.rel (0) target = $region53
    $region52: #{encoder_forward.1} parent=1 // pred_region
      _
    $region53: #{encoder_forward.1} parent=1 // pred_fallthru
      _
    // Predicated region
    $region54: #{encoder_forward.1} parent=1 // pred_check
      _
    $region55: #{encoder_forward.1} parent=1 // pred_check_branch
      %112 = sbr.rel (0) target = $region57
    $region56: #{encoder_forward.1} parent=1 // pred_region
      _
    $region57: #{encoder_forward.1} parent=1 // pred_fallthru
      _
    // Predicated region
    $region58: #{encoder_forward.1} parent=1 // pred_check
      _
    $region59: #{encoder_forward.1} parent=1 // pred_check_branch
      %114 = sbr.rel (0) target = $region61
    $region60: #{encoder_forward.1} parent=1 // pred_region
      _
    $region61: #{encoder_forward.1} parent=1 // pred_fallthru
      _
    // Predicated region
    $region62: #{encoder_forward.1} parent=1 // pred_check
      _
    $region63: #{encoder_forward.1} parent=1 // pred_check_branch
      %116 = sbr.rel (0) target = $region65
    $region64: #{encoder_forward.1} parent=1 // pred_region
      _
    $region65: #{encoder_forward.1} parent=1 // pred_fallthru
      _
    // Predicated region
    $region66: #{encoder_forward.1} parent=1 // pred_check
      _
    $region67: #{encoder_forward.1} parent=1 // pred_check_branch
      %118 = sbr.rel (0) target = $region69
    $region68: #{encoder_forward.1} parent=1 // pred_region
      _
    $region69: #{encoder_forward.1} parent=1 // pred_fallthru
      _
    // Predicated region
    $region70: #{encoder_forward.1} parent=1 // pred_check
      _
    $region71: #{encoder_forward.1} parent=1 // pred_check_branch
      %120 = sbr.rel (0) target = $region73
    $region72: #{encoder_forward.1} parent=1 // pred_region
      _
    $region73: #{encoder_forward.1} parent=1 // pred_fallthru
      _
    // Predicated region
    $region74: #{encoder_forward.1} parent=1 // pred_check
      _
    $region75: #{encoder_forward.1} parent=1 // pred_check_branch
      %122 = sbr.rel (0) target = $region77
    $region76: #{encoder_forward.1} parent=1 // pred_region
      _
    $region77: #{encoder_forward.1} parent=1 // pred_fallthru
      _
    // Predicated region
    $region78: #{encoder_forward.1} parent=1 // pred_check
      _
    $region79: #{encoder_forward.1} parent=1 // pred_check_branch
      %124 = sbr.rel (0) target = $region81
    $region80: #{encoder_forward.1} parent=1 // pred_region
      _
    $region81: #{encoder_forward.1} parent=1 // pred_fallthru
      _
    // Predicated region
    $region82: #{encoder_forward.1} parent=1 // pred_check
      _
    $region83: #{encoder_forward.1} parent=1 // pred_check_branch
      %126 = sbr.rel (0) target = $region85
    $region84: #{encoder_forward.1} parent=1 // pred_region
      _
    $region85: #{encoder_forward.1} parent=1 // pred_fallthru
      _
    // Predicated region
    $region86: #{encoder_forward.1} parent=1 // pred_check
      _
    $region87: #{encoder_forward.1} parent=1 // pred_check_branch
      %128 = sbr.rel (0) target = $region89
    $region88: #{encoder_forward.1} parent=1 // pred_region
      _
    $region89: #{encoder_forward.1} parent=1 // pred_fallthru
      _
    // Predicated region
    $region90: #{encoder_forward.1} parent=1 // pred_check
      _
    $region91: #{encoder_forward.1} parent=1 // pred_check_branch
      %130 = sbr.rel (0) target = $region93
    $region92: #{encoder_forward.1} parent=1 // pred_region
      _
    $region93: #{encoder_forward.1} parent=1 // pred_fallthru
      _
    // Predicated region
    $region94: #{encoder_forward.1} parent=1 // pred_check
      _
    $region95: #{encoder_forward.1} parent=1 // pred_check_branch
      %132 = sbr.rel (0) target = $region97
    $region96: #{encoder_forward.1} parent=1 // pred_region
      %134 = vsyncadd [#allocation7], 0
      %s135 = sshll.u32 %s47, 4
      %s136 = int_to_ptr.hbm [resolvable:$true] %s135
      %s137 = sshll.u32 [#allocation6], 4
      %s138 = int_to_ptr.vmem [resolvable:$true] %s137
      %143 = dma.hbm_to_vmem [thread:$0]  %s136, 2048, %s138, [#allocation7], 256, 256, 16
    $region97: #{encoder_forward.1} parent=1 // pred_fallthru
      _
    // Predicated region
    $region98: #{encoder_forward.1} parent=1 // pred_check
      _
    $region99: #{encoder_forward.1} parent=1 // pred_check_branch
      %145 = sbr.rel (0) target = $region101
    $region100: #{encoder_forward.1} parent=1 // pred_region
      _
    $region101: #{encoder_forward.1} parent=1 // pred_fallthru
      _
    // Predicated region
    $region102: #{encoder_forward.1} parent=1 // pred_check
      _
    $region103: #{encoder_forward.1} parent=1 // pred_check_branch
      %147 = sbr.rel (0) target = $region105
    $region104: #{encoder_forward.1} parent=1 // pred_region
      _
    $region105: #{encoder_forward.1} parent=1 // pred_fallthru
      _
    // Predicated region
    $region106: #{encoder_forward.1} parent=1 // pred_check
      _
    $region107: #{encoder_forward.1} parent=1 // pred_check_branch
      %149 = sbr.rel (0) target = $region109
    $region108: #{encoder_forward.1} parent=1 // pred_region
      _
    $region109: #{encoder_forward.1} parent=1 // pred_fallthru
      _
    // Predicated region
    $region110: #{encoder_forward.1} parent=1 // pred_check
      _
    $region111: #{encoder_forward.1} parent=1 // pred_check_branch
      %151 = sbr.rel (0) target = $region113
    $region112: #{encoder_forward.1} parent=1 // pred_region
      _
    $region113: #{encoder_forward.1} parent=1 // pred_fallthru
      _
    // Predicated region
    $region114: #{encoder_forward.1} parent=1 // pred_check
      _
    $region115: #{encoder_forward.1} parent=1 // pred_check_branch
      %153 = sbr.rel (0) target = $region117
    $region116: #{encoder_forward.1} parent=1 // pred_region
      _
    $region117: #{encoder_forward.1} parent=1 // pred_fallthru
      _
    // Predicated region
    $region118: #{encoder_forward.1} parent=1 // pred_check
      _
    $region119: #{encoder_forward.1} parent=1 // pred_check_branch
      %155 = sbr.rel (0) target = $region121
    $region120: #{encoder_forward.1} parent=1 // pred_region
      _
    $region121: #{encoder_forward.1} parent=1 // pred_fallthru
      _
    // Predicated region
    $region122: #{encoder_forward.1} parent=1 // pred_check
      _
    $region123: #{encoder_forward.1} parent=1 // pred_check_branch
      %157 = sbr.rel (0) target = $region125
    $region124: #{encoder_forward.1} parent=1 // pred_region
      _
    $region125: #{encoder_forward.1} parent=1 // pred_fallthru
      _
    // Predicated region
    $region126: #{encoder_forward.1} parent=1 // pred_check
      _
    $region127: #{encoder_forward.1} parent=1 // pred_check_branch
      %159 = sbr.rel (0) target = $region129
    $region128: #{encoder_forward.1} parent=1 // pred_region
      %161 = dma.done [#allocation5], 18432
    $region129: #{encoder_forward.1} parent=1 // pred_fallthru
      _
    // Predicated region
    $region130: #{encoder_forward.1} parent=1 // pred_check
      _
    $region131: #{encoder_forward.1} parent=1 // pred_check_branch
      %163 = sbr.rel (0) target = $region133
    $region132: #{encoder_forward.1} parent=1 // pred_region
      %165 = dma.done [#allocation7], 2048
    $region133: #{encoder_forward.1} parent=1 // pred_fallthru
      _
    %s166 = sld [smem:[#allocation3]]
    %s167 = smax.f32 %s166, 0.001
    %s168 = smin.f32 %s167, 1000.0
    %v169 = vld [vmem:[%s3] sm:$0xff]
    %v170 = vld [vmem:[%s9] sm:$0xff]
    %v171 = vld [vmem:[%s11] sm:$0xff]
    %v172 = vld [vmem:[#allocation4] sm:$0xff]
    %v173 = vld [vmem:[#allocation4 + $0x8] sm:$0xff]
    %v174 = vld [vmem:[#allocation4 + $0x10] sm:$0xff]
    %v175 = vld [vmem:[#allocation4 + $0x18] sm:$0xff]
    %v176 = vld [vmem:[#allocation4 + $0x20] sm:$0xff]
    %v177 = vld [vmem:[#allocation4 + $0x28] sm:$0xff]
    %v178 = vld [vmem:[#allocation4 + $0x30] sm:$0xff]
    %v179 = vld [vmem:[#allocation4 + $0x38] sm:$0xff]
    %v180 = vld [vmem:[#allocation4 + $0x40] sm:$0xff]
    %v181 = vld [vmem:[#allocation4 + $0x48] sm:$0xff]
    %v182 = vld [vmem:[#allocation4 + $0x50] sm:$0xff]
    %v183 = vld [vmem:[#allocation4 + $0x58] sm:$0xff]
    %v184 = vld [vmem:[#allocation4 + $0x60] sm:$0xff]
    %v185 = vld [vmem:[#allocation4 + $0x68] sm:$0xff]
    %v186 = vld [vmem:[#allocation4 + $0x70] sm:$0xff]
    %v187 = vld [vmem:[#allocation4 + $0x78] sm:$0xff]
    %v188 = vld [vmem:[#allocation4 + $0x80] sm:$0xff]
    %v189 = vld [vmem:[#allocation4 + $0x88] sm:$0xff]
    %v190 = vld [vmem:[#allocation4 + $0x90] sm:$0xff]
    %v191 = vld [vmem:[#allocation4 + $0x98] sm:$0xff]
    %v192 = vld [vmem:[#allocation4 + $0xa0] sm:$0xff]
    %v193 = vld [vmem:[#allocation4 + $0xa8] sm:$0xff]
    %v194 = vld [vmem:[#allocation4 + $0xb0] sm:$0xff]
    %v195 = vld [vmem:[#allocation4 + $0xb8] sm:$0xff]
    %v196 = vld [vmem:[#allocation4 + $0xc0] sm:$0xff]
    %v197 = vld [vmem:[#allocation4 + $0xc8] sm:$0xff]
    %v198 = vld [vmem:[#allocation4 + $0xd0] sm:$0xff]
    %v199 = vld [vmem:[#allocation4 + $0xd8] sm:$0xff]
    %v200 = vld [vmem:[#allocation4 + $0xe0] sm:$0xff]
    %v201 = vld [vmem:[#allocation4 + $0xe8] sm:$0xff]
    %v202 = vld [vmem:[#allocation4 + $0xf0] sm:$0xff]
    %v203 = vld [vmem:[#allocation4 + $0xf8] sm:$0xff]
    %v204 = vld [vmem:[#allocation4 + $0x100] sm:$0xff]
    %v205 = vld [vmem:[#allocation4 + $0x108] sm:$0xff]
    %v206 = vld [vmem:[#allocation4 + $0x110] sm:$0xff]
    %v207 = vld [vmem:[#allocation4 + $0x118] sm:$0xff]
    %v208 = vld [vmem:[#allocation4 + $0x120] sm:$0xff]
    %v209 = vld [vmem:[#allocation4 + $0x128] sm:$0xff]
    %v210 = vld [vmem:[#allocation4 + $0x130] sm:$0xff]
    %v211 = vld [vmem:[#allocation4 + $0x138] sm:$0xff]
    %v212 = vld [vmem:[#allocation4 + $0x140] sm:$0xff]
    %v213 = vld [vmem:[#allocation4 + $0x148] sm:$0xff]
    %v214 = vld [vmem:[#allocation4 + $0x150] sm:$0xff]
    %v215 = vld [vmem:[#allocation4 + $0x158] sm:$0xff]
    %v216 = vld [vmem:[#allocation4 + $0x160] sm:$0xff]
    %v217 = vld [vmem:[#allocation4 + $0x168] sm:$0xff]
    %v218 = vld [vmem:[#allocation4 + $0x170] sm:$0xff]
    %v219 = vld [vmem:[#allocation4 + $0x178] sm:$0xff]
    %v220 = vld [vmem:[#allocation4 + $0x180] sm:$0xff]
    %v221 = vld [vmem:[#allocation4 + $0x188] sm:$0xff]
    %v222 = vld [vmem:[#allocation4 + $0x190] sm:$0xff]
    %v223 = vld [vmem:[#allocation4 + $0x198] sm:$0xff]
    %v224 = vld [vmem:[#allocation4 + $0x1a0] sm:$0xff]
    %v225 = vld [vmem:[#allocation4 + $0x1a8] sm:$0xff]
    %v226 = vld [vmem:[#allocation4 + $0x1b0] sm:$0xff]
    %v227 = vld [vmem:[#allocation4 + $0x1b8] sm:$0xff]
    %v228 = vld [vmem:[#allocation4 + $0x1c0] sm:$0xff]
    %v229 = vld [vmem:[#allocation4 + $0x1c8] sm:$0xff]
    %v230 = vld [vmem:[#allocation4 + $0x1d0] sm:$0xff]
    %v231 = vld [vmem:[#allocation4 + $0x1d8] sm:$0xff]
    %v232 = vld [vmem:[#allocation4 + $0x1e0] sm:$0xff]
    %v233 = vld [vmem:[#allocation4 + $0x1e8] sm:$0xff]
    %v234 = vld [vmem:[#allocation4 + $0x1f0] sm:$0xff]
    %v235 = vld [vmem:[#allocation4 + $0x1f8] sm:$0xff]
    %v236 = vld [vmem:[#allocation4 + $0x200] sm:$0xff]
    %v237 = vld [vmem:[#allocation4 + $0x208] sm:$0xff]
    %v238 = vld [vmem:[#allocation4 + $0x210] sm:$0xff]
    %v239 = vld [vmem:[#allocation4 + $0x218] sm:$0xff]
    %v240 = vld [vmem:[#allocation4 + $0x220] sm:$0xff]
    %v241 = vld [vmem:[#allocation4 + $0x228] sm:$0xff]
    %v242 = vld [vmem:[#allocation4 + $0x230] sm:$0xff]
    %v243 = vld [vmem:[#allocation4 + $0x238] sm:$0xff]
    %v244 = vld [vmem:[#allocation4 + $0x240] sm:$0xff]
    %v245 = vld [vmem:[#allocation4 + $0x248] sm:$0xff]
    %v246 = vld [vmem:[#allocation4 + $0x250] sm:$0xff]
    %v247 = vld [vmem:[#allocation4 + $0x258] sm:$0xff]
    %v248 = vld [vmem:[#allocation4 + $0x260] sm:$0xff]
    %v249 = vld [vmem:[#allocation4 + $0x268] sm:$0xff]
    %v250 = vld [vmem:[#allocation4 + $0x270] sm:$0xff]
    %v251 = vld [vmem:[#allocation4 + $0x278] sm:$0xff]
    %v252 = vld [vmem:[#allocation4 + $0x280] sm:$0xff]
    %v253 = vld [vmem:[#allocation4 + $0x288] sm:$0xff]
    %v254 = vld [vmem:[#allocation4 + $0x290] sm:$0xff]
    %v255 = vld [vmem:[#allocation4 + $0x298] sm:$0xff]
    %v256 = vld [vmem:[#allocation4 + $0x2a0] sm:$0xff]
    %v257 = vld [vmem:[#allocation4 + $0x2a8] sm:$0xff]
    %v258 = vld [vmem:[#allocation4 + $0x2b0] sm:$0xff]
    %v259 = vld [vmem:[#allocation4 + $0x2b8] sm:$0xff]
    %v260 = vld [vmem:[#allocation4 + $0x2c0] sm:$0xff]
    %v261 = vld [vmem:[#allocation4 + $0x2c8] sm:$0xff]
    %v262 = vld [vmem:[#allocation4 + $0x2d0] sm:$0xff]
    %v263 = vld [vmem:[#allocation4 + $0x2d8] sm:$0xff]
    %v264 = vld [vmem:[#allocation4 + $0x2e0] sm:$0xff]
    %v265 = vld [vmem:[#allocation4 + $0x2e8] sm:$0xff]
    %v266 = vld [vmem:[#allocation4 + $0x2f0] sm:$0xff]
    %v267 = vld [vmem:[#allocation4 + $0x2f8] sm:$0xff]
    %v268 = vld [vmem:[#allocation4 + $0x300] sm:$0xff]
    %v269 = vld [vmem:[#allocation4 + $0x308] sm:$0xff]
    %v270 = vld [vmem:[#allocation4 + $0x310] sm:$0xff]
    %v271 = vld [vmem:[#allocation4 + $0x318] sm:$0xff]
    %v272 = vld [vmem:[#allocation4 + $0x320] sm:$0xff]
    %v273 = vld [vmem:[#allocation4 + $0x328] sm:$0xff]
    %v274 = vld [vmem:[#allocation4 + $0x330] sm:$0xff]
    %v275 = vld [vmem:[#allocation4 + $0x338] sm:$0xff]
    %v276 = vld [vmem:[#allocation4 + $0x340] sm:$0xff]
    %v277 = vld [vmem:[#allocation4 + $0x348] sm:$0xff]
    %v278 = vld [vmem:[#allocation4 + $0x350] sm:$0xff]
    %v279 = vld [vmem:[#allocation4 + $0x358] sm:$0xff]
    %v280 = vld [vmem:[#allocation4 + $0x360] sm:$0xff]
    %v281 = vld [vmem:[#allocation4 + $0x368] sm:$0xff]
    %v282 = vld [vmem:[#allocation4 + $0x370] sm:$0xff]
    %v283 = vld [vmem:[#allocation4 + $0x378] sm:$0xff]
    %v284 = vld [vmem:[#allocation4 + $0x380] sm:$0xff]
    %v285 = vld [vmem:[#allocation4 + $0x388] sm:$0xff]
    %v286 = vld [vmem:[#allocation4 + $0x390] sm:$0xff]
    %v287 = vld [vmem:[#allocation4 + $0x398] sm:$0xff]
    %v288 = vld [vmem:[#allocation4 + $0x3a0] sm:$0xff]
    %v289 = vld [vmem:[#allocation4 + $0x3a8] sm:$0xff]
    %v290 = vld [vmem:[#allocation4 + $0x3b0] sm:$0xff]
    %v291 = vld [vmem:[#allocation4 + $0x3b8] sm:$0xff]
    %v292 = vld [vmem:[#allocation4 + $0x3c0] sm:$0xff]
    %v293 = vld [vmem:[#allocation4 + $0x3c8] sm:$0xff]
    %v294 = vld [vmem:[#allocation4 + $0x3d0] sm:$0xff]
    %v295 = vld [vmem:[#allocation4 + $0x3d8] sm:$0xff]
    %v296 = vld [vmem:[#allocation4 + $0x3e0] sm:$0xff]
    %v297 = vld [vmem:[#allocation4 + $0x3e8] sm:$0xff]
    %v298 = vld [vmem:[#allocation4 + $0x3f0] sm:$0xff]
    %v299 = vld [vmem:[#allocation4 + $0x3f8] sm:$0xff]
    %v300 = vld [vmem:[#allocation4 + $0x400] sm:$0xff]
    %v301 = vld [vmem:[#allocation4 + $0x408] sm:$0xff]
    %v302 = vld [vmem:[#allocation4 + $0x410] sm:$0xff]
    %v303 = vld [vmem:[#allocation4 + $0x418] sm:$0xff]
    %v304 = vld [vmem:[#allocation4 + $0x420] sm:$0xff]
    %v305 = vld [vmem:[#allocation4 + $0x428] sm:$0xff]
    %v306 = vld [vmem:[#allocation4 + $0x430] sm:$0xff]
    %v307 = vld [vmem:[#allocation4 + $0x438] sm:$0xff]
    %v308 = vld [vmem:[#allocation4 + $0x440] sm:$0xff]
    %v309 = vld [vmem:[#allocation4 + $0x448] sm:$0xff]
    %v310 = vld [vmem:[#allocation4 + $0x450] sm:$0xff]
    %v311 = vld [vmem:[#allocation4 + $0x458] sm:$0xff]
    %v312 = vld [vmem:[#allocation4 + $0x460] sm:$0xff]
    %v313 = vld [vmem:[#allocation4 + $0x468] sm:$0xff]
    %v314 = vld [vmem:[#allocation4 + $0x470] sm:$0xff]
    %v315 = vld [vmem:[#allocation4 + $0x478] sm:$0xff]
    %316 = vmatpush.msra.mxu0 %v307
    %317 = vmatpush.msra.mxu0 %v298
    %318 = vmatpush.msra.mxu0 %v289
    %319 = vmatpush.msra.mxu0 %v280
    %320 = vmatpush.msra.mxu0 %v271
    %321 = vmatpush.msra.mxu0 %v262
    %322 = vmatpush.msra.mxu0 %v253
    %323 = vmatpush.msra.mxu0 %v244
    %324 = vmatpush.msra.mxu0 %v235
    %325 = vmatpush.msra.mxu0 %v226
    %326 = vmatpush.msra.mxu0 %v217
    %327 = vmatpush.msra.mxu0 %v208
    %328 = vmatpush.msra.mxu0 %v199
    %329 = vmatpush.msra.mxu0 %v190
    %330 = vmatpush.msra.mxu0 %v181
    %331 = vmatpush.msra.mxu0 %v172
    %332 = vmatmul.f32.gmra.mxu0 %v169
    %v333 = vpop.f32.mrf.mxu0
    %v334 = vadd.f32 0.0, %v333
    %335 = vdwg.mxu0
    %336 = vmatpush.msra.mxu0 %v308
    %337 = vmatpush.msra.mxu0 %v299
    %338 = vmatpush.msra.mxu0 %v290
    %339 = vmatpush.msra.mxu0 %v281
    %340 = vmatpush.msra.mxu0 %v272
    %341 = vmatpush.msra.mxu0 %v263
    %342 = vmatpush.msra.mxu0 %v254
    %343 = vmatpush.msra.mxu0 %v245
    %344 = vmatpush.msra.mxu0 %v236
    %345 = vmatpush.msra.mxu0 %v227
    %346 = vmatpush.msra.mxu0 %v218
    %347 = vmatpush.msra.mxu0 %v209
    %348 = vmatpush.msra.mxu0 %v200
    %349 = vmatpush.msra.mxu0 %v191
    %350 = vmatpush.msra.mxu0 %v182
    %351 = vmatpush.msra.mxu0 %v173
    %352 = vmatmul.f32.gmra.mxu0 %v169
    %v353 = vpop.f32.mrf.mxu0
    %v354 = vadd.f32 0.0, %v353
    %355 = vdwg.mxu0
    %356 = vmatpush.msra.mxu0 %v309
    %357 = vmatpush.msra.mxu0 %v300
    %358 = vmatpush.msra.mxu0 %v291
    %359 = vmatpush.msra.mxu0 %v282
    %360 = vmatpush.msra.mxu0 %v273
    %361 = vmatpush.msra.mxu0 %v264
    %362 = vmatpush.msra.mxu0 %v255
    %363 = vmatpush.msra.mxu0 %v246
    %364 = vmatpush.msra.mxu0 %v237
    %365 = vmatpush.msra.mxu0 %v228
    %366 = vmatpush.msra.mxu0 %v219
    %367 = vmatpush.msra.mxu0 %v210
    %368 = vmatpush.msra.mxu0 %v201
    %369 = vmatpush.msra.mxu0 %v192
    %370 = vmatpush.msra.mxu0 %v183
    %371 = vmatpush.msra.mxu0 %v174
    %372 = vmatmul.f32.gmra.mxu0 %v169
    %v373 = vpop.f32.mrf.mxu0
    %v374 = vadd.f32 0.0, %v373
    %375 = vdwg.mxu0
    %376 = vmatpush.msra.mxu0 %v310
    %377 = vmatpush.msra.mxu0 %v301
    %378 = vmatpush.msra.mxu0 %v292
    %379 = vmatpush.msra.mxu0 %v283
    %380 = vmatpush.msra.mxu0 %v274
    %381 = vmatpush.msra.mxu0 %v265
    %382 = vmatpush.msra.mxu0 %v256
    %383 = vmatpush.msra.mxu0 %v247
    %384 = vmatpush.msra.mxu0 %v238
    %385 = vmatpush.msra.mxu0 %v229
    %386 = vmatpush.msra.mxu0 %v220
    %387 = vmatpush.msra.mxu0 %v211
    %388 = vmatpush.msra.mxu0 %v202
    %389 = vmatpush.msra.mxu0 %v193
    %390 = vmatpush.msra.mxu0 %v184
    %391 = vmatpush.msra.mxu0 %v175
    %392 = vmatmul.f32.gmra.mxu0 %v169
    %v393 = vpop.f32.mrf.mxu0
    %v394 = vadd.f32 0.0, %v393
    %395 = vdwg.mxu0
    %396 = vmatpush.msra.mxu0 %v311
    %397 = vmatpush.msra.mxu0 %v302
    %398 = vmatpush.msra.mxu0 %v293
    %399 = vmatpush.msra.mxu0 %v284
    %400 = vmatpush.msra.mxu0 %v275
    %401 = vmatpush.msra.mxu0 %v266
    %402 = vmatpush.msra.mxu0 %v257
    %403 = vmatpush.msra.mxu0 %v248
    %404 = vmatpush.msra.mxu0 %v239
    %405 = vmatpush.msra.mxu0 %v230
    %406 = vmatpush.msra.mxu0 %v221
    %407 = vmatpush.msra.mxu0 %v212
    %408 = vmatpush.msra.mxu0 %v203
    %409 = vmatpush.msra.mxu0 %v194
    %410 = vmatpush.msra.mxu0 %v185
    %411 = vmatpush.msra.mxu0 %v176
    %412 = vmatmul.f32.gmra.mxu0 %v169
    %v413 = vpop.f32.mrf.mxu0
    %v414 = vadd.f32 0.0, %v413
    %415 = vdwg.mxu0
    %416 = vmatpush.msra.mxu0 %v312
    %417 = vmatpush.msra.mxu0 %v303
    %418 = vmatpush.msra.mxu0 %v294
    %419 = vmatpush.msra.mxu0 %v285
    %420 = vmatpush.msra.mxu0 %v276
    %421 = vmatpush.msra.mxu0 %v267
    %422 = vmatpush.msra.mxu0 %v258
    %423 = vmatpush.msra.mxu0 %v249
    %424 = vmatpush.msra.mxu0 %v240
    %425 = vmatpush.msra.mxu0 %v231
    %426 = vmatpush.msra.mxu0 %v222
    %427 = vmatpush.msra.mxu0 %v213
    %428 = vmatpush.msra.mxu0 %v204
    %429 = vmatpush.msra.mxu0 %v195
    %430 = vmatpush.msra.mxu0 %v186
    %431 = vmatpush.msra.mxu0 %v177
    %432 = vmatmul.f32.gmra.mxu0 %v169
    %v433 = vpop.f32.mrf.mxu0
    %v434 = vadd.f32 0.0, %v433
    %435 = vdwg.mxu0
    %436 = vmatpush.msra.mxu0 %v313
    %437 = vmatpush.msra.mxu0 %v304
    %438 = vmatpush.msra.mxu0 %v295
    %439 = vmatpush.msra.mxu0 %v286
    %440 = vmatpush.msra.mxu0 %v277
    %441 = vmatpush.msra.mxu0 %v268
    %442 = vmatpush.msra.mxu0 %v259
    %443 = vmatpush.msra.mxu0 %v250
    %444 = vmatpush.msra.mxu0 %v241
    %445 = vmatpush.msra.mxu0 %v232
    %446 = vmatpush.msra.mxu0 %v223
    %447 = vmatpush.msra.mxu0 %v214
    %448 = vmatpush.msra.mxu0 %v205
    %449 = vmatpush.msra.mxu0 %v196
    %450 = vmatpush.msra.mxu0 %v187
    %451 = vmatpush.msra.mxu0 %v178
    %452 = vmatmul.f32.gmra.mxu0 %v169
    %v453 = vpop.f32.mrf.mxu0
    %v454 = vadd.f32 0.0, %v453
    %455 = vdwg.mxu0
    %456 = vmatpush.msra.mxu0 %v314
    %457 = vmatpush.msra.mxu0 %v305
    %458 = vmatpush.msra.mxu0 %v296
    %459 = vmatpush.msra.mxu0 %v287
    %460 = vmatpush.msra.mxu0 %v278
    %461 = vmatpush.msra.mxu0 %v269
    %462 = vmatpush.msra.mxu0 %v260
    %463 = vmatpush.msra.mxu0 %v251
    %464 = vmatpush.msra.mxu0 %v242
    %465 = vmatpush.msra.mxu0 %v233
    %466 = vmatpush.msra.mxu0 %v224
    %467 = vmatpush.msra.mxu0 %v215
    %468 = vmatpush.msra.mxu0 %v206
    %469 = vmatpush.msra.mxu0 %v197
    %470 = vmatpush.msra.mxu0 %v188
    %471 = vmatpush.msra.mxu0 %v179
    %472 = vmatmul.f32.gmra.mxu0 %v169
    %v473 = vpop.f32.mrf.mxu0
    %v474 = vadd.f32 0.0, %v473
    %475 = vdwg.mxu0
    %476 = vmatpush.msra.mxu0 %v315
    %477 = vmatpush.msra.mxu0 %v306
    %478 = vmatpush.msra.mxu0 %v297
    %479 = vmatpush.msra.mxu0 %v288
    %480 = vmatpush.msra.mxu0 %v279
    %481 = vmatpush.msra.mxu0 %v270
    %482 = vmatpush.msra.mxu0 %v261
    %483 = vmatpush.msra.mxu0 %v252
    %484 = vmatpush.msra.mxu0 %v243
    %485 = vmatpush.msra.mxu0 %v234
    %486 = vmatpush.msra.mxu0 %v225
    %487 = vmatpush.msra.mxu0 %v216
    %488 = vmatpush.msra.mxu0 %v207
    %489 = vmatpush.msra.mxu0 %v198
    %490 = vmatpush.msra.mxu0 %v189
    %491 = vmatpush.msra.mxu0 %v180
    %492 = vmatmul.f32.gmra.mxu0 %v169
    %v493 = vpop.f32.mrf.mxu0
    %v494 = vadd.f32 0.0, %v493
    %495 = vdwg.mxu0
    %496 = vst [vmem:[#allocation2] sm:$0xff] %v334
    %497 = vst [vmem:[#allocation2 + $0x8] sm:$0xff] %v354
    %498 = vst [vmem:[#allocation2 + $0x10] sm:$0xff] %v374
    %499 = vst [vmem:[#allocation2 + $0x18] sm:$0xff] %v394
    %500 = vst [vmem:[#allocation2 + $0x20] sm:$0xff] %v414
    %501 = vst [vmem:[#allocation2 + $0x28] sm:$0xff] %v434
    %502 = vst [vmem:[#allocation2 + $0x30] sm:$0xff] %v454
    %503 = vst [vmem:[#allocation2 + $0x38] sm:$0xff] %v474
    %504 = vst [vmem:[#allocation2 + $0x40] sm:$0xff] %v494
    %v505 = vld [vmem:[#allocation2] sm:$0xff]
    %v506 = vld [vmem:[#allocation2 + $0x8] sm:$0xff]
    %v507 = vld [vmem:[#allocation2 + $0x10] sm:$0xff]
    %v508 = vld [vmem:[#allocation2 + $0x18] sm:$0xff]
    %v509 = vld [vmem:[#allocation2 + $0x20] sm:$0xff]
    %v510 = vld [vmem:[#allocation2 + $0x28] sm:$0xff]
    %v511 = vld [vmem:[#allocation2 + $0x30] sm:$0xff]
    %v512 = vld [vmem:[#allocation2 + $0x38] sm:$0xff]
    %v513 = vld [vmem:[#allocation2 + $0x40] sm:$0xff]
    %515 = vset.pattern.permute.xlu0 0
    %516 = vperm.xlu0 %515, %v171
    %v517 = vpop.permute.xlu0 %516
    %vm519 = vcmask 588800
    %v521 = vsel %vm519, %v170, 0
    %523 = vmatpush.msra.mxu0 0.0
    %524 = vmatpush.msra.mxu0 0.0
    %525 = vmatpush.msra.mxu0 0.0
    %526 = vmatpush.msra.mxu0 0.0
    %527 = vmatpush.msra.mxu0 0.0
    %528 = vmatpush.msra.mxu0 0.0
    %529 = vmatpush.msra.mxu0 0.0
    %530 = vmatpush.msra.mxu0 %v513
    %531 = vmatpush.msra.mxu0 %v512
    %532 = vmatpush.msra.mxu0 %v511
    %533 = vmatpush.msra.mxu0 %v510
    %534 = vmatpush.msra.mxu0 %v509
    %535 = vmatpush.msra.mxu0 %v508
    %536 = vmatpush.msra.mxu0 %v507
    %537 = vmatpush.msra.mxu0 %v506
    %538 = vmatpush.msra.mxu0 %v505
    %539 = vmatmul.f32.gmra.mxu0 %v521
    %v540 = vpop.f32.mrf.mxu0
    %v541 = vadd.f32 %v517, %v540
    %542 = vdwg.mxu0
    %v543 = vld [vmem:[%s13] sm:$0xff]
    %v544 = vld [vmem:[%s15] sm:$0xff]
    %v545 = vld [vmem:[%s17] sm:$0xff]
    %vm546 = vcmp.gt.f32.partialorder %v541, 0.0
    %v547 = vmul.f32 %v541, 0.2
    %v548 = vsel %vm546, %v541, %v547
    %v549 = vld [vmem:[#allocation4] sm:$0xff]
    %v550 = vld [vmem:[#allocation4 + $0x8] sm:$0xff]
    %v551 = vld [vmem:[#allocation4 + $0x10] sm:$0xff]
    %v552 = vld [vmem:[#allocation4 + $0x18] sm:$0xff]
    %v553 = vld [vmem:[#allocation4 + $0x20] sm:$0xff]
    %v554 = vld [vmem:[#allocation4 + $0x28] sm:$0xff]
    %v555 = vld [vmem:[#allocation4 + $0x30] sm:$0xff]
    %v556 = vld [vmem:[#allocation4 + $0x38] sm:$0xff]
    %v557 = vld [vmem:[#allocation4 + $0x40] sm:$0xff]
    %v558 = vld [vmem:[#allocation4 + $0x48] sm:$0xff]
    %v559 = vld [vmem:[#allocation4 + $0x50] sm:$0xff]
    %v560 = vld [vmem:[#allocation4 + $0x58] sm:$0xff]
    %v561 = vld [vmem:[#allocation4 + $0x60] sm:$0xff]
    %v562 = vld [vmem:[#allocation4 + $0x68] sm:$0xff]
    %v563 = vld [vmem:[#allocation4 + $0x70] sm:$0xff]
    %v564 = vld [vmem:[#allocation4 + $0x78] sm:$0xff]
    %v565 = vld [vmem:[#allocation4 + $0x80] sm:$0xff]
    %v566 = vld [vmem:[#allocation4 + $0x88] sm:$0xff]
    %v567 = vld [vmem:[#allocation4 + $0x90] sm:$0xff]
    %v568 = vld [vmem:[#allocation4 + $0x98] sm:$0xff]
    %v569 = vld [vmem:[#allocation4 + $0xa0] sm:$0xff]
    %v570 = vld [vmem:[#allocation4 + $0xa8] sm:$0xff]
    %v571 = vld [vmem:[#allocation4 + $0xb0] sm:$0xff]
    %v572 = vld [vmem:[#allocation4 + $0xb8] sm:$0xff]
    %v573 = vld [vmem:[#allocation4 + $0xc0] sm:$0xff]
    %v574 = vld [vmem:[#allocation4 + $0xc8] sm:$0xff]
    %v575 = vld [vmem:[#allocation4 + $0xd0] sm:$0xff]
    %v576 = vld [vmem:[#allocation4 + $0xd8] sm:$0xff]
    %v577 = vld [vmem:[#allocation4 + $0xe0] sm:$0xff]
    %v578 = vld [vmem:[#allocation4 + $0xe8] sm:$0xff]
    %v579 = vld [vmem:[#allocation4 + $0xf0] sm:$0xff]
    %v580 = vld [vmem:[#allocation4 + $0xf8] sm:$0xff]
    %v581 = vld [vmem:[#allocation4 + $0x100] sm:$0xff]
    %v582 = vld [vmem:[#allocation4 + $0x108] sm:$0xff]
    %v583 = vld [vmem:[#allocation4 + $0x110] sm:$0xff]
    %v584 = vld [vmem:[#allocation4 + $0x118] sm:$0xff]
    %v585 = vld [vmem:[#allocation4 + $0x120] sm:$0xff]
    %v586 = vld [vmem:[#allocation4 + $0x128] sm:$0xff]
    %v587 = vld [vmem:[#allocation4 + $0x130] sm:$0xff]
    %v588 = vld [vmem:[#allocation4 + $0x138] sm:$0xff]
    %v589 = vld [vmem:[#allocation4 + $0x140] sm:$0xff]
    %v590 = vld [vmem:[#allocation4 + $0x148] sm:$0xff]
    %v591 = vld [vmem:[#allocation4 + $0x150] sm:$0xff]
    %v592 = vld [vmem:[#allocation4 + $0x158] sm:$0xff]
    %v593 = vld [vmem:[#allocation4 + $0x160] sm:$0xff]
    %v594 = vld [vmem:[#allocation4 + $0x168] sm:$0xff]
    %v595 = vld [vmem:[#allocation4 + $0x170] sm:$0xff]
    %v596 = vld [vmem:[#allocation4 + $0x178] sm:$0xff]
    %v597 = vld [vmem:[#allocation4 + $0x180] sm:$0xff]
    %v598 = vld [vmem:[#allocation4 + $0x188] sm:$0xff]
    %v599 = vld [vmem:[#allocation4 + $0x190] sm:$0xff]
    %v600 = vld [vmem:[#allocation4 + $0x198] sm:$0xff]
    %v601 = vld [vmem:[#allocation4 + $0x1a0] sm:$0xff]
    %v602 = vld [vmem:[#allocation4 + $0x1a8] sm:$0xff]
    %v603 = vld [vmem:[#allocation4 + $0x1b0] sm:$0xff]
    %v604 = vld [vmem:[#allocation4 + $0x1b8] sm:$0xff]
    %v605 = vld [vmem:[#allocation4 + $0x1c0] sm:$0xff]
    %v606 = vld [vmem:[#allocation4 + $0x1c8] sm:$0xff]
    %v607 = vld [vmem:[#allocation4 + $0x1d0] sm:$0xff]
    %v608 = vld [vmem:[#allocation4 + $0x1d8] sm:$0xff]
    %v609 = vld [vmem:[#allocation4 + $0x1e0] sm:$0xff]
    %v610 = vld [vmem:[#allocation4 + $0x1e8] sm:$0xff]
    %v611 = vld [vmem:[#allocation4 + $0x1f0] sm:$0xff]
    %v612 = vld [vmem:[#allocation4 + $0x1f8] sm:$0xff]
    %v613 = vld [vmem:[#allocation4 + $0x200] sm:$0xff]
    %v614 = vld [vmem:[#allocation4 + $0x208] sm:$0xff]
    %v615 = vld [vmem:[#allocation4 + $0x210] sm:$0xff]
    %v616 = vld [vmem:[#allocation4 + $0x218] sm:$0xff]
    %v617 = vld [vmem:[#allocation4 + $0x220] sm:$0xff]
    %v618 = vld [vmem:[#allocation4 + $0x228] sm:$0xff]
    %v619 = vld [vmem:[#allocation4 + $0x230] sm:$0xff]
    %v620 = vld [vmem:[#allocation4 + $0x238] sm:$0xff]
    %v621 = vld [vmem:[#allocation4 + $0x240] sm:$0xff]
    %v622 = vld [vmem:[#allocation4 + $0x248] sm:$0xff]
    %v623 = vld [vmem:[#allocation4 + $0x250] sm:$0xff]
    %v624 = vld [vmem:[#allocation4 + $0x258] sm:$0xff]
    %v625 = vld [vmem:[#allocation4 + $0x260] sm:$0xff]
    %v626 = vld [vmem:[#allocation4 + $0x268] sm:$0xff]
    %v627 = vld [vmem:[#allocation4 + $0x270] sm:$0xff]
    %v628 = vld [vmem:[#allocation4 + $0x278] sm:$0xff]
    %v629 = vld [vmem:[#allocation4 + $0x280] sm:$0xff]
    %v630 = vld [vmem:[#allocation4 + $0x288] sm:$0xff]
    %v631 = vld [vmem:[#allocation4 + $0x290] sm:$0xff]
    %v632 = vld [vmem:[#allocation4 + $0x298] sm:$0xff]
    %v633 = vld [vmem:[#allocation4 + $0x2a0] sm:$0xff]
    %v634 = vld [vmem:[#allocation4 + $0x2a8] sm:$0xff]
    %v635 = vld [vmem:[#allocation4 + $0x2b0] sm:$0xff]
    %v636 = vld [vmem:[#allocation4 + $0x2b8] sm:$0xff]
    %v637 = vld [vmem:[#allocation4 + $0x2c0] sm:$0xff]
    %v638 = vld [vmem:[#allocation4 + $0x2c8] sm:$0xff]
    %v639 = vld [vmem:[#allocation4 + $0x2d0] sm:$0xff]
    %v640 = vld [vmem:[#allocation4 + $0x2d8] sm:$0xff]
    %v641 = vld [vmem:[#allocation4 + $0x2e0] sm:$0xff]
    %v642 = vld [vmem:[#allocation4 + $0x2e8] sm:$0xff]
    %v643 = vld [vmem:[#allocation4 + $0x2f0] sm:$0xff]
    %v644 = vld [vmem:[#allocation4 + $0x2f8] sm:$0xff]
    %v645 = vld [vmem:[#allocation4 + $0x300] sm:$0xff]
    %v646 = vld [vmem:[#allocation4 + $0x308] sm:$0xff]
    %v647 = vld [vmem:[#allocation4 + $0x310] sm:$0xff]
    %v648 = vld [vmem:[#allocation4 + $0x318] sm:$0xff]
    %v649 = vld [vmem:[#allocation4 + $0x320] sm:$0xff]
    %v650 = vld [vmem:[#allocation4 + $0x328] sm:$0xff]
    %v651 = vld [vmem:[#allocation4 + $0x330] sm:$0xff]
    %v652 = vld [vmem:[#allocation4 + $0x338] sm:$0xff]
    %v653 = vld [vmem:[#allocation4 + $0x340] sm:$0xff]
    %v654 = vld [vmem:[#allocation4 + $0x348] sm:$0xff]
    %v655 = vld [vmem:[#allocation4 + $0x350] sm:$0xff]
    %v656 = vld [vmem:[#allocation4 + $0x358] sm:$0xff]
    %v657 = vld [vmem:[#allocation4 + $0x360] sm:$0xff]
    %v658 = vld [vmem:[#allocation4 + $0x368] sm:$0xff]
    %v659 = vld [vmem:[#allocation4 + $0x370] sm:$0xff]
    %v660 = vld [vmem:[#allocation4 + $0x378] sm:$0xff]
    %v661 = vld [vmem:[#allocation4 + $0x380] sm:$0xff]
    %v662 = vld [vmem:[#allocation4 + $0x388] sm:$0xff]
    %v663 = vld [vmem:[#allocation4 + $0x390] sm:$0xff]
    %v664 = vld [vmem:[#allocation4 + $0x398] sm:$0xff]
    %v665 = vld [vmem:[#allocation4 + $0x3a0] sm:$0xff]
    %v666 = vld [vmem:[#allocation4 + $0x3a8] sm:$0xff]
    %v667 = vld [vmem:[#allocation4 + $0x3b0] sm:$0xff]
    %v668 = vld [vmem:[#allocation4 + $0x3b8] sm:$0xff]
    %v669 = vld [vmem:[#allocation4 + $0x3c0] sm:$0xff]
    %v670 = vld [vmem:[#allocation4 + $0x3c8] sm:$0xff]
    %v671 = vld [vmem:[#allocation4 + $0x3d0] sm:$0xff]
    %v672 = vld [vmem:[#allocation4 + $0x3d8] sm:$0xff]
    %v673 = vld [vmem:[#allocation4 + $0x3e0] sm:$0xff]
    %v674 = vld [vmem:[#allocation4 + $0x3e8] sm:$0xff]
    %v675 = vld [vmem:[#allocation4 + $0x3f0] sm:$0xff]
    %v676 = vld [vmem:[#allocation4 + $0x3f8] sm:$0xff]
    %v677 = vld [vmem:[#allocation4 + $0x400] sm:$0xff]
    %v678 = vld [vmem:[#allocation4 + $0x408] sm:$0xff]
    %v679 = vld [vmem:[#allocation4 + $0x410] sm:$0xff]
    %v680 = vld [vmem:[#allocation4 + $0x418] sm:$0xff]
    %v681 = vld [vmem:[#allocation4 + $0x420] sm:$0xff]
    %v682 = vld [vmem:[#allocation4 + $0x428] sm:$0xff]
    %v683 = vld [vmem:[#allocation4 + $0x430] sm:$0xff]
    %v684 = vld [vmem:[#allocation4 + $0x438] sm:$0xff]
    %v685 = vld [vmem:[#allocation4 + $0x440] sm:$0xff]
    %v686 = vld [vmem:[#allocation4 + $0x448] sm:$0xff]
    %v687 = vld [vmem:[#allocation4 + $0x450] sm:$0xff]
    %v688 = vld [vmem:[#allocation4 + $0x458] sm:$0xff]
    %v689 = vld [vmem:[#allocation4 + $0x460] sm:$0xff]
    %v690 = vld [vmem:[#allocation4 + $0x468] sm:$0xff]
    %v691 = vld [vmem:[#allocation4 + $0x470] sm:$0xff]
    %v692 = vld [vmem:[#allocation4 + $0x478] sm:$0xff]
    %693 = vmatpush.msra.mxu0 %v684
    %694 = vmatpush.msra.mxu0 %v675
    %695 = vmatpush.msra.mxu0 %v666
    %696 = vmatpush.msra.mxu0 %v657
    %697 = vmatpush.msra.mxu0 %v648
    %698 = vmatpush.msra.mxu0 %v639
    %699 = vmatpush.msra.mxu0 %v630
    %700 = vmatpush.msra.mxu0 %v621
    %701 = vmatpush.msra.mxu0 %v612
    %702 = vmatpush.msra.mxu0 %v603
    %703 = vmatpush.msra.mxu0 %v594
    %704 = vmatpush.msra.mxu0 %v585
    %705 = vmatpush.msra.mxu0 %v576
    %706 = vmatpush.msra.mxu0 %v567
    %707 = vmatpush.msra.mxu0 %v558
    %708 = vmatpush.msra.mxu0 %v549
    %709 = vmatmul.f32.gmra.mxu0 %v548
    %v710 = vpop.f32.mrf.mxu0
    %v711 = vadd.f32 0.0, %v710
    %712 = vdwg.mxu0
    %713 = vmatpush.msra.mxu0 %v685
    %714 = vmatpush.msra.mxu0 %v676
    %715 = vmatpush.msra.mxu0 %v667
    %716 = vmatpush.msra.mxu0 %v658
    %717 = vmatpush.msra.mxu0 %v649
    %718 = vmatpush.msra.mxu0 %v640
    %719 = vmatpush.msra.mxu0 %v631
    %720 = vmatpush.msra.mxu0 %v622
    %721 = vmatpush.msra.mxu0 %v613
    %722 = vmatpush.msra.mxu0 %v604
    %723 = vmatpush.msra.mxu0 %v595
    %724 = vmatpush.msra.mxu0 %v586
    %725 = vmatpush.msra.mxu0 %v577
    %726 = vmatpush.msra.mxu0 %v568
    %727 = vmatpush.msra.mxu0 %v559
    %728 = vmatpush.msra.mxu0 %v550
    %729 = vmatmul.f32.gmra.mxu0 %v548
    %v730 = vpop.f32.mrf.mxu0
    %v731 = vadd.f32 0.0, %v730
    %732 = vdwg.mxu0
    %733 = vmatpush.msra.mxu0 %v686
    %734 = vmatpush.msra.mxu0 %v677
    %735 = vmatpush.msra.mxu0 %v668
    %736 = vmatpush.msra.mxu0 %v659
    %737 = vmatpush.msra.mxu0 %v650
    %738 = vmatpush.msra.mxu0 %v641
    %739 = vmatpush.msra.mxu0 %v632
    %740 = vmatpush.msra.mxu0 %v623
    %741 = vmatpush.msra.mxu0 %v614
    %742 = vmatpush.msra.mxu0 %v605
    %743 = vmatpush.msra.mxu0 %v596
    %744 = vmatpush.msra.mxu0 %v587
    %745 = vmatpush.msra.mxu0 %v578
    %746 = vmatpush.msra.mxu0 %v569
    %747 = vmatpush.msra.mxu0 %v560
    %748 = vmatpush.msra.mxu0 %v551
    %749 = vmatmul.f32.gmra.mxu0 %v548
    %v750 = vpop.f32.mrf.mxu0
    %v751 = vadd.f32 0.0, %v750
    %752 = vdwg.mxu0
    %753 = vmatpush.msra.mxu0 %v687
    %754 = vmatpush.msra.mxu0 %v678
    %755 = vmatpush.msra.mxu0 %v669
    %756 = vmatpush.msra.mxu0 %v660
    %757 = vmatpush.msra.mxu0 %v651
    %758 = vmatpush.msra.mxu0 %v642
    %759 = vmatpush.msra.mxu0 %v633
    %760 = vmatpush.msra.mxu0 %v624
    %761 = vmatpush.msra.mxu0 %v615
    %762 = vmatpush.msra.mxu0 %v606
    %763 = vmatpush.msra.mxu0 %v597
    %764 = vmatpush.msra.mxu0 %v588
    %765 = vmatpush.msra.mxu0 %v579
    %766 = vmatpush.msra.mxu0 %v570
    %767 = vmatpush.msra.mxu0 %v561
    %768 = vmatpush.msra.mxu0 %v552
    %769 = vmatmul.f32.gmra.mxu0 %v548
    %v770 = vpop.f32.mrf.mxu0
    %v771 = vadd.f32 0.0, %v770
    %772 = vdwg.mxu0
    %773 = vmatpush.msra.mxu0 %v688
    %774 = vmatpush.msra.mxu0 %v679
    %775 = vmatpush.msra.mxu0 %v670
    %776 = vmatpush.msra.mxu0 %v661
    %777 = vmatpush.msra.mxu0 %v652
    %778 = vmatpush.msra.mxu0 %v643
    %779 = vmatpush.msra.mxu0 %v634
    %780 = vmatpush.msra.mxu0 %v625
    %781 = vmatpush.msra.mxu0 %v616
    %782 = vmatpush.msra.mxu0 %v607
    %783 = vmatpush.msra.mxu0 %v598
    %784 = vmatpush.msra.mxu0 %v589
    %785 = vmatpush.msra.mxu0 %v580
    %786 = vmatpush.msra.mxu0 %v571
    %787 = vmatpush.msra.mxu0 %v562
    %788 = vmatpush.msra.mxu0 %v553
    %789 = vmatmul.f32.gmra.mxu0 %v548
    %v790 = vpop.f32.mrf.mxu0
    %v791 = vadd.f32 0.0, %v790
    %792 = vdwg.mxu0
    %793 = vmatpush.msra.mxu0 %v689
    %794 = vmatpush.msra.mxu0 %v680
    %795 = vmatpush.msra.mxu0 %v671
    %796 = vmatpush.msra.mxu0 %v662
    %797 = vmatpush.msra.mxu0 %v653
    %798 = vmatpush.msra.mxu0 %v644
    %799 = vmatpush.msra.mxu0 %v635
    %800 = vmatpush.msra.mxu0 %v626
    %801 = vmatpush.msra.mxu0 %v617
    %802 = vmatpush.msra.mxu0 %v608
    %803 = vmatpush.msra.mxu0 %v599
    %804 = vmatpush.msra.mxu0 %v590
    %805 = vmatpush.msra.mxu0 %v581
    %806 = vmatpush.msra.mxu0 %v572
    %807 = vmatpush.msra.mxu0 %v563
    %808 = vmatpush.msra.mxu0 %v554
    %809 = vmatmul.f32.gmra.mxu0 %v548
    %v810 = vpop.f32.mrf.mxu0
    %v811 = vadd.f32 0.0, %v810
    %812 = vdwg.mxu0
    %813 = vmatpush.msra.mxu0 %v690
    %814 = vmatpush.msra.mxu0 %v681
    %815 = vmatpush.msra.mxu0 %v672
    %816 = vmatpush.msra.mxu0 %v663
    %817 = vmatpush.msra.mxu0 %v654
    %818 = vmatpush.msra.mxu0 %v645
    %819 = vmatpush.msra.mxu0 %v636
    %820 = vmatpush.msra.mxu0 %v627
    %821 = vmatpush.msra.mxu0 %v618
    %822 = vmatpush.msra.mxu0 %v609
    %823 = vmatpush.msra.mxu0 %v600
    %824 = vmatpush.msra.mxu0 %v591
    %825 = vmatpush.msra.mxu0 %v582
    %826 = vmatpush.msra.mxu0 %v573
    %827 = vmatpush.msra.mxu0 %v564
    %828 = vmatpush.msra.mxu0 %v555
    %829 = vmatmul.f32.gmra.mxu0 %v548
    %v830 = vpop.f32.mrf.mxu0
    %v831 = vadd.f32 0.0, %v830
    %832 = vdwg.mxu0
    %833 = vmatpush.msra.mxu0 %v691
    %834 = vmatpush.msra.mxu0 %v682
    %835 = vmatpush.msra.mxu0 %v673
    %836 = vmatpush.msra.mxu0 %v664
    %837 = vmatpush.msra.mxu0 %v655
    %838 = vmatpush.msra.mxu0 %v646
    %839 = vmatpush.msra.mxu0 %v637
    %840 = vmatpush.msra.mxu0 %v628
    %841 = vmatpush.msra.mxu0 %v619
    %842 = vmatpush.msra.mxu0 %v610
    %843 = vmatpush.msra.mxu0 %v601
    %844 = vmatpush.msra.mxu0 %v592
    %845 = vmatpush.msra.mxu0 %v583
    %846 = vmatpush.msra.mxu0 %v574
    %847 = vmatpush.msra.mxu0 %v565
    %848 = vmatpush.msra.mxu0 %v556
    %849 = vmatmul.f32.gmra.mxu0 %v548
    %v850 = vpop.f32.mrf.mxu0
    %v851 = vadd.f32 0.0, %v850
    %852 = vdwg.mxu0
    %853 = vmatpush.msra.mxu0 %v692
    %854 = vmatpush.msra.mxu0 %v683
    %855 = vmatpush.msra.mxu0 %v674
    %856 = vmatpush.msra.mxu0 %v665
    %857 = vmatpush.msra.mxu0 %v656
    %858 = vmatpush.msra.mxu0 %v647
    %859 = vmatpush.msra.mxu0 %v638
    %860 = vmatpush.msra.mxu0 %v629
    %861 = vmatpush.msra.mxu0 %v620
    %862 = vmatpush.msra.mxu0 %v611
    %863 = vmatpush.msra.mxu0 %v602
    %864 = vmatpush.msra.mxu0 %v593
    %865 = vmatpush.msra.mxu0 %v584
    %866 = vmatpush.msra.mxu0 %v575
    %867 = vmatpush.msra.mxu0 %v566
    %868 = vmatpush.msra.mxu0 %v557
    %869 = vmatmul.f32.gmra.mxu0 %v548
    %v870 = vpop.f32.mrf.mxu0
    %v871 = vadd.f32 0.0, %v870
    %872 = vdwg.mxu0
    %873 = vst [vmem:[#allocation2] sm:$0xff] %v711
    %874 = vst [vmem:[#allocation2 + $0x8] sm:$0xff] %v731
    %875 = vst [vmem:[#allocation2 + $0x10] sm:$0xff] %v751
    %876 = vst [vmem:[#allocation2 + $0x18] sm:$0xff] %v771
    %877 = vst [vmem:[#allocation2 + $0x20] sm:$0xff] %v791
    %878 = vst [vmem:[#allocation2 + $0x28] sm:$0xff] %v811
    %879 = vst [vmem:[#allocation2 + $0x30] sm:$0xff] %v831
    %880 = vst [vmem:[#allocation2 + $0x38] sm:$0xff] %v851
    %881 = vst [vmem:[#allocation2 + $0x40] sm:$0xff] %v871
    %v882 = vld [vmem:[#allocation2] sm:$0xff]
    %v883 = vld [vmem:[#allocation2 + $0x8] sm:$0xff]
    %v884 = vld [vmem:[#allocation2 + $0x10] sm:$0xff]
    %v885 = vld [vmem:[#allocation2 + $0x18] sm:$0xff]
    %v886 = vld [vmem:[#allocation2 + $0x20] sm:$0xff]
    %v887 = vld [vmem:[#allocation2 + $0x28] sm:$0xff]
    %v888 = vld [vmem:[#allocation2 + $0x30] sm:$0xff]
    %v889 = vld [vmem:[#allocation2 + $0x38] sm:$0xff]
    %v890 = vld [vmem:[#allocation2 + $0x40] sm:$0xff]
    %892 = vset.pattern.permute.xlu0 0
    %893 = vperm.xlu0 %892, %v544
    %v894 = vpop.permute.xlu0 %893
    %v897 = vsel %vm519, %v543, 0
    %899 = vmatpush.msra.mxu0 0.0
    %900 = vmatpush.msra.mxu0 0.0
    %901 = vmatpush.msra.mxu0 0.0
    %902 = vmatpush.msra.mxu0 0.0
    %903 = vmatpush.msra.mxu0 0.0
    %904 = vmatpush.msra.mxu0 0.0
    %905 = vmatpush.msra.mxu0 0.0
    %906 = vmatpush.msra.mxu0 %v890
    %907 = vmatpush.msra.mxu0 %v889
    %908 = vmatpush.msra.mxu0 %v888
    %909 = vmatpush.msra.mxu0 %v887
    %910 = vmatpush.msra.mxu0 %v886
    %911 = vmatpush.msra.mxu0 %v885
    %912 = vmatpush.msra.mxu0 %v884
    %913 = vmatpush.msra.mxu0 %v883
    %914 = vmatpush.msra.mxu0 %v882
    %915 = vmatmul.f32.gmra.mxu0 %v897
    %v916 = vpop.f32.mrf.mxu0
    %v917 = vadd.f32 %v894, %v916
    %918 = vdwg.mxu0
    %vm919 = vcmp.gt.f32.partialorder %v917, 0.0
    %v920 = vmul.f32 %v917, 0.2
    %v921 = vsel %vm919, %v917, %v920
    %v922 = vld [vmem:[#allocation4] sm:$0xff]
    %v923 = vld [vmem:[#allocation4 + $0x8] sm:$0xff]
    %v924 = vld [vmem:[#allocation4 + $0x10] sm:$0xff]
    %v925 = vld [vmem:[#allocation4 + $0x18] sm:$0xff]
    %v926 = vld [vmem:[#allocation4 + $0x20] sm:$0xff]
    %v927 = vld [vmem:[#allocation4 + $0x28] sm:$0xff]
    %v928 = vld [vmem:[#allocation4 + $0x30] sm:$0xff]
    %v929 = vld [vmem:[#allocation4 + $0x38] sm:$0xff]
    %v930 = vld [vmem:[#allocation4 + $0x40] sm:$0xff]
    %v931 = vld [vmem:[#allocation4 + $0x48] sm:$0xff]
    %v932 = vld [vmem:[#allocation4 + $0x50] sm:$0xff]
    %v933 = vld [vmem:[#allocation4 + $0x58] sm:$0xff]
    %v934 = vld [vmem:[#allocation4 + $0x60] sm:$0xff]
    %v935 = vld [vmem:[#allocation4 + $0x68] sm:$0xff]
    %v936 = vld [vmem:[#allocation4 + $0x70] sm:$0xff]
    %v937 = vld [vmem:[#allocation4 + $0x78] sm:$0xff]
    %v938 = vld [vmem:[#allocation4 + $0x80] sm:$0xff]
    %v939 = vld [vmem:[#allocation4 + $0x88] sm:$0xff]
    %v940 = vld [vmem:[#allocation4 + $0x90] sm:$0xff]
    %v941 = vld [vmem:[#allocation4 + $0x98] sm:$0xff]
    %v942 = vld [vmem:[#allocation4 + $0xa0] sm:$0xff]
    %v943 = vld [vmem:[#allocation4 + $0xa8] sm:$0xff]
    %v944 = vld [vmem:[#allocation4 + $0xb0] sm:$0xff]
    %v945 = vld [vmem:[#allocation4 + $0xb8] sm:$0xff]
    %v946 = vld [vmem:[#allocation4 + $0xc0] sm:$0xff]
    %v947 = vld [vmem:[#allocation4 + $0xc8] sm:$0xff]
    %v948 = vld [vmem:[#allocation4 + $0xd0] sm:$0xff]
    %v949 = vld [vmem:[#allocation4 + $0xd8] sm:$0xff]
    %v950 = vld [vmem:[#allocation4 + $0xe0] sm:$0xff]
    %v951 = vld [vmem:[#allocation4 + $0xe8] sm:$0xff]
    %v952 = vld [vmem:[#allocation4 + $0xf0] sm:$0xff]
    %v953 = vld [vmem:[#allocation4 + $0xf8] sm:$0xff]
    %v954 = vld [vmem:[#allocation4 + $0x100] sm:$0xff]
    %v955 = vld [vmem:[#allocation4 + $0x108] sm:$0xff]
    %v956 = vld [vmem:[#allocation4 + $0x110] sm:$0xff]
    %v957 = vld [vmem:[#allocation4 + $0x118] sm:$0xff]
    %v958 = vld [vmem:[#allocation4 + $0x120] sm:$0xff]
    %v959 = vld [vmem:[#allocation4 + $0x128] sm:$0xff]
    %v960 = vld [vmem:[#allocation4 + $0x130] sm:$0xff]
    %v961 = vld [vmem:[#allocation4 + $0x138] sm:$0xff]
    %v962 = vld [vmem:[#allocation4 + $0x140] sm:$0xff]
    %v963 = vld [vmem:[#allocation4 + $0x148] sm:$0xff]
    %v964 = vld [vmem:[#allocation4 + $0x150] sm:$0xff]
    %v965 = vld [vmem:[#allocation4 + $0x158] sm:$0xff]
    %v966 = vld [vmem:[#allocation4 + $0x160] sm:$0xff]
    %v967 = vld [vmem:[#allocation4 + $0x168] sm:$0xff]
    %v968 = vld [vmem:[#allocation4 + $0x170] sm:$0xff]
    %v969 = vld [vmem:[#allocation4 + $0x178] sm:$0xff]
    %v970 = vld [vmem:[#allocation4 + $0x180] sm:$0xff]
    %v971 = vld [vmem:[#allocation4 + $0x188] sm:$0xff]
    %v972 = vld [vmem:[#allocation4 + $0x190] sm:$0xff]
    %v973 = vld [vmem:[#allocation4 + $0x198] sm:$0xff]
    %v974 = vld [vmem:[#allocation4 + $0x1a0] sm:$0xff]
    %v975 = vld [vmem:[#allocation4 + $0x1a8] sm:$0xff]
    %v976 = vld [vmem:[#allocation4 + $0x1b0] sm:$0xff]
    %v977 = vld [vmem:[#allocation4 + $0x1b8] sm:$0xff]
    %v978 = vld [vmem:[#allocation4 + $0x1c0] sm:$0xff]
    %v979 = vld [vmem:[#allocation4 + $0x1c8] sm:$0xff]
    %v980 = vld [vmem:[#allocation4 + $0x1d0] sm:$0xff]
    %v981 = vld [vmem:[#allocation4 + $0x1d8] sm:$0xff]
    %v982 = vld [vmem:[#allocation4 + $0x1e0] sm:$0xff]
    %v983 = vld [vmem:[#allocation4 + $0x1e8] sm:$0xff]
    %v984 = vld [vmem:[#allocation4 + $0x1f0] sm:$0xff]
    %v985 = vld [vmem:[#allocation4 + $0x1f8] sm:$0xff]
    %v986 = vld [vmem:[#allocation4 + $0x200] sm:$0xff]
    %v987 = vld [vmem:[#allocation4 + $0x208] sm:$0xff]
    %v988 = vld [vmem:[#allocation4 + $0x210] sm:$0xff]
    %v989 = vld [vmem:[#allocation4 + $0x218] sm:$0xff]
    %v990 = vld [vmem:[#allocation4 + $0x220] sm:$0xff]
    %v991 = vld [vmem:[#allocation4 + $0x228] sm:$0xff]
    %v992 = vld [vmem:[#allocation4 + $0x230] sm:$0xff]
    %v993 = vld [vmem:[#allocation4 + $0x238] sm:$0xff]
    %v994 = vld [vmem:[#allocation4 + $0x240] sm:$0xff]
    %v995 = vld [vmem:[#allocation4 + $0x248] sm:$0xff]
    %v996 = vld [vmem:[#allocation4 + $0x250] sm:$0xff]
    %v997 = vld [vmem:[#allocation4 + $0x258] sm:$0xff]
    %v998 = vld [vmem:[#allocation4 + $0x260] sm:$0xff]
    %v999 = vld [vmem:[#allocation4 + $0x268] sm:$0xff]
    %v1000 = vld [vmem:[#allocation4 + $0x270] sm:$0xff]
    %v1001 = vld [vmem:[#allocation4 + $0x278] sm:$0xff]
    %v1002 = vld [vmem:[#allocation4 + $0x280] sm:$0xff]
    %v1003 = vld [vmem:[#allocation4 + $0x288] sm:$0xff]
    %v1004 = vld [vmem:[#allocation4 + $0x290] sm:$0xff]
    %v1005 = vld [vmem:[#allocation4 + $0x298] sm:$0xff]
    %v1006 = vld [vmem:[#allocation4 + $0x2a0] sm:$0xff]
    %v1007 = vld [vmem:[#allocation4 + $0x2a8] sm:$0xff]
    %v1008 = vld [vmem:[#allocation4 + $0x2b0] sm:$0xff]
    %v1009 = vld [vmem:[#allocation4 + $0x2b8] sm:$0xff]
    %v1010 = vld [vmem:[#allocation4 + $0x2c0] sm:$0xff]
    %v1011 = vld [vmem:[#allocation4 + $0x2c8] sm:$0xff]
    %v1012 = vld [vmem:[#allocation4 + $0x2d0] sm:$0xff]
    %v1013 = vld [vmem:[#allocation4 + $0x2d8] sm:$0xff]
    %v1014 = vld [vmem:[#allocation4 + $0x2e0] sm:$0xff]
    %v1015 = vld [vmem:[#allocation4 + $0x2e8] sm:$0xff]
    %v1016 = vld [vmem:[#allocation4 + $0x2f0] sm:$0xff]
    %v1017 = vld [vmem:[#allocation4 + $0x2f8] sm:$0xff]
    %v1018 = vld [vmem:[#allocation4 + $0x300] sm:$0xff]
    %v1019 = vld [vmem:[#allocation4 + $0x308] sm:$0xff]
    %v1020 = vld [vmem:[#allocation4 + $0x310] sm:$0xff]
    %v1021 = vld [vmem:[#allocation4 + $0x318] sm:$0xff]
    %v1022 = vld [vmem:[#allocation4 + $0x320] sm:$0xff]
    %v1023 = vld [vmem:[#allocation4 + $0x328] sm:$0xff]
    %v1024 = vld [vmem:[#allocation4 + $0x330] sm:$0xff]
    %v1025 = vld [vmem:[#allocation4 + $0x338] sm:$0xff]
    %v1026 = vld [vmem:[#allocation4 + $0x340] sm:$0xff]
    %v1027 = vld [vmem:[#allocation4 + $0x348] sm:$0xff]
    %v1028 = vld [vmem:[#allocation4 + $0x350] sm:$0xff]
    %v1029 = vld [vmem:[#allocation4 + $0x358] sm:$0xff]
    %v1030 = vld [vmem:[#allocation4 + $0x360] sm:$0xff]
    %v1031 = vld [vmem:[#allocation4 + $0x368] sm:$0xff]
    %v1032 = vld [vmem:[#allocation4 + $0x370] sm:$0xff]
    %v1033 = vld [vmem:[#allocation4 + $0x378] sm:$0xff]
    %v1034 = vld [vmem:[#allocation4 + $0x380] sm:$0xff]
    %v1035 = vld [vmem:[#allocation4 + $0x388] sm:$0xff]
    %v1036 = vld [vmem:[#allocation4 + $0x390] sm:$0xff]
    %v1037 = vld [vmem:[#allocation4 + $0x398] sm:$0xff]
    %v1038 = vld [vmem:[#allocation4 + $0x3a0] sm:$0xff]
    %v1039 = vld [vmem:[#allocation4 + $0x3a8] sm:$0xff]
    %v1040 = vld [vmem:[#allocation4 + $0x3b0] sm:$0xff]
    %v1041 = vld [vmem:[#allocation4 + $0x3b8] sm:$0xff]
    %v1042 = vld [vmem:[#allocation4 + $0x3c0] sm:$0xff]
    %v1043 = vld [vmem:[#allocation4 + $0x3c8] sm:$0xff]
    %v1044 = vld [vmem:[#allocation4 + $0x3d0] sm:$0xff]
    %v1045 = vld [vmem:[#allocation4 + $0x3d8] sm:$0xff]
    %v1046 = vld [vmem:[#allocation4 + $0x3e0] sm:$0xff]
    %v1047 = vld [vmem:[#allocation4 + $0x3e8] sm:$0xff]
    %v1048 = vld [vmem:[#allocation4 + $0x3f0] sm:$0xff]
    %v1049 = vld [vmem:[#allocation4 + $0x3f8] sm:$0xff]
    %v1050 = vld [vmem:[#allocation4 + $0x400] sm:$0xff]
    %v1051 = vld [vmem:[#allocation4 + $0x408] sm:$0xff]
    %v1052 = vld [vmem:[#allocation4 + $0x410] sm:$0xff]
    %v1053 = vld [vmem:[#allocation4 + $0x418] sm:$0xff]
    %v1054 = vld [vmem:[#allocation4 + $0x420] sm:$0xff]
    %v1055 = vld [vmem:[#allocation4 + $0x428] sm:$0xff]
    %v1056 = vld [vmem:[#allocation4 + $0x430] sm:$0xff]
    %v1057 = vld [vmem:[#allocation4 + $0x438] sm:$0xff]
    %v1058 = vld [vmem:[#allocation4 + $0x440] sm:$0xff]
    %v1059 = vld [vmem:[#allocation4 + $0x448] sm:$0xff]
    %v1060 = vld [vmem:[#allocation4 + $0x450] sm:$0xff]
    %v1061 = vld [vmem:[#allocation4 + $0x458] sm:$0xff]
    %v1062 = vld [vmem:[#allocation4 + $0x460] sm:$0xff]
    %v1063 = vld [vmem:[#allocation4 + $0x468] sm:$0xff]
    %v1064 = vld [vmem:[#allocation4 + $0x470] sm:$0xff]
    %v1065 = vld [vmem:[#allocation4 + $0x478] sm:$0xff]
    %1066 = vmatpush.msra.mxu0 %v1057
    %1067 = vmatpush.msra.mxu0 %v1048
    %1068 = vmatpush.msra.mxu0 %v1039
    %1069 = vmatpush.msra.mxu0 %v1030
    %1070 = vmatpush.msra.mxu0 %v1021
    %1071 = vmatpush.msra.mxu0 %v1012
    %1072 = vmatpush.msra.mxu0 %v1003
    %1073 = vmatpush.msra.mxu0 %v994
    %1074 = vmatpush.msra.mxu0 %v985
    %1075 = vmatpush.msra.mxu0 %v976
    %1076 = vmatpush.msra.mxu0 %v967
    %1077 = vmatpush.msra.mxu0 %v958
    %1078 = vmatpush.msra.mxu0 %v949
    %1079 = vmatpush.msra.mxu0 %v940
    %1080 = vmatpush.msra.mxu0 %v931
    %1081 = vmatpush.msra.mxu0 %v922
    %1082 = vmatmul.f32.gmra.mxu0 %v921
    %v1083 = vpop.f32.mrf.mxu0
    %v1084 = vadd.f32 0.0, %v1083
    %1085 = vdwg.mxu0
    %1086 = vmatpush.msra.mxu0 %v1058
    %1087 = vmatpush.msra.mxu0 %v1049
    %1088 = vmatpush.msra.mxu0 %v1040
    %1089 = vmatpush.msra.mxu0 %v1031
    %1090 = vmatpush.msra.mxu0 %v1022
    %1091 = vmatpush.msra.mxu0 %v1013
    %1092 = vmatpush.msra.mxu0 %v1004
    %1093 = vmatpush.msra.mxu0 %v995
    %1094 = vmatpush.msra.mxu0 %v986
    %1095 = vmatpush.msra.mxu0 %v977
    %1096 = vmatpush.msra.mxu0 %v968
    %1097 = vmatpush.msra.mxu0 %v959
    %1098 = vmatpush.msra.mxu0 %v950
    %1099 = vmatpush.msra.mxu0 %v941
    %1100 = vmatpush.msra.mxu0 %v932
    %1101 = vmatpush.msra.mxu0 %v923
    %1102 = vmatmul.f32.gmra.mxu0 %v921
    %v1103 = vpop.f32.mrf.mxu0
    %v1104 = vadd.f32 0.0, %v1103
    %1105 = vdwg.mxu0
    %1106 = vmatpush.msra.mxu0 %v1059
    %1107 = vmatpush.msra.mxu0 %v1050
    %1108 = vmatpush.msra.mxu0 %v1041
    %1109 = vmatpush.msra.mxu0 %v1032
    %1110 = vmatpush.msra.mxu0 %v1023
    %1111 = vmatpush.msra.mxu0 %v1014
    %1112 = vmatpush.msra.mxu0 %v1005
    %1113 = vmatpush.msra.mxu0 %v996
    %1114 = vmatpush.msra.mxu0 %v987
    %1115 = vmatpush.msra.mxu0 %v978
    %1116 = vmatpush.msra.mxu0 %v969
    %1117 = vmatpush.msra.mxu0 %v960
    %1118 = vmatpush.msra.mxu0 %v951
    %1119 = vmatpush.msra.mxu0 %v942
    %1120 = vmatpush.msra.mxu0 %v933
    %1121 = vmatpush.msra.mxu0 %v924
    %1122 = vmatmul.f32.gmra.mxu0 %v921
    %v1123 = vpop.f32.mrf.mxu0
    %v1124 = vadd.f32 0.0, %v1123
    %1125 = vdwg.mxu0
    %1126 = vmatpush.msra.mxu0 %v1060
    %1127 = vmatpush.msra.mxu0 %v1051
    %1128 = vmatpush.msra.mxu0 %v1042
    %1129 = vmatpush.msra.mxu0 %v1033
    %1130 = vmatpush.msra.mxu0 %v1024
    %1131 = vmatpush.msra.mxu0 %v1015
    %1132 = vmatpush.msra.mxu0 %v1006
    %1133 = vmatpush.msra.mxu0 %v997
    %1134 = vmatpush.msra.mxu0 %v988
    %1135 = vmatpush.msra.mxu0 %v979
    %1136 = vmatpush.msra.mxu0 %v970
    %1137 = vmatpush.msra.mxu0 %v961
    %1138 = vmatpush.msra.mxu0 %v952
    %1139 = vmatpush.msra.mxu0 %v943
    %1140 = vmatpush.msra.mxu0 %v934
    %1141 = vmatpush.msra.mxu0 %v925
    %1142 = vmatmul.f32.gmra.mxu0 %v921
    %v1143 = vpop.f32.mrf.mxu0
    %v1144 = vadd.f32 0.0, %v1143
    %1145 = vdwg.mxu0
    %1146 = vmatpush.msra.mxu0 %v1061
    %1147 = vmatpush.msra.mxu0 %v1052
    %1148 = vmatpush.msra.mxu0 %v1043
    %1149 = vmatpush.msra.mxu0 %v1034
    %1150 = vmatpush.msra.mxu0 %v1025
    %1151 = vmatpush.msra.mxu0 %v1016
    %1152 = vmatpush.msra.mxu0 %v1007
    %1153 = vmatpush.msra.mxu0 %v998
    %1154 = vmatpush.msra.mxu0 %v989
    %1155 = vmatpush.msra.mxu0 %v980
    %1156 = vmatpush.msra.mxu0 %v971
    %1157 = vmatpush.msra.mxu0 %v962
    %1158 = vmatpush.msra.mxu0 %v953
    %1159 = vmatpush.msra.mxu0 %v944
    %1160 = vmatpush.msra.mxu0 %v935
    %1161 = vmatpush.msra.mxu0 %v926
    %1162 = vmatmul.f32.gmra.mxu0 %v921
    %v1163 = vpop.f32.mrf.mxu0
    %v1164 = vadd.f32 0.0, %v1163
    %1165 = vdwg.mxu0
    %1166 = vmatpush.msra.mxu0 %v1062
    %1167 = vmatpush.msra.mxu0 %v1053
    %1168 = vmatpush.msra.mxu0 %v1044
    %1169 = vmatpush.msra.mxu0 %v1035
    %1170 = vmatpush.msra.mxu0 %v1026
    %1171 = vmatpush.msra.mxu0 %v1017
    %1172 = vmatpush.msra.mxu0 %v1008
    %1173 = vmatpush.msra.mxu0 %v999
    %1174 = vmatpush.msra.mxu0 %v990
    %1175 = vmatpush.msra.mxu0 %v981
    %1176 = vmatpush.msra.mxu0 %v972
    %1177 = vmatpush.msra.mxu0 %v963
    %1178 = vmatpush.msra.mxu0 %v954
    %1179 = vmatpush.msra.mxu0 %v945
    %1180 = vmatpush.msra.mxu0 %v936
    %1181 = vmatpush.msra.mxu0 %v927
    %1182 = vmatmul.f32.gmra.mxu0 %v921
    %v1183 = vpop.f32.mrf.mxu0
    %v1184 = vadd.f32 0.0, %v1183
    %1185 = vdwg.mxu0
    %1186 = vmatpush.msra.mxu0 %v1063
    %1187 = vmatpush.msra.mxu0 %v1054
    %1188 = vmatpush.msra.mxu0 %v1045
    %1189 = vmatpush.msra.mxu0 %v1036
    %1190 = vmatpush.msra.mxu0 %v1027
    %1191 = vmatpush.msra.mxu0 %v1018
    %1192 = vmatpush.msra.mxu0 %v1009
    %1193 = vmatpush.msra.mxu0 %v1000
    %1194 = vmatpush.msra.mxu0 %v991
    %1195 = vmatpush.msra.mxu0 %v982
    %1196 = vmatpush.msra.mxu0 %v973
    %1197 = vmatpush.msra.mxu0 %v964
    %1198 = vmatpush.msra.mxu0 %v955
    %1199 = vmatpush.msra.mxu0 %v946
    %1200 = vmatpush.msra.mxu0 %v937
    %1201 = vmatpush.msra.mxu0 %v928
    %1202 = vmatmul.f32.gmra.mxu0 %v921
    %v1203 = vpop.f32.mrf.mxu0
    %v1204 = vadd.f32 0.0, %v1203
    %1205 = vdwg.mxu0
    %1206 = vmatpush.msra.mxu0 %v1064
    %1207 = vmatpush.msra.mxu0 %v1055
    %1208 = vmatpush.msra.mxu0 %v1046
    %1209 = vmatpush.msra.mxu0 %v1037
    %1210 = vmatpush.msra.mxu0 %v1028
    %1211 = vmatpush.msra.mxu0 %v1019
    %1212 = vmatpush.msra.mxu0 %v1010
    %1213 = vmatpush.msra.mxu0 %v1001
    %1214 = vmatpush.msra.mxu0 %v992
    %1215 = vmatpush.msra.mxu0 %v983
    %1216 = vmatpush.msra.mxu0 %v974
    %1217 = vmatpush.msra.mxu0 %v965
    %1218 = vmatpush.msra.mxu0 %v956
    %1219 = vmatpush.msra.mxu0 %v947
    %1220 = vmatpush.msra.mxu0 %v938
    %1221 = vmatpush.msra.mxu0 %v929
    %1222 = vmatmul.f32.gmra.mxu0 %v921
    %v1223 = vpop.f32.mrf.mxu0
    %v1224 = vadd.f32 0.0, %v1223
    %1225 = vdwg.mxu0
    %1226 = vmatpush.msra.mxu0 %v1065
    %1227 = vmatpush.msra.mxu0 %v1056
    %1228 = vmatpush.msra.mxu0 %v1047
    %1229 = vmatpush.msra.mxu0 %v1038
    %1230 = vmatpush.msra.mxu0 %v1029
    %1231 = vmatpush.msra.mxu0 %v1020
    %1232 = vmatpush.msra.mxu0 %v1011
    %1233 = vmatpush.msra.mxu0 %v1002
    %1234 = vmatpush.msra.mxu0 %v993
    %1235 = vmatpush.msra.mxu0 %v984
    %1236 = vmatpush.msra.mxu0 %v975
    %1237 = vmatpush.msra.mxu0 %v966
    %1238 = vmatpush.msra.mxu0 %v957
    %1239 = vmatpush.msra.mxu0 %v948
    %1240 = vmatpush.msra.mxu0 %v939
    %1241 = vmatpush.msra.mxu0 %v930
    %1242 = vmatmul.f32.gmra.mxu0 %v921
    %v1243 = vpop.f32.mrf.mxu0
    %v1244 = vadd.f32 0.0, %v1243
    %1245 = vdwg.mxu0
    %1246 = vst [vmem:[#allocation2] sm:$0xff] %v1084
    %1247 = vst [vmem:[#allocation2 + $0x8] sm:$0xff] %v1104
    %1248 = vst [vmem:[#allocation2 + $0x10] sm:$0xff] %v1124
    %1249 = vst [vmem:[#allocation2 + $0x18] sm:$0xff] %v1144
    %1250 = vst [vmem:[#allocation2 + $0x20] sm:$0xff] %v1164
    %1251 = vst [vmem:[#allocation2 + $0x28] sm:$0xff] %v1184
    %1252 = vst [vmem:[#allocation2 + $0x30] sm:$0xff] %v1204
    %1253 = vst [vmem:[#allocation2 + $0x38] sm:$0xff] %v1224
    %1254 = vst [vmem:[#allocation2 + $0x40] sm:$0xff] %v1244
    %v1255 = vld [vmem:[#allocation2] sm:$0xff]
    %v1256 = vld [vmem:[#allocation2 + $0x8] sm:$0xff]
    %v1257 = vld [vmem:[#allocation2 + $0x10] sm:$0xff]
    %v1258 = vld [vmem:[#allocation2 + $0x18] sm:$0xff]
    %v1259 = vld [vmem:[#allocation2 + $0x20] sm:$0xff]
    %v1260 = vld [vmem:[#allocation2 + $0x28] sm:$0xff]
    %v1261 = vld [vmem:[#allocation2 + $0x30] sm:$0xff]
    %v1262 = vld [vmem:[#allocation2 + $0x38] sm:$0xff]
    %v1263 = vld [vmem:[#allocation2 + $0x40] sm:$0xff]
    %v1265 = vsel %vm519, %v545, 0
    %1267 = vmatpush.msra.mxu0 0.0
    %1268 = vmatpush.msra.mxu0 0.0
    %1269 = vmatpush.msra.mxu0 0.0
    %1270 = vmatpush.msra.mxu0 0.0
    %1271 = vmatpush.msra.mxu0 0.0
    %1272 = vmatpush.msra.mxu0 0.0
    %1273 = vmatpush.msra.mxu0 0.0
    %1274 = vmatpush.msra.mxu0 %v1263
    %1275 = vmatpush.msra.mxu0 %v1262
    %1276 = vmatpush.msra.mxu0 %v1261
    %1277 = vmatpush.msra.mxu0 %v1260
    %1278 = vmatpush.msra.mxu0 %v1259
    %1279 = vmatpush.msra.mxu0 %v1258
    %1280 = vmatpush.msra.mxu0 %v1257
    %1281 = vmatpush.msra.mxu0 %v1256
    %1282 = vmatpush.msra.mxu0 %v1255
    %1283 = vmatmul.f32.gmra.mxu0 %v1265
    %v1284 = vpop.f32.mrf.mxu0
    %v1285 = vadd.f32 0.0, %v1284
    %1286 = vdwg.mxu0
    %v1287 = vmul.f32 %v1285, 0.1
    %v1288 = vadd.f32 %v541, %v1287
    %1289 = vst [vmem:[%s63] sm:$0xff] %v1288
    %v1290 = vld [vmem:[%s7] sm:$0xff]
    %v1291 = vld [vmem:[%s7 + $0x8] sm:$0xff]
    %v1292 = vld [vmem:[%s7 + $0x10] sm:$0xff]
    %v1293 = vld [vmem:[%s7 + $0x18] sm:$0xff]
    %v1294 = vld [vmem:[%s7 + $0x20] sm:$0xff]
    %v1295 = vld [vmem:[%s7 + $0x28] sm:$0xff]
    %v1296 = vld [vmem:[%s7 + $0x30] sm:$0xff]
    %v1297 = vld [vmem:[%s7 + $0x38] sm:$0xff]
    %v1298 = vld [vmem:[%s7 + $0x40] sm:$0xff]
    %v1299 = vld [vmem:[%s7 + $0x48] sm:$0xff]
    %v1300 = vld [vmem:[%s7 + $0x50] sm:$0xff]
    %v1301 = vld [vmem:[%s7 + $0x58] sm:$0xff]
    %v1302 = vld [vmem:[%s7 + $0x60] sm:$0xff]
    %v1303 = vld [vmem:[%s7 + $0x68] sm:$0xff]
    %v1304 = vld [vmem:[%s7 + $0x70] sm:$0xff]
    %v1305 = vld [vmem:[%s7 + $0x78] sm:$0xff]
    %1306 = vmatpush.msra.mxu0 %v1305
    %1307 = vmatpush.msra.mxu0 %v1304
    %1308 = vmatpush.msra.mxu0 %v1303
    %1309 = vmatpush.msra.mxu0 %v1302
    %1310 = vmatpush.msra.mxu0 %v1301
    %1311 = vmatpush.msra.mxu0 %v1300
    %1312 = vmatpush.msra.mxu0 %v1299
    %1313 = vmatpush.msra.mxu0 %v1298
    %1314 = vmatpush.msra.mxu0 %v1297
    %1315 = vmatpush.msra.mxu0 %v1296
    %1316 = vmatpush.msra.mxu0 %v1295
    %1317 = vmatpush.msra.mxu0 %v1294
    %1318 = vmatpush.msra.mxu0 %v1293
    %1319 = vmatpush.msra.mxu0 %v1292
    %1320 = vmatpush.msra.mxu0 %v1291
    %1321 = vmatpush.msra.mxu0 %v1290
    %1322 = vmatmul.f32.gmra.mxu0 %v1288
    %v1323 = vpop.f32.mrf.mxu0
    %v1324 = vadd.f32 0.0, %v1323
    %1325 = vdwg.mxu0
    %v1326 = vsub.f32 %v1288, %v1324
    %v1327 = vmul.f32 %v1326, %v1326
    %1328 = vmatpush.msra.mxu0 %v1305
    %1329 = vmatpush.msra.mxu0 %v1304
    %1330 = vmatpush.msra.mxu0 %v1303
    %1331 = vmatpush.msra.mxu0 %v1302
    %1332 = vmatpush.msra.mxu0 %v1301
    %1333 = vmatpush.msra.mxu0 %v1300
    %1334 = vmatpush.msra.mxu0 %v1299
    %1335 = vmatpush.msra.mxu0 %v1298
    %1336 = vmatpush.msra.mxu0 %v1297
    %1337 = vmatpush.msra.mxu0 %v1296
    %1338 = vmatpush.msra.mxu0 %v1295
    %1339 = vmatpush.msra.mxu0 %v1294
    %1340 = vmatpush.msra.mxu0 %v1293
    %1341 = vmatpush.msra.mxu0 %v1292
    %1342 = vmatpush.msra.mxu0 %v1291
    %1343 = vmatpush.msra.mxu0 %v1290
    %1344 = vmatmul.f32.gmra.mxu0 %v1327
    %v1345 = vpop.f32.mrf.mxu0
    %v1346 = vadd.f32 1e-05, %v1345
    %1347 = vdwg.mxu0
    %v1348 = vrsqrt.pop %v1346
    %v1349 = vmul.f32 %v1348, %v1346
    %v1350 = vmul.f32 %v1349, %v1348
    %v1351 = vmul.f32 0.5, %v1350
    %v1352 = vsub.f32 1.5, %v1351
    %v1353 = vmul.f32 %v1348, %v1352
    %vm1354 = vweird.f32 %v1346
    %vm1355 = vweird.f32 %v1348
    %vm1356 = vmor %vm1354, %vm1355
    %v1357 = vsel %vm1356, %v1348, %v1353
    %v1358 = vmul.f32 %v1326, %v1357
    %v1359 = vld [vmem:[%s19] sm:$0xff]
    %v1360 = vld [vmem:[%s19 + $0x8] sm:$0xff]
    %v1361 = vld [vmem:[%s19 + $0x10] sm:$0xff]
    %v1362 = vld [vmem:[%s19 + $0x18] sm:$0xff]
    %v1363 = vld [vmem:[%s21] sm:$0xff]
    %v1364 = vld [vmem:[%s21 + $0x8] sm:$0xff]
    %v1365 = vld [vmem:[%s21 + $0x10] sm:$0xff]
    %v1366 = vld [vmem:[%s21 + $0x18] sm:$0xff]
    %v1367 = vld [vmem:[%s23] sm:$0xff]
    %vm1368 = vcmp.gt.f32.partialorder %v1358, 0.0
    %v1369 = vmul.f32 %v1358, 0.2
    %v1370 = vsel %vm1368, %v1358, %v1369
    %1372 = vset.pattern.permute.xlu0 0
    %1373 = vperm.xlu0 %1372, %v1363
    %v1374 = vpop.permute.xlu0 %1373
    %1377 = vset.pattern.permute.xlu0 0
    %1378 = vperm.xlu0 %1377, %v1364
    %v1379 = vpop.permute.xlu0 %1378
    %1382 = vset.pattern.permute.xlu0 0
    %1383 = vperm.xlu0 %1382, %v1365
    %v1384 = vpop.permute.xlu0 %1383
    %1387 = vset.pattern.permute.xlu0 0
    %1388 = vperm.xlu0 %1387, %v1366
    %v1389 = vpop.permute.xlu0 %1388
    %vm1391 = vcmask 64512
    %v1393 = vsel %vm1391, %v1359, 0
    %v1396 = vsel %vm1391, %v1360, 0
    %v1399 = vsel %vm1391, %v1361, 0
    %v1402 = vsel %vm1391, %v1362, 0
    %1404 = vmatpush.msra.mxu0 0.0
    %1405 = vmatpush.msra.mxu0 0.0
    %1406 = vmatpush.msra.mxu0 0.0
    %1407 = vmatpush.msra.mxu0 0.0
    %1408 = vmatpush.msra.mxu0 0.0
    %1409 = vmatpush.msra.mxu0 0.0
    %1410 = vmatpush.msra.mxu0 0.0
    %1411 = vmatpush.msra.mxu0 0.0
    %1412 = vmatpush.msra.mxu0 0.0
    %1413 = vmatpush.msra.mxu0 0.0
    %1414 = vmatpush.msra.mxu0 0.0
    %1415 = vmatpush.msra.mxu0 0.0
    %1416 = vmatpush.msra.mxu0 0.0
    %1417 = vmatpush.msra.mxu0 0.0
    %1418 = vmatpush.msra.mxu0 0.0
    %1419 = vmatpush.msra.mxu0 %v1370
    %1420 = vmatmul.f32.gmra.mxu0 %v1393
    %v1421 = vpop.f32.mrf.mxu0
    %v1422 = vadd.f32 %v1374, %v1421
    %1423 = vmatmul.f32.gmra.mxu0 %v1396
    %v1424 = vpop.f32.mrf.mxu0
    %v1425 = vadd.f32 %v1379, %v1424
    %1426 = vmatmul.f32.gmra.mxu0 %v1399
    %v1427 = vpop.f32.mrf.mxu0
    %v1428 = vadd.f32 %v1384, %v1427
    %1429 = vmatmul.f32.gmra.mxu0 %v1402
    %v1430 = vpop.f32.mrf.mxu0
    %v1431 = vadd.f32 %v1389, %v1430
    %1432 = vdwg.mxu0
    %vm1433 = vcmp.gt.f32.partialorder %v1422, 0.0
    %vm1434 = vcmp.gt.f32.partialorder %v1425, 0.0
    %vm1435 = vcmp.gt.f32.partialorder %v1428, 0.0
    %vm1436 = vcmp.gt.f32.partialorder %v1431, 0.0
    %v1437 = vmul.f32 %v1422, 0.2
    %v1438 = vmul.f32 %v1425, 0.2
    %v1439 = vmul.f32 %v1428, 0.2
    %v1440 = vmul.f32 %v1431, 0.2
    %v1441 = vsel %vm1433, %v1422, %v1437
    %v1442 = vsel %vm1434, %v1425, %v1438
    %v1443 = vsel %vm1435, %v1428, %v1439
    %v1444 = vsel %vm1436, %v1431, %v1440
    %vm1445 = vcmask 261120
    %v1447 = vsel %vm1445, %v1367, 0
    %1449 = vmatpush.msra.mxu0 0.0
    %1450 = vmatpush.msra.mxu0 0.0
    %1451 = vmatpush.msra.mxu0 0.0
    %1452 = vmatpush.msra.mxu0 0.0
    %1453 = vmatpush.msra.mxu0 0.0
    %1454 = vmatpush.msra.mxu0 0.0
    %1455 = vmatpush.msra.mxu0 0.0
    %1456 = vmatpush.msra.mxu0 0.0
    %1457 = vmatpush.msra.mxu0 0.0
    %1458 = vmatpush.msra.mxu0 0.0
    %1459 = vmatpush.msra.mxu0 0.0
    %1460 = vmatpush.msra.mxu0 0.0
    %1461 = vmatpush.msra.mxu0 %v1444
    %1462 = vmatpush.msra.mxu0 %v1443
    %1463 = vmatpush.msra.mxu0 %v1442
    %1464 = vmatpush.msra.mxu0 %v1441
    %1465 = vmatmul.f32.gmra.mxu0 %v1447
    %v1466 = vpop.f32.mrf.mxu0
    %v1467 = vadd.f32 0.0, %v1466
    %1468 = vdwg.mxu0
    %v1469 = vmul.f32 %v1467, 0.1
    %v1470 = vadd.f32 %v1358, %v1469
    %v1471 = vld [vmem:[%s25] sm:$0xff]
    %v1472 = vld [vmem:[%s27] sm:$0xff]
    %v1473 = vld [vmem:[%s29] sm:$0xff]
    %vm1474 = vcmp.gt.f32.partialorder %v1470, 0.0
    %v1475 = vmul.f32 %v1470, 0.2
    %v1476 = vsel %vm1474, %v1470, %v1475
    %v1477 = vld [vmem:[#allocation4] sm:$0xff]
    %v1478 = vld [vmem:[#allocation4 + $0x8] sm:$0xff]
    %v1479 = vld [vmem:[#allocation4 + $0x10] sm:$0xff]
    %v1480 = vld [vmem:[#allocation4 + $0x18] sm:$0xff]
    %v1481 = vld [vmem:[#allocation4 + $0x20] sm:$0xff]
    %v1482 = vld [vmem:[#allocation4 + $0x28] sm:$0xff]
    %v1483 = vld [vmem:[#allocation4 + $0x30] sm:$0xff]
    %v1484 = vld [vmem:[#allocation4 + $0x38] sm:$0xff]
    %v1485 = vld [vmem:[#allocation4 + $0x40] sm:$0xff]
    %v1486 = vld [vmem:[#allocation4 + $0x48] sm:$0xff]
    %v1487 = vld [vmem:[#allocation4 + $0x50] sm:$0xff]
    %v1488 = vld [vmem:[#allocation4 + $0x58] sm:$0xff]
    %v1489 = vld [vmem:[#allocation4 + $0x60] sm:$0xff]
    %v1490 = vld [vmem:[#allocation4 + $0x68] sm:$0xff]
    %v1491 = vld [vmem:[#allocation4 + $0x70] sm:$0xff]
    %v1492 = vld [vmem:[#allocation4 + $0x78] sm:$0xff]
    %v1493 = vld [vmem:[#allocation4 + $0x80] sm:$0xff]
    %v1494 = vld [vmem:[#allocation4 + $0x88] sm:$0xff]
    %v1495 = vld [vmem:[#allocation4 + $0x90] sm:$0xff]
    %v1496 = vld [vmem:[#allocation4 + $0x98] sm:$0xff]
    %v1497 = vld [vmem:[#allocation4 + $0xa0] sm:$0xff]
    %v1498 = vld [vmem:[#allocation4 + $0xa8] sm:$0xff]
    %v1499 = vld [vmem:[#allocation4 + $0xb0] sm:$0xff]
    %v1500 = vld [vmem:[#allocation4 + $0xb8] sm:$0xff]
    %v1501 = vld [vmem:[#allocation4 + $0xc0] sm:$0xff]
    %v1502 = vld [vmem:[#allocation4 + $0xc8] sm:$0xff]
    %v1503 = vld [vmem:[#allocation4 + $0xd0] sm:$0xff]
    %v1504 = vld [vmem:[#allocation4 + $0xd8] sm:$0xff]
    %v1505 = vld [vmem:[#allocation4 + $0xe0] sm:$0xff]
    %v1506 = vld [vmem:[#allocation4 + $0xe8] sm:$0xff]
    %v1507 = vld [vmem:[#allocation4 + $0xf0] sm:$0xff]
    %v1508 = vld [vmem:[#allocation4 + $0xf8] sm:$0xff]
    %v1509 = vld [vmem:[#allocation4 + $0x100] sm:$0xff]
    %v1510 = vld [vmem:[#allocation4 + $0x108] sm:$0xff]
    %v1511 = vld [vmem:[#allocation4 + $0x110] sm:$0xff]
    %v1512 = vld [vmem:[#allocation4 + $0x118] sm:$0xff]
    %v1513 = vld [vmem:[#allocation4 + $0x120] sm:$0xff]
    %v1514 = vld [vmem:[#allocation4 + $0x128] sm:$0xff]
    %v1515 = vld [vmem:[#allocation4 + $0x130] sm:$0xff]
    %v1516 = vld [vmem:[#allocation4 + $0x138] sm:$0xff]
    %v1517 = vld [vmem:[#allocation4 + $0x140] sm:$0xff]
    %v1518 = vld [vmem:[#allocation4 + $0x148] sm:$0xff]
    %v1519 = vld [vmem:[#allocation4 + $0x150] sm:$0xff]
    %v1520 = vld [vmem:[#allocation4 + $0x158] sm:$0xff]
    %v1521 = vld [vmem:[#allocation4 + $0x160] sm:$0xff]
    %v1522 = vld [vmem:[#allocation4 + $0x168] sm:$0xff]
    %v1523 = vld [vmem:[#allocation4 + $0x170] sm:$0xff]
    %v1524 = vld [vmem:[#allocation4 + $0x178] sm:$0xff]
    %v1525 = vld [vmem:[#allocation4 + $0x180] sm:$0xff]
    %v1526 = vld [vmem:[#allocation4 + $0x188] sm:$0xff]
    %v1527 = vld [vmem:[#allocation4 + $0x190] sm:$0xff]
    %v1528 = vld [vmem:[#allocation4 + $0x198] sm:$0xff]
    %v1529 = vld [vmem:[#allocation4 + $0x1a0] sm:$0xff]
    %v1530 = vld [vmem:[#allocation4 + $0x1a8] sm:$0xff]
    %v1531 = vld [vmem:[#allocation4 + $0x1b0] sm:$0xff]
    %v1532 = vld [vmem:[#allocation4 + $0x1b8] sm:$0xff]
    %v1533 = vld [vmem:[#allocation4 + $0x1c0] sm:$0xff]
    %v1534 = vld [vmem:[#allocation4 + $0x1c8] sm:$0xff]
    %v1535 = vld [vmem:[#allocation4 + $0x1d0] sm:$0xff]
    %v1536 = vld [vmem:[#allocation4 + $0x1d8] sm:$0xff]
    %v1537 = vld [vmem:[#allocation4 + $0x1e0] sm:$0xff]
    %v1538 = vld [vmem:[#allocation4 + $0x1e8] sm:$0xff]
    %v1539 = vld [vmem:[#allocation4 + $0x1f0] sm:$0xff]
    %v1540 = vld [vmem:[#allocation4 + $0x1f8] sm:$0xff]
    %v1541 = vld [vmem:[#allocation4 + $0x200] sm:$0xff]
    %v1542 = vld [vmem:[#allocation4 + $0x208] sm:$0xff]
    %v1543 = vld [vmem:[#allocation4 + $0x210] sm:$0xff]
    %v1544 = vld [vmem:[#allocation4 + $0x218] sm:$0xff]
    %v1545 = vld [vmem:[#allocation4 + $0x220] sm:$0xff]
    %v1546 = vld [vmem:[#allocation4 + $0x228] sm:$0xff]
    %v1547 = vld [vmem:[#allocation4 + $0x230] sm:$0xff]
    %v1548 = vld [vmem:[#allocation4 + $0x238] sm:$0xff]
    %v1549 = vld [vmem:[#allocation4 + $0x240] sm:$0xff]
    %v1550 = vld [vmem:[#allocation4 + $0x248] sm:$0xff]
    %v1551 = vld [vmem:[#allocation4 + $0x250] sm:$0xff]
    %v1552 = vld [vmem:[#allocation4 + $0x258] sm:$0xff]
    %v1553 = vld [vmem:[#allocation4 + $0x260] sm:$0xff]
    %v1554 = vld [vmem:[#allocation4 + $0x268] sm:$0xff]
    %v1555 = vld [vmem:[#allocation4 + $0x270] sm:$0xff]
    %v1556 = vld [vmem:[#allocation4 + $0x278] sm:$0xff]
    %v1557 = vld [vmem:[#allocation4 + $0x280] sm:$0xff]
    %v1558 = vld [vmem:[#allocation4 + $0x288] sm:$0xff]
    %v1559 = vld [vmem:[#allocation4 + $0x290] sm:$0xff]
    %v1560 = vld [vmem:[#allocation4 + $0x298] sm:$0xff]
    %v1561 = vld [vmem:[#allocation4 + $0x2a0] sm:$0xff]
    %v1562 = vld [vmem:[#allocation4 + $0x2a8] sm:$0xff]
    %v1563 = vld [vmem:[#allocation4 + $0x2b0] sm:$0xff]
    %v1564 = vld [vmem:[#allocation4 + $0x2b8] sm:$0xff]
    %v1565 = vld [vmem:[#allocation4 + $0x2c0] sm:$0xff]
    %v1566 = vld [vmem:[#allocation4 + $0x2c8] sm:$0xff]
    %v1567 = vld [vmem:[#allocation4 + $0x2d0] sm:$0xff]
    %v1568 = vld [vmem:[#allocation4 + $0x2d8] sm:$0xff]
    %v1569 = vld [vmem:[#allocation4 + $0x2e0] sm:$0xff]
    %v1570 = vld [vmem:[#allocation4 + $0x2e8] sm:$0xff]
    %v1571 = vld [vmem:[#allocation4 + $0x2f0] sm:$0xff]
    %v1572 = vld [vmem:[#allocation4 + $0x2f8] sm:$0xff]
    %v1573 = vld [vmem:[#allocation4 + $0x300] sm:$0xff]
    %v1574 = vld [vmem:[#allocation4 + $0x308] sm:$0xff]
    %v1575 = vld [vmem:[#allocation4 + $0x310] sm:$0xff]
    %v1576 = vld [vmem:[#allocation4 + $0x318] sm:$0xff]
    %v1577 = vld [vmem:[#allocation4 + $0x320] sm:$0xff]
    %v1578 = vld [vmem:[#allocation4 + $0x328] sm:$0xff]
    %v1579 = vld [vmem:[#allocation4 + $0x330] sm:$0xff]
    %v1580 = vld [vmem:[#allocation4 + $0x338] sm:$0xff]
    %v1581 = vld [vmem:[#allocation4 + $0x340] sm:$0xff]
    %v1582 = vld [vmem:[#allocation4 + $0x348] sm:$0xff]
    %v1583 = vld [vmem:[#allocation4 + $0x350] sm:$0xff]
    %v1584 = vld [vmem:[#allocation4 + $0x358] sm:$0xff]
    %v1585 = vld [vmem:[#allocation4 + $0x360] sm:$0xff]
    %v1586 = vld [vmem:[#allocation4 + $0x368] sm:$0xff]
    %v1587 = vld [vmem:[#allocation4 + $0x370] sm:$0xff]
    %v1588 = vld [vmem:[#allocation4 + $0x378] sm:$0xff]
    %v1589 = vld [vmem:[#allocation4 + $0x380] sm:$0xff]
    %v1590 = vld [vmem:[#allocation4 + $0x388] sm:$0xff]
    %v1591 = vld [vmem:[#allocation4 + $0x390] sm:$0xff]
    %v1592 = vld [vmem:[#allocation4 + $0x398] sm:$0xff]
    %v1593 = vld [vmem:[#allocation4 + $0x3a0] sm:$0xff]
    %v1594 = vld [vmem:[#allocation4 + $0x3a8] sm:$0xff]
    %v1595 = vld [vmem:[#allocation4 + $0x3b0] sm:$0xff]
    %v1596 = vld [vmem:[#allocation4 + $0x3b8] sm:$0xff]
    %v1597 = vld [vmem:[#allocation4 + $0x3c0] sm:$0xff]
    %v1598 = vld [vmem:[#allocation4 + $0x3c8] sm:$0xff]
    %v1599 = vld [vmem:[#allocation4 + $0x3d0] sm:$0xff]
    %v1600 = vld [vmem:[#allocation4 + $0x3d8] sm:$0xff]
    %v1601 = vld [vmem:[#allocation4 + $0x3e0] sm:$0xff]
    %v1602 = vld [vmem:[#allocation4 + $0x3e8] sm:$0xff]
    %v1603 = vld [vmem:[#allocation4 + $0x3f0] sm:$0xff]
    %v1604 = vld [vmem:[#allocation4 + $0x3f8] sm:$0xff]
    %v1605 = vld [vmem:[#allocation4 + $0x400] sm:$0xff]
    %v1606 = vld [vmem:[#allocation4 + $0x408] sm:$0xff]
    %v1607 = vld [vmem:[#allocation4 + $0x410] sm:$0xff]
    %v1608 = vld [vmem:[#allocation4 + $0x418] sm:$0xff]
    %v1609 = vld [vmem:[#allocation4 + $0x420] sm:$0xff]
    %v1610 = vld [vmem:[#allocation4 + $0x428] sm:$0xff]
    %v1611 = vld [vmem:[#allocation4 + $0x430] sm:$0xff]
    %v1612 = vld [vmem:[#allocation4 + $0x438] sm:$0xff]
    %v1613 = vld [vmem:[#allocation4 + $0x440] sm:$0xff]
    %v1614 = vld [vmem:[#allocation4 + $0x448] sm:$0xff]
    %v1615 = vld [vmem:[#allocation4 + $0x450] sm:$0xff]
    %v1616 = vld [vmem:[#allocation4 + $0x458] sm:$0xff]
    %v1617 = vld [vmem:[#allocation4 + $0x460] sm:$0xff]
    %v1618 = vld [vmem:[#allocation4 + $0x468] sm:$0xff]
    %v1619 = vld [vmem:[#allocation4 + $0x470] sm:$0xff]
    %v1620 = vld [vmem:[#allocation4 + $0x478] sm:$0xff]
    %1621 = vmatpush.msra.mxu0 %v1612
    %1622 = vmatpush.msra.mxu0 %v1603
    %1623 = vmatpush.msra.mxu0 %v1594
    %1624 = vmatpush.msra.mxu0 %v1585
    %1625 = vmatpush.msra.mxu0 %v1576
    %1626 = vmatpush.msra.mxu0 %v1567
    %1627 = vmatpush.msra.mxu0 %v1558
    %1628 = vmatpush.msra.mxu0 %v1549
    %1629 = vmatpush.msra.mxu0 %v1540
    %1630 = vmatpush.msra.mxu0 %v1531
    %1631 = vmatpush.msra.mxu0 %v1522
    %1632 = vmatpush.msra.mxu0 %v1513
    %1633 = vmatpush.msra.mxu0 %v1504
    %1634 = vmatpush.msra.mxu0 %v1495
    %1635 = vmatpush.msra.mxu0 %v1486
    %1636 = vmatpush.msra.mxu0 %v1477
    %1637 = vmatmul.f32.gmra.mxu0 %v1476
    %v1638 = vpop.f32.mrf.mxu0
    %v1639 = vadd.f32 0.0, %v1638
    %1640 = vdwg.mxu0
    %1641 = vmatpush.msra.mxu0 %v1613
    %1642 = vmatpush.msra.mxu0 %v1604
    %1643 = vmatpush.msra.mxu0 %v1595
    %1644 = vmatpush.msra.mxu0 %v1586
    %1645 = vmatpush.msra.mxu0 %v1577
    %1646 = vmatpush.msra.mxu0 %v1568
    %1647 = vmatpush.msra.mxu0 %v1559
    %1648 = vmatpush.msra.mxu0 %v1550
    %1649 = vmatpush.msra.mxu0 %v1541
    %1650 = vmatpush.msra.mxu0 %v1532
    %1651 = vmatpush.msra.mxu0 %v1523
    %1652 = vmatpush.msra.mxu0 %v1514
    %1653 = vmatpush.msra.mxu0 %v1505
    %1654 = vmatpush.msra.mxu0 %v1496
    %1655 = vmatpush.msra.mxu0 %v1487
    %1656 = vmatpush.msra.mxu0 %v1478
    %1657 = vmatmul.f32.gmra.mxu0 %v1476
    %v1658 = vpop.f32.mrf.mxu0
    %v1659 = vadd.f32 0.0, %v1658
    %1660 = vdwg.mxu0
    %1661 = vmatpush.msra.mxu0 %v1614
    %1662 = vmatpush.msra.mxu0 %v1605
    %1663 = vmatpush.msra.mxu0 %v1596
    %1664 = vmatpush.msra.mxu0 %v1587
    %1665 = vmatpush.msra.mxu0 %v1578
    %1666 = vmatpush.msra.mxu0 %v1569
    %1667 = vmatpush.msra.mxu0 %v1560
    %1668 = vmatpush.msra.mxu0 %v1551
    %1669 = vmatpush.msra.mxu0 %v1542
    %1670 = vmatpush.msra.mxu0 %v1533
    %1671 = vmatpush.msra.mxu0 %v1524
    %1672 = vmatpush.msra.mxu0 %v1515
    %1673 = vmatpush.msra.mxu0 %v1506
    %1674 = vmatpush.msra.mxu0 %v1497
    %1675 = vmatpush.msra.mxu0 %v1488
    %1676 = vmatpush.msra.mxu0 %v1479
    %1677 = vmatmul.f32.gmra.mxu0 %v1476
    %v1678 = vpop.f32.mrf.mxu0
    %v1679 = vadd.f32 0.0, %v1678
    %1680 = vdwg.mxu0
    %1681 = vmatpush.msra.mxu0 %v1615
    %1682 = vmatpush.msra.mxu0 %v1606
    %1683 = vmatpush.msra.mxu0 %v1597
    %1684 = vmatpush.msra.mxu0 %v1588
    %1685 = vmatpush.msra.mxu0 %v1579
    %1686 = vmatpush.msra.mxu0 %v1570
    %1687 = vmatpush.msra.mxu0 %v1561
    %1688 = vmatpush.msra.mxu0 %v1552
    %1689 = vmatpush.msra.mxu0 %v1543
    %1690 = vmatpush.msra.mxu0 %v1534
    %1691 = vmatpush.msra.mxu0 %v1525
    %1692 = vmatpush.msra.mxu0 %v1516
    %1693 = vmatpush.msra.mxu0 %v1507
    %1694 = vmatpush.msra.mxu0 %v1498
    %1695 = vmatpush.msra.mxu0 %v1489
    %1696 = vmatpush.msra.mxu0 %v1480
    %1697 = vmatmul.f32.gmra.mxu0 %v1476
    %v1698 = vpop.f32.mrf.mxu0
    %v1699 = vadd.f32 0.0, %v1698
    %1700 = vdwg.mxu0
    %1701 = vmatpush.msra.mxu0 %v1616
    %1702 = vmatpush.msra.mxu0 %v1607
    %1703 = vmatpush.msra.mxu0 %v1598
    %1704 = vmatpush.msra.mxu0 %v1589
    %1705 = vmatpush.msra.mxu0 %v1580
    %1706 = vmatpush.msra.mxu0 %v1571
    %1707 = vmatpush.msra.mxu0 %v1562
    %1708 = vmatpush.msra.mxu0 %v1553
    %1709 = vmatpush.msra.mxu0 %v1544
    %1710 = vmatpush.msra.mxu0 %v1535
    %1711 = vmatpush.msra.mxu0 %v1526
    %1712 = vmatpush.msra.mxu0 %v1517
    %1713 = vmatpush.msra.mxu0 %v1508
    %1714 = vmatpush.msra.mxu0 %v1499
    %1715 = vmatpush.msra.mxu0 %v1490
    %1716 = vmatpush.msra.mxu0 %v1481
    %1717 = vmatmul.f32.gmra.mxu0 %v1476
    %v1718 = vpop.f32.mrf.mxu0
    %v1719 = vadd.f32 0.0, %v1718
    %1720 = vdwg.mxu0
    %1721 = vmatpush.msra.mxu0 %v1617
    %1722 = vmatpush.msra.mxu0 %v1608
    %1723 = vmatpush.msra.mxu0 %v1599
    %1724 = vmatpush.msra.mxu0 %v1590
    %1725 = vmatpush.msra.mxu0 %v1581
    %1726 = vmatpush.msra.mxu0 %v1572
    %1727 = vmatpush.msra.mxu0 %v1563
    %1728 = vmatpush.msra.mxu0 %v1554
    %1729 = vmatpush.msra.mxu0 %v1545
    %1730 = vmatpush.msra.mxu0 %v1536
    %1731 = vmatpush.msra.mxu0 %v1527
    %1732 = vmatpush.msra.mxu0 %v1518
    %1733 = vmatpush.msra.mxu0 %v1509
    %1734 = vmatpush.msra.mxu0 %v1500
    %1735 = vmatpush.msra.mxu0 %v1491
    %1736 = vmatpush.msra.mxu0 %v1482
    %1737 = vmatmul.f32.gmra.mxu0 %v1476
    %v1738 = vpop.f32.mrf.mxu0
    %v1739 = vadd.f32 0.0, %v1738
    %1740 = vdwg.mxu0
    %1741 = vmatpush.msra.mxu0 %v1618
    %1742 = vmatpush.msra.mxu0 %v1609
    %1743 = vmatpush.msra.mxu0 %v1600
    %1744 = vmatpush.msra.mxu0 %v1591
    %1745 = vmatpush.msra.mxu0 %v1582
    %1746 = vmatpush.msra.mxu0 %v1573
    %1747 = vmatpush.msra.mxu0 %v1564
    %1748 = vmatpush.msra.mxu0 %v1555
    %1749 = vmatpush.msra.mxu0 %v1546
    %1750 = vmatpush.msra.mxu0 %v1537
    %1751 = vmatpush.msra.mxu0 %v1528
    %1752 = vmatpush.msra.mxu0 %v1519
    %1753 = vmatpush.msra.mxu0 %v1510
    %1754 = vmatpush.msra.mxu0 %v1501
    %1755 = vmatpush.msra.mxu0 %v1492
    %1756 = vmatpush.msra.mxu0 %v1483
    %1757 = vmatmul.f32.gmra.mxu0 %v1476
    %v1758 = vpop.f32.mrf.mxu0
    %v1759 = vadd.f32 0.0, %v1758
    %1760 = vdwg.mxu0
    %1761 = vmatpush.msra.mxu0 %v1619
    %1762 = vmatpush.msra.mxu0 %v1610
    %1763 = vmatpush.msra.mxu0 %v1601
    %1764 = vmatpush.msra.mxu0 %v1592
    %1765 = vmatpush.msra.mxu0 %v1583
    %1766 = vmatpush.msra.mxu0 %v1574
    %1767 = vmatpush.msra.mxu0 %v1565
    %1768 = vmatpush.msra.mxu0 %v1556
    %1769 = vmatpush.msra.mxu0 %v1547
    %1770 = vmatpush.msra.mxu0 %v1538
    %1771 = vmatpush.msra.mxu0 %v1529
    %1772 = vmatpush.msra.mxu0 %v1520
    %1773 = vmatpush.msra.mxu0 %v1511
    %1774 = vmatpush.msra.mxu0 %v1502
    %1775 = vmatpush.msra.mxu0 %v1493
    %1776 = vmatpush.msra.mxu0 %v1484
    %1777 = vmatmul.f32.gmra.mxu0 %v1476
    %v1778 = vpop.f32.mrf.mxu0
    %v1779 = vadd.f32 0.0, %v1778
    %1780 = vdwg.mxu0
    %1781 = vmatpush.msra.mxu0 %v1620
    %1782 = vmatpush.msra.mxu0 %v1611
    %1783 = vmatpush.msra.mxu0 %v1602
    %1784 = vmatpush.msra.mxu0 %v1593
    %1785 = vmatpush.msra.mxu0 %v1584
    %1786 = vmatpush.msra.mxu0 %v1575
    %1787 = vmatpush.msra.mxu0 %v1566
    %1788 = vmatpush.msra.mxu0 %v1557
    %1789 = vmatpush.msra.mxu0 %v1548
    %1790 = vmatpush.msra.mxu0 %v1539
    %1791 = vmatpush.msra.mxu0 %v1530
    %1792 = vmatpush.msra.mxu0 %v1521
    %1793 = vmatpush.msra.mxu0 %v1512
    %1794 = vmatpush.msra.mxu0 %v1503
    %1795 = vmatpush.msra.mxu0 %v1494
    %1796 = vmatpush.msra.mxu0 %v1485
    %1797 = vmatmul.f32.gmra.mxu0 %v1476
    %v1798 = vpop.f32.mrf.mxu0
    %v1799 = vadd.f32 0.0, %v1798
    %1800 = vdwg.mxu0
    %1801 = vst [vmem:[#allocation2] sm:$0xff] %v1639
    %1802 = vst [vmem:[#allocation2 + $0x8] sm:$0xff] %v1659
    %1803 = vst [vmem:[#allocation2 + $0x10] sm:$0xff] %v1679
    %1804 = vst [vmem:[#allocation2 + $0x18] sm:$0xff] %v1699
    %1805 = vst [vmem:[#allocation2 + $0x20] sm:$0xff] %v1719
    %1806 = vst [vmem:[#allocation2 + $0x28] sm:$0xff] %v1739
    %1807 = vst [vmem:[#allocation2 + $0x30] sm:$0xff] %v1759
    %1808 = vst [vmem:[#allocation2 + $0x38] sm:$0xff] %v1779
    %1809 = vst [vmem:[#allocation2 + $0x40] sm:$0xff] %v1799
    %v1810 = vld [vmem:[#allocation2] sm:$0xff]
    %v1811 = vld [vmem:[#allocation2 + $0x8] sm:$0xff]
    %v1812 = vld [vmem:[#allocation2 + $0x10] sm:$0xff]
    %v1813 = vld [vmem:[#allocation2 + $0x18] sm:$0xff]
    %v1814 = vld [vmem:[#allocation2 + $0x20] sm:$0xff]
    %v1815 = vld [vmem:[#allocation2 + $0x28] sm:$0xff]
    %v1816 = vld [vmem:[#allocation2 + $0x30] sm:$0xff]
    %v1817 = vld [vmem:[#allocation2 + $0x38] sm:$0xff]
    %v1818 = vld [vmem:[#allocation2 + $0x40] sm:$0xff]
    %1820 = vset.pattern.permute.xlu0 0
    %1821 = vperm.xlu0 %1820, %v1472
    %v1822 = vpop.permute.xlu0 %1821
    %v1825 = vsel %vm519, %v1471, 0
    %1827 = vmatpush.msra.mxu0 0.0
    %1828 = vmatpush.msra.mxu0 0.0
    %1829 = vmatpush.msra.mxu0 0.0
    %1830 = vmatpush.msra.mxu0 0.0
    %1831 = vmatpush.msra.mxu0 0.0
    %1832 = vmatpush.msra.mxu0 0.0
    %1833 = vmatpush.msra.mxu0 0.0
    %1834 = vmatpush.msra.mxu0 %v1818
    %1835 = vmatpush.msra.mxu0 %v1817
    %1836 = vmatpush.msra.mxu0 %v1816
    %1837 = vmatpush.msra.mxu0 %v1815
    %1838 = vmatpush.msra.mxu0 %v1814
    %1839 = vmatpush.msra.mxu0 %v1813
    %1840 = vmatpush.msra.mxu0 %v1812
    %1841 = vmatpush.msra.mxu0 %v1811
    %1842 = vmatpush.msra.mxu0 %v1810
    %1843 = vmatmul.f32.gmra.mxu0 %v1825
    %v1844 = vpop.f32.mrf.mxu0
    %v1845 = vadd.f32 %v1822, %v1844
    %1846 = vdwg.mxu0
    %vm1847 = vcmp.gt.f32.partialorder %v1845, 0.0
    %v1848 = vmul.f32 %v1845, 0.2
    %v1849 = vsel %vm1847, %v1845, %v1848
    %v1850 = vld [vmem:[#allocation4] sm:$0xff]
    %v1851 = vld [vmem:[#allocation4 + $0x8] sm:$0xff]
    %v1852 = vld [vmem:[#allocation4 + $0x10] sm:$0xff]
    %v1853 = vld [vmem:[#allocation4 + $0x18] sm:$0xff]
    %v1854 = vld [vmem:[#allocation4 + $0x20] sm:$0xff]
    %v1855 = vld [vmem:[#allocation4 + $0x28] sm:$0xff]
    %v1856 = vld [vmem:[#allocation4 + $0x30] sm:$0xff]
    %v1857 = vld [vmem:[#allocation4 + $0x38] sm:$0xff]
    %v1858 = vld [vmem:[#allocation4 + $0x40] sm:$0xff]
    %v1859 = vld [vmem:[#allocation4 + $0x48] sm:$0xff]
    %v1860 = vld [vmem:[#allocation4 + $0x50] sm:$0xff]
    %v1861 = vld [vmem:[#allocation4 + $0x58] sm:$0xff]
    %v1862 = vld [vmem:[#allocation4 + $0x60] sm:$0xff]
    %v1863 = vld [vmem:[#allocation4 + $0x68] sm:$0xff]
    %v1864 = vld [vmem:[#allocation4 + $0x70] sm:$0xff]
    %v1865 = vld [vmem:[#allocation4 + $0x78] sm:$0xff]
    %v1866 = vld [vmem:[#allocation4 + $0x80] sm:$0xff]
    %v1867 = vld [vmem:[#allocation4 + $0x88] sm:$0xff]
    %v1868 = vld [vmem:[#allocation4 + $0x90] sm:$0xff]
    %v1869 = vld [vmem:[#allocation4 + $0x98] sm:$0xff]
    %v1870 = vld [vmem:[#allocation4 + $0xa0] sm:$0xff]
    %v1871 = vld [vmem:[#allocation4 + $0xa8] sm:$0xff]
    %v1872 = vld [vmem:[#allocation4 + $0xb0] sm:$0xff]
    %v1873 = vld [vmem:[#allocation4 + $0xb8] sm:$0xff]
    %v1874 = vld [vmem:[#allocation4 + $0xc0] sm:$0xff]
    %v1875 = vld [vmem:[#allocation4 + $0xc8] sm:$0xff]
    %v1876 = vld [vmem:[#allocation4 + $0xd0] sm:$0xff]
    %v1877 = vld [vmem:[#allocation4 + $0xd8] sm:$0xff]
    %v1878 = vld [vmem:[#allocation4 + $0xe0] sm:$0xff]
    %v1879 = vld [vmem:[#allocation4 + $0xe8] sm:$0xff]
    %v1880 = vld [vmem:[#allocation4 + $0xf0] sm:$0xff]
    %v1881 = vld [vmem:[#allocation4 + $0xf8] sm:$0xff]
    %v1882 = vld [vmem:[#allocation4 + $0x100] sm:$0xff]
    %v1883 = vld [vmem:[#allocation4 + $0x108] sm:$0xff]
    %v1884 = vld [vmem:[#allocation4 + $0x110] sm:$0xff]
    %v1885 = vld [vmem:[#allocation4 + $0x118] sm:$0xff]
    %v1886 = vld [vmem:[#allocation4 + $0x120] sm:$0xff]
    %v1887 = vld [vmem:[#allocation4 + $0x128] sm:$0xff]
    %v1888 = vld [vmem:[#allocation4 + $0x130] sm:$0xff]
    %v1889 = vld [vmem:[#allocation4 + $0x138] sm:$0xff]
    %v1890 = vld [vmem:[#allocation4 + $0x140] sm:$0xff]
    %v1891 = vld [vmem:[#allocation4 + $0x148] sm:$0xff]
    %v1892 = vld [vmem:[#allocation4 + $0x150] sm:$0xff]
    %v1893 = vld [vmem:[#allocation4 + $0x158] sm:$0xff]
    %v1894 = vld [vmem:[#allocation4 + $0x160] sm:$0xff]
    %v1895 = vld [vmem:[#allocation4 + $0x168] sm:$0xff]
    %v1896 = vld [vmem:[#allocation4 + $0x170] sm:$0xff]
    %v1897 = vld [vmem:[#allocation4 + $0x178] sm:$0xff]
    %v1898 = vld [vmem:[#allocation4 + $0x180] sm:$0xff]
    %v1899 = vld [vmem:[#allocation4 + $0x188] sm:$0xff]
    %v1900 = vld [vmem:[#allocation4 + $0x190] sm:$0xff]
    %v1901 = vld [vmem:[#allocation4 + $0x198] sm:$0xff]
    %v1902 = vld [vmem:[#allocation4 + $0x1a0] sm:$0xff]
    %v1903 = vld [vmem:[#allocation4 + $0x1a8] sm:$0xff]
    %v1904 = vld [vmem:[#allocation4 + $0x1b0] sm:$0xff]
    %v1905 = vld [vmem:[#allocation4 + $0x1b8] sm:$0xff]
    %v1906 = vld [vmem:[#allocation4 + $0x1c0] sm:$0xff]
    %v1907 = vld [vmem:[#allocation4 + $0x1c8] sm:$0xff]
    %v1908 = vld [vmem:[#allocation4 + $0x1d0] sm:$0xff]
    %v1909 = vld [vmem:[#allocation4 + $0x1d8] sm:$0xff]
    %v1910 = vld [vmem:[#allocation4 + $0x1e0] sm:$0xff]
    %v1911 = vld [vmem:[#allocation4 + $0x1e8] sm:$0xff]
    %v1912 = vld [vmem:[#allocation4 + $0x1f0] sm:$0xff]
    %v1913 = vld [vmem:[#allocation4 + $0x1f8] sm:$0xff]
    %v1914 = vld [vmem:[#allocation4 + $0x200] sm:$0xff]
    %v1915 = vld [vmem:[#allocation4 + $0x208] sm:$0xff]
    %v1916 = vld [vmem:[#allocation4 + $0x210] sm:$0xff]
    %v1917 = vld [vmem:[#allocation4 + $0x218] sm:$0xff]
    %v1918 = vld [vmem:[#allocation4 + $0x220] sm:$0xff]
    %v1919 = vld [vmem:[#allocation4 + $0x228] sm:$0xff]
    %v1920 = vld [vmem:[#allocation4 + $0x230] sm:$0xff]
    %v1921 = vld [vmem:[#allocation4 + $0x238] sm:$0xff]
    %v1922 = vld [vmem:[#allocation4 + $0x240] sm:$0xff]
    %v1923 = vld [vmem:[#allocation4 + $0x248] sm:$0xff]
    %v1924 = vld [vmem:[#allocation4 + $0x250] sm:$0xff]
    %v1925 = vld [vmem:[#allocation4 + $0x258] sm:$0xff]
    %v1926 = vld [vmem:[#allocation4 + $0x260] sm:$0xff]
    %v1927 = vld [vmem:[#allocation4 + $0x268] sm:$0xff]
    %v1928 = vld [vmem:[#allocation4 + $0x270] sm:$0xff]
    %v1929 = vld [vmem:[#allocation4 + $0x278] sm:$0xff]
    %v1930 = vld [vmem:[#allocation4 + $0x280] sm:$0xff]
    %v1931 = vld [vmem:[#allocation4 + $0x288] sm:$0xff]
    %v1932 = vld [vmem:[#allocation4 + $0x290] sm:$0xff]
    %v1933 = vld [vmem:[#allocation4 + $0x298] sm:$0xff]
    %v1934 = vld [vmem:[#allocation4 + $0x2a0] sm:$0xff]
    %v1935 = vld [vmem:[#allocation4 + $0x2a8] sm:$0xff]
    %v1936 = vld [vmem:[#allocation4 + $0x2b0] sm:$0xff]
    %v1937 = vld [vmem:[#allocation4 + $0x2b8] sm:$0xff]
    %v1938 = vld [vmem:[#allocation4 + $0x2c0] sm:$0xff]
    %v1939 = vld [vmem:[#allocation4 + $0x2c8] sm:$0xff]
    %v1940 = vld [vmem:[#allocation4 + $0x2d0] sm:$0xff]
    %v1941 = vld [vmem:[#allocation4 + $0x2d8] sm:$0xff]
    %v1942 = vld [vmem:[#allocation4 + $0x2e0] sm:$0xff]
    %v1943 = vld [vmem:[#allocation4 + $0x2e8] sm:$0xff]
    %v1944 = vld [vmem:[#allocation4 + $0x2f0] sm:$0xff]
    %v1945 = vld [vmem:[#allocation4 + $0x2f8] sm:$0xff]
    %v1946 = vld [vmem:[#allocation4 + $0x300] sm:$0xff]
    %v1947 = vld [vmem:[#allocation4 + $0x308] sm:$0xff]
    %v1948 = vld [vmem:[#allocation4 + $0x310] sm:$0xff]
    %v1949 = vld [vmem:[#allocation4 + $0x318] sm:$0xff]
    %v1950 = vld [vmem:[#allocation4 + $0x320] sm:$0xff]
    %v1951 = vld [vmem:[#allocation4 + $0x328] sm:$0xff]
    %v1952 = vld [vmem:[#allocation4 + $0x330] sm:$0xff]
    %v1953 = vld [vmem:[#allocation4 + $0x338] sm:$0xff]
    %v1954 = vld [vmem:[#allocation4 + $0x340] sm:$0xff]
    %v1955 = vld [vmem:[#allocation4 + $0x348] sm:$0xff]
    %v1956 = vld [vmem:[#allocation4 + $0x350] sm:$0xff]
    %v1957 = vld [vmem:[#allocation4 + $0x358] sm:$0xff]
    %v1958 = vld [vmem:[#allocation4 + $0x360] sm:$0xff]
    %v1959 = vld [vmem:[#allocation4 + $0x368] sm:$0xff]
    %v1960 = vld [vmem:[#allocation4 + $0x370] sm:$0xff]
    %v1961 = vld [vmem:[#allocation4 + $0x378] sm:$0xff]
    %v1962 = vld [vmem:[#allocation4 + $0x380] sm:$0xff]
    %v1963 = vld [vmem:[#allocation4 + $0x388] sm:$0xff]
    %v1964 = vld [vmem:[#allocation4 + $0x390] sm:$0xff]
    %v1965 = vld [vmem:[#allocation4 + $0x398] sm:$0xff]
    %v1966 = vld [vmem:[#allocation4 + $0x3a0] sm:$0xff]
    %v1967 = vld [vmem:[#allocation4 + $0x3a8] sm:$0xff]
    %v1968 = vld [vmem:[#allocation4 + $0x3b0] sm:$0xff]
    %v1969 = vld [vmem:[#allocation4 + $0x3b8] sm:$0xff]
    %v1970 = vld [vmem:[#allocation4 + $0x3c0] sm:$0xff]
    %v1971 = vld [vmem:[#allocation4 + $0x3c8] sm:$0xff]
    %v1972 = vld [vmem:[#allocation4 + $0x3d0] sm:$0xff]
    %v1973 = vld [vmem:[#allocation4 + $0x3d8] sm:$0xff]
    %v1974 = vld [vmem:[#allocation4 + $0x3e0] sm:$0xff]
    %v1975 = vld [vmem:[#allocation4 + $0x3e8] sm:$0xff]
    %v1976 = vld [vmem:[#allocation4 + $0x3f0] sm:$0xff]
    %v1977 = vld [vmem:[#allocation4 + $0x3f8] sm:$0xff]
    %v1978 = vld [vmem:[#allocation4 + $0x400] sm:$0xff]
    %v1979 = vld [vmem:[#allocation4 + $0x408] sm:$0xff]
    %v1980 = vld [vmem:[#allocation4 + $0x410] sm:$0xff]
    %v1981 = vld [vmem:[#allocation4 + $0x418] sm:$0xff]
    %v1982 = vld [vmem:[#allocation4 + $0x420] sm:$0xff]
    %v1983 = vld [vmem:[#allocation4 + $0x428] sm:$0xff]
    %v1984 = vld [vmem:[#allocation4 + $0x430] sm:$0xff]
    %v1985 = vld [vmem:[#allocation4 + $0x438] sm:$0xff]
    %v1986 = vld [vmem:[#allocation4 + $0x440] sm:$0xff]
    %v1987 = vld [vmem:[#allocation4 + $0x448] sm:$0xff]
    %v1988 = vld [vmem:[#allocation4 + $0x450] sm:$0xff]
    %v1989 = vld [vmem:[#allocation4 + $0x458] sm:$0xff]
    %v1990 = vld [vmem:[#allocation4 + $0x460] sm:$0xff]
    %v1991 = vld [vmem:[#allocation4 + $0x468] sm:$0xff]
    %v1992 = vld [vmem:[#allocation4 + $0x470] sm:$0xff]
    %v1993 = vld [vmem:[#allocation4 + $0x478] sm:$0xff]
    %1994 = vmatpush.msra.mxu0 %v1985
    %1995 = vmatpush.msra.mxu0 %v1976
    %1996 = vmatpush.msra.mxu0 %v1967
    %1997 = vmatpush.msra.mxu0 %v1958
    %1998 = vmatpush.msra.mxu0 %v1949
    %1999 = vmatpush.msra.mxu0 %v1940
    %2000 = vmatpush.msra.mxu0 %v1931
    %2001 = vmatpush.msra.mxu0 %v1922
    %2002 = vmatpush.msra.mxu0 %v1913
    %2003 = vmatpush.msra.mxu0 %v1904
    %2004 = vmatpush.msra.mxu0 %v1895
    %2005 = vmatpush.msra.mxu0 %v1886
    %2006 = vmatpush.msra.mxu0 %v1877
    %2007 = vmatpush.msra.mxu0 %v1868
    %2008 = vmatpush.msra.mxu0 %v1859
    %2009 = vmatpush.msra.mxu0 %v1850
    %2010 = vmatmul.f32.gmra.mxu0 %v1849
    %v2011 = vpop.f32.mrf.mxu0
    %v2012 = vadd.f32 0.0, %v2011
    %2013 = vdwg.mxu0
    %2014 = vmatpush.msra.mxu0 %v1986
    %2015 = vmatpush.msra.mxu0 %v1977
    %2016 = vmatpush.msra.mxu0 %v1968
    %2017 = vmatpush.msra.mxu0 %v1959
    %2018 = vmatpush.msra.mxu0 %v1950
    %2019 = vmatpush.msra.mxu0 %v1941
    %2020 = vmatpush.msra.mxu0 %v1932
    %2021 = vmatpush.msra.mxu0 %v1923
    %2022 = vmatpush.msra.mxu0 %v1914
    %2023 = vmatpush.msra.mxu0 %v1905
    %2024 = vmatpush.msra.mxu0 %v1896
    %2025 = vmatpush.msra.mxu0 %v1887
    %2026 = vmatpush.msra.mxu0 %v1878
    %2027 = vmatpush.msra.mxu0 %v1869
    %2028 = vmatpush.msra.mxu0 %v1860
    %2029 = vmatpush.msra.mxu0 %v1851
    %2030 = vmatmul.f32.gmra.mxu0 %v1849
    %v2031 = vpop.f32.mrf.mxu0
    %v2032 = vadd.f32 0.0, %v2031
    %2033 = vdwg.mxu0
    %2034 = vmatpush.msra.mxu0 %v1987
    %2035 = vmatpush.msra.mxu0 %v1978
    %2036 = vmatpush.msra.mxu0 %v1969
    %2037 = vmatpush.msra.mxu0 %v1960
    %2038 = vmatpush.msra.mxu0 %v1951
    %2039 = vmatpush.msra.mxu0 %v1942
    %2040 = vmatpush.msra.mxu0 %v1933
    %2041 = vmatpush.msra.mxu0 %v1924
    %2042 = vmatpush.msra.mxu0 %v1915
    %2043 = vmatpush.msra.mxu0 %v1906
    %2044 = vmatpush.msra.mxu0 %v1897
    %2045 = vmatpush.msra.mxu0 %v1888
    %2046 = vmatpush.msra.mxu0 %v1879
    %2047 = vmatpush.msra.mxu0 %v1870
    %2048 = vmatpush.msra.mxu0 %v1861
    %2049 = vmatpush.msra.mxu0 %v1852
    %2050 = vmatmul.f32.gmra.mxu0 %v1849
    %v2051 = vpop.f32.mrf.mxu0
    %v2052 = vadd.f32 0.0, %v2051
    %2053 = vdwg.mxu0
    %2054 = vmatpush.msra.mxu0 %v1988
    %2055 = vmatpush.msra.mxu0 %v1979
    %2056 = vmatpush.msra.mxu0 %v1970
    %2057 = vmatpush.msra.mxu0 %v1961
    %2058 = vmatpush.msra.mxu0 %v1952
    %2059 = vmatpush.msra.mxu0 %v1943
    %2060 = vmatpush.msra.mxu0 %v1934
    %2061 = vmatpush.msra.mxu0 %v1925
    %2062 = vmatpush.msra.mxu0 %v1916
    %2063 = vmatpush.msra.mxu0 %v1907
    %2064 = vmatpush.msra.mxu0 %v1898
    %2065 = vmatpush.msra.mxu0 %v1889
    %2066 = vmatpush.msra.mxu0 %v1880
    %2067 = vmatpush.msra.mxu0 %v1871
    %2068 = vmatpush.msra.mxu0 %v1862
    %2069 = vmatpush.msra.mxu0 %v1853
    %2070 = vmatmul.f32.gmra.mxu0 %v1849
    %v2071 = vpop.f32.mrf.mxu0
    %v2072 = vadd.f32 0.0, %v2071
    %2073 = vdwg.mxu0
    %2074 = vmatpush.msra.mxu0 %v1989
    %2075 = vmatpush.msra.mxu0 %v1980
    %2076 = vmatpush.msra.mxu0 %v1971
    %2077 = vmatpush.msra.mxu0 %v1962
    %2078 = vmatpush.msra.mxu0 %v1953
    %2079 = vmatpush.msra.mxu0 %v1944
    %2080 = vmatpush.msra.mxu0 %v1935
    %2081 = vmatpush.msra.mxu0 %v1926
    %2082 = vmatpush.msra.mxu0 %v1917
    %2083 = vmatpush.msra.mxu0 %v1908
    %2084 = vmatpush.msra.mxu0 %v1899
    %2085 = vmatpush.msra.mxu0 %v1890
    %2086 = vmatpush.msra.mxu0 %v1881
    %2087 = vmatpush.msra.mxu0 %v1872
    %2088 = vmatpush.msra.mxu0 %v1863
    %2089 = vmatpush.msra.mxu0 %v1854
    %2090 = vmatmul.f32.gmra.mxu0 %v1849
    %v2091 = vpop.f32.mrf.mxu0
    %v2092 = vadd.f32 0.0, %v2091
    %2093 = vdwg.mxu0
    %2094 = vmatpush.msra.mxu0 %v1990
    %2095 = vmatpush.msra.mxu0 %v1981
    %2096 = vmatpush.msra.mxu0 %v1972
    %2097 = vmatpush.msra.mxu0 %v1963
    %2098 = vmatpush.msra.mxu0 %v1954
    %2099 = vmatpush.msra.mxu0 %v1945
    %2100 = vmatpush.msra.mxu0 %v1936
    %2101 = vmatpush.msra.mxu0 %v1927
    %2102 = vmatpush.msra.mxu0 %v1918
    %2103 = vmatpush.msra.mxu0 %v1909
    %2104 = vmatpush.msra.mxu0 %v1900
    %2105 = vmatpush.msra.mxu0 %v1891
    %2106 = vmatpush.msra.mxu0 %v1882
    %2107 = vmatpush.msra.mxu0 %v1873
    %2108 = vmatpush.msra.mxu0 %v1864
    %2109 = vmatpush.msra.mxu0 %v1855
    %2110 = vmatmul.f32.gmra.mxu0 %v1849
    %v2111 = vpop.f32.mrf.mxu0
    %v2112 = vadd.f32 0.0, %v2111
    %2113 = vdwg.mxu0
    %2114 = vmatpush.msra.mxu0 %v1991
    %2115 = vmatpush.msra.mxu0 %v1982
    %2116 = vmatpush.msra.mxu0 %v1973
    %2117 = vmatpush.msra.mxu0 %v1964
    %2118 = vmatpush.msra.mxu0 %v1955
    %2119 = vmatpush.msra.mxu0 %v1946
    %2120 = vmatpush.msra.mxu0 %v1937
    %2121 = vmatpush.msra.mxu0 %v1928
    %2122 = vmatpush.msra.mxu0 %v1919
    %2123 = vmatpush.msra.mxu0 %v1910
    %2124 = vmatpush.msra.mxu0 %v1901
    %2125 = vmatpush.msra.mxu0 %v1892
    %2126 = vmatpush.msra.mxu0 %v1883
    %2127 = vmatpush.msra.mxu0 %v1874
    %2128 = vmatpush.msra.mxu0 %v1865
    %2129 = vmatpush.msra.mxu0 %v1856
    %2130 = vmatmul.f32.gmra.mxu0 %v1849
    %v2131 = vpop.f32.mrf.mxu0
    %v2132 = vadd.f32 0.0, %v2131
    %2133 = vdwg.mxu0
    %2134 = vmatpush.msra.mxu0 %v1992
    %2135 = vmatpush.msra.mxu0 %v1983
    %2136 = vmatpush.msra.mxu0 %v1974
    %2137 = vmatpush.msra.mxu0 %v1965
    %2138 = vmatpush.msra.mxu0 %v1956
    %2139 = vmatpush.msra.mxu0 %v1947
    %2140 = vmatpush.msra.mxu0 %v1938
    %2141 = vmatpush.msra.mxu0 %v1929
    %2142 = vmatpush.msra.mxu0 %v1920
    %2143 = vmatpush.msra.mxu0 %v1911
    %2144 = vmatpush.msra.mxu0 %v1902
    %2145 = vmatpush.msra.mxu0 %v1893
    %2146 = vmatpush.msra.mxu0 %v1884
    %2147 = vmatpush.msra.mxu0 %v1875
    %2148 = vmatpush.msra.mxu0 %v1866
    %2149 = vmatpush.msra.mxu0 %v1857
    %2150 = vmatmul.f32.gmra.mxu0 %v1849
    %v2151 = vpop.f32.mrf.mxu0
    %v2152 = vadd.f32 0.0, %v2151
    %2153 = vdwg.mxu0
    %2154 = vmatpush.msra.mxu0 %v1993
    %2155 = vmatpush.msra.mxu0 %v1984
    %2156 = vmatpush.msra.mxu0 %v1975
    %2157 = vmatpush.msra.mxu0 %v1966
    %2158 = vmatpush.msra.mxu0 %v1957
    %2159 = vmatpush.msra.mxu0 %v1948
    %2160 = vmatpush.msra.mxu0 %v1939
    %2161 = vmatpush.msra.mxu0 %v1930
    %2162 = vmatpush.msra.mxu0 %v1921
    %2163 = vmatpush.msra.mxu0 %v1912
    %2164 = vmatpush.msra.mxu0 %v1903
    %2165 = vmatpush.msra.mxu0 %v1894
    %2166 = vmatpush.msra.mxu0 %v1885
    %2167 = vmatpush.msra.mxu0 %v1876
    %2168 = vmatpush.msra.mxu0 %v1867
    %2169 = vmatpush.msra.mxu0 %v1858
    %2170 = vmatmul.f32.gmra.mxu0 %v1849
    %v2171 = vpop.f32.mrf.mxu0
    %v2172 = vadd.f32 0.0, %v2171
    %2173 = vdwg.mxu0
    %2174 = vst [vmem:[#allocation2] sm:$0xff] %v2012
    %2175 = vst [vmem:[#allocation2 + $0x8] sm:$0xff] %v2032
    %2176 = vst [vmem:[#allocation2 + $0x10] sm:$0xff] %v2052
    %2177 = vst [vmem:[#allocation2 + $0x18] sm:$0xff] %v2072
    %2178 = vst [vmem:[#allocation2 + $0x20] sm:$0xff] %v2092
    %2179 = vst [vmem:[#allocation2 + $0x28] sm:$0xff] %v2112
    %2180 = vst [vmem:[#allocation2 + $0x30] sm:$0xff] %v2132
    %2181 = vst [vmem:[#allocation2 + $0x38] sm:$0xff] %v2152
    %2182 = vst [vmem:[#allocation2 + $0x40] sm:$0xff] %v2172
    %v2183 = vld [vmem:[#allocation2] sm:$0xff]
    %v2184 = vld [vmem:[#allocation2 + $0x8] sm:$0xff]
    %v2185 = vld [vmem:[#allocation2 + $0x10] sm:$0xff]
    %v2186 = vld [vmem:[#allocation2 + $0x18] sm:$0xff]
    %v2187 = vld [vmem:[#allocation2 + $0x20] sm:$0xff]
    %v2188 = vld [vmem:[#allocation2 + $0x28] sm:$0xff]
    %v2189 = vld [vmem:[#allocation2 + $0x30] sm:$0xff]
    %v2190 = vld [vmem:[#allocation2 + $0x38] sm:$0xff]
    %v2191 = vld [vmem:[#allocation2 + $0x40] sm:$0xff]
    %v2193 = vsel %vm519, %v1473, 0
    %2195 = vmatpush.msra.mxu0 0.0
    %2196 = vmatpush.msra.mxu0 0.0
    %2197 = vmatpush.msra.mxu0 0.0
    %2198 = vmatpush.msra.mxu0 0.0
    %2199 = vmatpush.msra.mxu0 0.0
    %2200 = vmatpush.msra.mxu0 0.0
    %2201 = vmatpush.msra.mxu0 0.0
    %2202 = vmatpush.msra.mxu0 %v2191
    %2203 = vmatpush.msra.mxu0 %v2190
    %2204 = vmatpush.msra.mxu0 %v2189
    %2205 = vmatpush.msra.mxu0 %v2188
    %2206 = vmatpush.msra.mxu0 %v2187
    %2207 = vmatpush.msra.mxu0 %v2186
    %2208 = vmatpush.msra.mxu0 %v2185
    %2209 = vmatpush.msra.mxu0 %v2184
    %2210 = vmatpush.msra.mxu0 %v2183
    %2211 = vmatmul.f32.gmra.mxu0 %v2193
    %v2212 = vpop.f32.mrf.mxu0
    %v2213 = vadd.f32 0.0, %v2212
    %2214 = vdwg.mxu0
    %v2215 = vmul.f32 %v2213, 0.1
    %v2216 = vadd.f32 %v1470, %v2215
    %v2217 = vstv %s168
    %v2218 = vmul.f32 %v2217, %v2216
    %v2219 = vadd.f32 %v1288, %v2218
    %s2220 = scalar_lea.vmem %s63, 8
    %2221 = vst [vmem:[%s2220] sm:$0xff] %v2219
    %v2222 = vld [vmem:[%s7] sm:$0xff]
    %v2223 = vld [vmem:[%s7 + $0x8] sm:$0xff]
    %v2224 = vld [vmem:[%s7 + $0x10] sm:$0xff]
    %v2225 = vld [vmem:[%s7 + $0x18] sm:$0xff]
    %v2226 = vld [vmem:[%s7 + $0x20] sm:$0xff]
    %v2227 = vld [vmem:[%s7 + $0x28] sm:$0xff]
    %v2228 = vld [vmem:[%s7 + $0x30] sm:$0xff]
    %v2229 = vld [vmem:[%s7 + $0x38] sm:$0xff]
    %v2230 = vld [vmem:[%s7 + $0x40] sm:$0xff]
    %v2231 = vld [vmem:[%s7 + $0x48] sm:$0xff]
    %v2232 = vld [vmem:[%s7 + $0x50] sm:$0xff]
    %v2233 = vld [vmem:[%s7 + $0x58] sm:$0xff]
    %v2234 = vld [vmem:[%s7 + $0x60] sm:$0xff]
    %v2235 = vld [vmem:[%s7 + $0x68] sm:$0xff]
    %v2236 = vld [vmem:[%s7 + $0x70] sm:$0xff]
    %v2237 = vld [vmem:[%s7 + $0x78] sm:$0xff]
    %2238 = vmatpush.msra.mxu0 %v2237
    %2239 = vmatpush.msra.mxu0 %v2236
    %2240 = vmatpush.msra.mxu0 %v2235
    %2241 = vmatpush.msra.mxu0 %v2234
    %2242 = vmatpush.msra.mxu0 %v2233
    %2243 = vmatpush.msra.mxu0 %v2232
    %2244 = vmatpush.msra.mxu0 %v2231
    %2245 = vmatpush.msra.mxu0 %v2230
    %2246 = vmatpush.msra.mxu0 %v2229
    %2247 = vmatpush.msra.mxu0 %v2228
    %2248 = vmatpush.msra.mxu0 %v2227
    %2249 = vmatpush.msra.mxu0 %v2226
    %2250 = vmatpush.msra.mxu0 %v2225
    %2251 = vmatpush.msra.mxu0 %v2224
    %2252 = vmatpush.msra.mxu0 %v2223
    %2253 = vmatpush.msra.mxu0 %v2222
    %2254 = vmatmul.f32.gmra.mxu0 %v2219
    %v2255 = vpop.f32.mrf.mxu0
    %v2256 = vadd.f32 0.0, %v2255
    %2257 = vdwg.mxu0
    %v2258 = vsub.f32 %v2219, %v2256
    %v2259 = vmul.f32 %v2258, %v2258
    %2260 = vmatpush.msra.mxu0 %v2237
    %2261 = vmatpush.msra.mxu0 %v2236
    %2262 = vmatpush.msra.mxu0 %v2235
    %2263 = vmatpush.msra.mxu0 %v2234
    %2264 = vmatpush.msra.mxu0 %v2233
    %2265 = vmatpush.msra.mxu0 %v2232
    %2266 = vmatpush.msra.mxu0 %v2231
    %2267 = vmatpush.msra.mxu0 %v2230
    %2268 = vmatpush.msra.mxu0 %v2229
    %2269 = vmatpush.msra.mxu0 %v2228
    %2270 = vmatpush.msra.mxu0 %v2227
    %2271 = vmatpush.msra.mxu0 %v2226
    %2272 = vmatpush.msra.mxu0 %v2225
    %2273 = vmatpush.msra.mxu0 %v2224
    %2274 = vmatpush.msra.mxu0 %v2223
    %2275 = vmatpush.msra.mxu0 %v2222
    %2276 = vmatmul.f32.gmra.mxu0 %v2259
    %v2277 = vpop.f32.mrf.mxu0
    %v2278 = vadd.f32 1e-05, %v2277
    %2279 = vdwg.mxu0
    %v2280 = vrsqrt.pop %v2278
    %v2281 = vmul.f32 %v2280, %v2278
    %v2282 = vmul.f32 %v2281, %v2280
    %v2283 = vmul.f32 0.5, %v2282
    %v2284 = vsub.f32 1.5, %v2283
    %v2285 = vmul.f32 %v2280, %v2284
    %vm2286 = vweird.f32 %v2278
    %vm2287 = vweird.f32 %v2280
    %vm2288 = vmor %vm2286, %vm2287
    %v2289 = vsel %vm2288, %v2280, %v2285
    %v2290 = vmul.f32 %v2258, %v2289
    %v2291 = vld [vmem:[%s19] sm:$0xff]
    %v2292 = vld [vmem:[%s19 + $0x8] sm:$0xff]
    %v2293 = vld [vmem:[%s19 + $0x10] sm:$0xff]
    %v2294 = vld [vmem:[%s19 + $0x18] sm:$0xff]
    %v2295 = vld [vmem:[%s21] sm:$0xff]
    %v2296 = vld [vmem:[%s21 + $0x8] sm:$0xff]
    %v2297 = vld [vmem:[%s21 + $0x10] sm:$0xff]
    %v2298 = vld [vmem:[%s21 + $0x18] sm:$0xff]
    %v2299 = vld [vmem:[%s23] sm:$0xff]
    %vm2300 = vcmp.gt.f32.partialorder %v2290, 0.0
    %v2301 = vmul.f32 %v2290, 0.2
    %v2302 = vsel %vm2300, %v2290, %v2301
    %2304 = vset.pattern.permute.xlu0 0
    %2305 = vperm.xlu0 %2304, %v2295
    %v2306 = vpop.permute.xlu0 %2305
    %2309 = vset.pattern.permute.xlu0 0
    %2310 = vperm.xlu0 %2309, %v2296
    %v2311 = vpop.permute.xlu0 %2310
    %2314 = vset.pattern.permute.xlu0 0
    %2315 = vperm.xlu0 %2314, %v2297
    %v2316 = vpop.permute.xlu0 %2315
    %2319 = vset.pattern.permute.xlu0 0
    %2320 = vperm.xlu0 %2319, %v2298
    %v2321 = vpop.permute.xlu0 %2320
    %v2324 = vsel %vm1391, %v2291, 0
    %v2327 = vsel %vm1391, %v2292, 0
    %v2330 = vsel %vm1391, %v2293, 0
    %v2333 = vsel %vm1391, %v2294, 0
    %2335 = vmatpush.msra.mxu0 0.0
    %2336 = vmatpush.msra.mxu0 0.0
    %2337 = vmatpush.msra.mxu0 0.0
    %2338 = vmatpush.msra.mxu0 0.0
    %2339 = vmatpush.msra.mxu0 0.0
    %2340 = vmatpush.msra.mxu0 0.0
    %2341 = vmatpush.msra.mxu0 0.0
    %2342 = vmatpush.msra.mxu0 0.0
    %2343 = vmatpush.msra.mxu0 0.0
    %2344 = vmatpush.msra.mxu0 0.0
    %2345 = vmatpush.msra.mxu0 0.0
    %2346 = vmatpush.msra.mxu0 0.0
    %2347 = vmatpush.msra.mxu0 0.0
    %2348 = vmatpush.msra.mxu0 0.0
    %2349 = vmatpush.msra.mxu0 0.0
    %2350 = vmatpush.msra.mxu0 %v2302
    %2351 = vmatmul.f32.gmra.mxu0 %v2324
    %v2352 = vpop.f32.mrf.mxu0
    %v2353 = vadd.f32 %v2306, %v2352
    %2354 = vmatmul.f32.gmra.mxu0 %v2327
    %v2355 = vpop.f32.mrf.mxu0
    %v2356 = vadd.f32 %v2311, %v2355
    %2357 = vmatmul.f32.gmra.mxu0 %v2330
    %v2358 = vpop.f32.mrf.mxu0
    %v2359 = vadd.f32 %v2316, %v2358
    %2360 = vmatmul.f32.gmra.mxu0 %v2333
    %v2361 = vpop.f32.mrf.mxu0
    %v2362 = vadd.f32 %v2321, %v2361
    %2363 = vdwg.mxu0
    %vm2364 = vcmp.gt.f32.partialorder %v2353, 0.0
    %vm2365 = vcmp.gt.f32.partialorder %v2356, 0.0
    %vm2366 = vcmp.gt.f32.partialorder %v2359, 0.0
    %vm2367 = vcmp.gt.f32.partialorder %v2362, 0.0
    %v2368 = vmul.f32 %v2353, 0.2
    %v2369 = vmul.f32 %v2356, 0.2
    %v2370 = vmul.f32 %v2359, 0.2
    %v2371 = vmul.f32 %v2362, 0.2
    %v2372 = vsel %vm2364, %v2353, %v2368
    %v2373 = vsel %vm2365, %v2356, %v2369
    %v2374 = vsel %vm2366, %v2359, %v2370
    %v2375 = vsel %vm2367, %v2362, %v2371
    %v2377 = vsel %vm1445, %v2299, 0
    %2379 = vmatpush.msra.mxu0 0.0
    %2380 = vmatpush.msra.mxu0 0.0
    %2381 = vmatpush.msra.mxu0 0.0
    %2382 = vmatpush.msra.mxu0 0.0
    %2383 = vmatpush.msra.mxu0 0.0
    %2384 = vmatpush.msra.mxu0 0.0
    %2385 = vmatpush.msra.mxu0 0.0
    %2386 = vmatpush.msra.mxu0 0.0
    %2387 = vmatpush.msra.mxu0 0.0
    %2388 = vmatpush.msra.mxu0 0.0
    %2389 = vmatpush.msra.mxu0 0.0
    %2390 = vmatpush.msra.mxu0 0.0
    %2391 = vmatpush.msra.mxu0 %v2375
    %2392 = vmatpush.msra.mxu0 %v2374
    %2393 = vmatpush.msra.mxu0 %v2373
    %2394 = vmatpush.msra.mxu0 %v2372
    %2395 = vmatmul.f32.gmra.mxu0 %v2377
    %v2396 = vpop.f32.mrf.mxu0
    %v2397 = vadd.f32 0.0, %v2396
    %2398 = vdwg.mxu0
    %v2399 = vmul.f32 %v2397, 0.1
    %v2400 = vadd.f32 %v2290, %v2399
    %v2401 = vld [vmem:[%s25] sm:$0xff]
    %v2402 = vld [vmem:[%s27] sm:$0xff]
    %v2403 = vld [vmem:[%s29] sm:$0xff]
    %vm2404 = vcmp.gt.f32.partialorder %v2400, 0.0
    %v2405 = vmul.f32 %v2400, 0.2
    %v2406 = vsel %vm2404, %v2400, %v2405
    %v2407 = vld [vmem:[#allocation4] sm:$0xff]
    %v2408 = vld [vmem:[#allocation4 + $0x8] sm:$0xff]
    %v2409 = vld [vmem:[#allocation4 + $0x10] sm:$0xff]
    %v2410 = vld [vmem:[#allocation4 + $0x18] sm:$0xff]
    %v2411 = vld [vmem:[#allocation4 + $0x20] sm:$0xff]
    %v2412 = vld [vmem:[#allocation4 + $0x28] sm:$0xff]
    %v2413 = vld [vmem:[#allocation4 + $0x30] sm:$0xff]
    %v2414 = vld [vmem:[#allocation4 + $0x38] sm:$0xff]
    %v2415 = vld [vmem:[#allocation4 + $0x40] sm:$0xff]
    %v2416 = vld [vmem:[#allocation4 + $0x48] sm:$0xff]
    %v2417 = vld [vmem:[#allocation4 + $0x50] sm:$0xff]
    %v2418 = vld [vmem:[#allocation4 + $0x58] sm:$0xff]
    %v2419 = vld [vmem:[#allocation4 + $0x60] sm:$0xff]
    %v2420 = vld [vmem:[#allocation4 + $0x68] sm:$0xff]
    %v2421 = vld [vmem:[#allocation4 + $0x70] sm:$0xff]
    %v2422 = vld [vmem:[#allocation4 + $0x78] sm:$0xff]
    %v2423 = vld [vmem:[#allocation4 + $0x80] sm:$0xff]
    %v2424 = vld [vmem:[#allocation4 + $0x88] sm:$0xff]
    %v2425 = vld [vmem:[#allocation4 + $0x90] sm:$0xff]
    %v2426 = vld [vmem:[#allocation4 + $0x98] sm:$0xff]
    %v2427 = vld [vmem:[#allocation4 + $0xa0] sm:$0xff]
    %v2428 = vld [vmem:[#allocation4 + $0xa8] sm:$0xff]
    %v2429 = vld [vmem:[#allocation4 + $0xb0] sm:$0xff]
    %v2430 = vld [vmem:[#allocation4 + $0xb8] sm:$0xff]
    %v2431 = vld [vmem:[#allocation4 + $0xc0] sm:$0xff]
    %v2432 = vld [vmem:[#allocation4 + $0xc8] sm:$0xff]
    %v2433 = vld [vmem:[#allocation4 + $0xd0] sm:$0xff]
    %v2434 = vld [vmem:[#allocation4 + $0xd8] sm:$0xff]
    %v2435 = vld [vmem:[#allocation4 + $0xe0] sm:$0xff]
    %v2436 = vld [vmem:[#allocation4 + $0xe8] sm:$0xff]
    %v2437 = vld [vmem:[#allocation4 + $0xf0] sm:$0xff]
    %v2438 = vld [vmem:[#allocation4 + $0xf8] sm:$0xff]
    %v2439 = vld [vmem:[#allocation4 + $0x100] sm:$0xff]
    %v2440 = vld [vmem:[#allocation4 + $0x108] sm:$0xff]
    %v2441 = vld [vmem:[#allocation4 + $0x110] sm:$0xff]
    %v2442 = vld [vmem:[#allocation4 + $0x118] sm:$0xff]
    %v2443 = vld [vmem:[#allocation4 + $0x120] sm:$0xff]
    %v2444 = vld [vmem:[#allocation4 + $0x128] sm:$0xff]
    %v2445 = vld [vmem:[#allocation4 + $0x130] sm:$0xff]
    %v2446 = vld [vmem:[#allocation4 + $0x138] sm:$0xff]
    %v2447 = vld [vmem:[#allocation4 + $0x140] sm:$0xff]
    %v2448 = vld [vmem:[#allocation4 + $0x148] sm:$0xff]
    %v2449 = vld [vmem:[#allocation4 + $0x150] sm:$0xff]
    %v2450 = vld [vmem:[#allocation4 + $0x158] sm:$0xff]
    %v2451 = vld [vmem:[#allocation4 + $0x160] sm:$0xff]
    %v2452 = vld [vmem:[#allocation4 + $0x168] sm:$0xff]
    %v2453 = vld [vmem:[#allocation4 + $0x170] sm:$0xff]
    %v2454 = vld [vmem:[#allocation4 + $0x178] sm:$0xff]
    %v2455 = vld [vmem:[#allocation4 + $0x180] sm:$0xff]
    %v2456 = vld [vmem:[#allocation4 + $0x188] sm:$0xff]
    %v2457 = vld [vmem:[#allocation4 + $0x190] sm:$0xff]
    %v2458 = vld [vmem:[#allocation4 + $0x198] sm:$0xff]
    %v2459 = vld [vmem:[#allocation4 + $0x1a0] sm:$0xff]
    %v2460 = vld [vmem:[#allocation4 + $0x1a8] sm:$0xff]
    %v2461 = vld [vmem:[#allocation4 + $0x1b0] sm:$0xff]
    %v2462 = vld [vmem:[#allocation4 + $0x1b8] sm:$0xff]
    %v2463 = vld [vmem:[#allocation4 + $0x1c0] sm:$0xff]
    %v2464 = vld [vmem:[#allocation4 + $0x1c8] sm:$0xff]
    %v2465 = vld [vmem:[#allocation4 + $0x1d0] sm:$0xff]
    %v2466 = vld [vmem:[#allocation4 + $0x1d8] sm:$0xff]
    %v2467 = vld [vmem:[#allocation4 + $0x1e0] sm:$0xff]
    %v2468 = vld [vmem:[#allocation4 + $0x1e8] sm:$0xff]
    %v2469 = vld [vmem:[#allocation4 + $0x1f0] sm:$0xff]
    %v2470 = vld [vmem:[#allocation4 + $0x1f8] sm:$0xff]
    %v2471 = vld [vmem:[#allocation4 + $0x200] sm:$0xff]
    %v2472 = vld [vmem:[#allocation4 + $0x208] sm:$0xff]
    %v2473 = vld [vmem:[#allocation4 + $0x210] sm:$0xff]
    %v2474 = vld [vmem:[#allocation4 + $0x218] sm:$0xff]
    %v2475 = vld [vmem:[#allocation4 + $0x220] sm:$0xff]
    %v2476 = vld [vmem:[#allocation4 + $0x228] sm:$0xff]
    %v2477 = vld [vmem:[#allocation4 + $0x230] sm:$0xff]
    %v2478 = vld [vmem:[#allocation4 + $0x238] sm:$0xff]
    %v2479 = vld [vmem:[#allocation4 + $0x240] sm:$0xff]
    %v2480 = vld [vmem:[#allocation4 + $0x248] sm:$0xff]
    %v2481 = vld [vmem:[#allocation4 + $0x250] sm:$0xff]
    %v2482 = vld [vmem:[#allocation4 + $0x258] sm:$0xff]
    %v2483 = vld [vmem:[#allocation4 + $0x260] sm:$0xff]
    %v2484 = vld [vmem:[#allocation4 + $0x268] sm:$0xff]
    %v2485 = vld [vmem:[#allocation4 + $0x270] sm:$0xff]
    %v2486 = vld [vmem:[#allocation4 + $0x278] sm:$0xff]
    %v2487 = vld [vmem:[#allocation4 + $0x280] sm:$0xff]
    %v2488 = vld [vmem:[#allocation4 + $0x288] sm:$0xff]
    %v2489 = vld [vmem:[#allocation4 + $0x290] sm:$0xff]
    %v2490 = vld [vmem:[#allocation4 + $0x298] sm:$0xff]
    %v2491 = vld [vmem:[#allocation4 + $0x2a0] sm:$0xff]
    %v2492 = vld [vmem:[#allocation4 + $0x2a8] sm:$0xff]
    %v2493 = vld [vmem:[#allocation4 + $0x2b0] sm:$0xff]
    %v2494 = vld [vmem:[#allocation4 + $0x2b8] sm:$0xff]
    %v2495 = vld [vmem:[#allocation4 + $0x2c0] sm:$0xff]
    %v2496 = vld [vmem:[#allocation4 + $0x2c8] sm:$0xff]
    %v2497 = vld [vmem:[#allocation4 + $0x2d0] sm:$0xff]
    %v2498 = vld [vmem:[#allocation4 + $0x2d8] sm:$0xff]
    %v2499 = vld [vmem:[#allocation4 + $0x2e0] sm:$0xff]
    %v2500 = vld [vmem:[#allocation4 + $0x2e8] sm:$0xff]
    %v2501 = vld [vmem:[#allocation4 + $0x2f0] sm:$0xff]
    %v2502 = vld [vmem:[#allocation4 + $0x2f8] sm:$0xff]
    %v2503 = vld [vmem:[#allocation4 + $0x300] sm:$0xff]
    %v2504 = vld [vmem:[#allocation4 + $0x308] sm:$0xff]
    %v2505 = vld [vmem:[#allocation4 + $0x310] sm:$0xff]
    %v2506 = vld [vmem:[#allocation4 + $0x318] sm:$0xff]
    %v2507 = vld [vmem:[#allocation4 + $0x320] sm:$0xff]
    %v2508 = vld [vmem:[#allocation4 + $0x328] sm:$0xff]
    %v2509 = vld [vmem:[#allocation4 + $0x330] sm:$0xff]
    %v2510 = vld [vmem:[#allocation4 + $0x338] sm:$0xff]
    %v2511 = vld [vmem:[#allocation4 + $0x340] sm:$0xff]
    %v2512 = vld [vmem:[#allocation4 + $0x348] sm:$0xff]
    %v2513 = vld [vmem:[#allocation4 + $0x350] sm:$0xff]
    %v2514 = vld [vmem:[#allocation4 + $0x358] sm:$0xff]
    %v2515 = vld [vmem:[#allocation4 + $0x360] sm:$0xff]
    %v2516 = vld [vmem:[#allocation4 + $0x368] sm:$0xff]
    %v2517 = vld [vmem:[#allocation4 + $0x370] sm:$0xff]
    %v2518 = vld [vmem:[#allocation4 + $0x378] sm:$0xff]
    %v2519 = vld [vmem:[#allocation4 + $0x380] sm:$0xff]
    %v2520 = vld [vmem:[#allocation4 + $0x388] sm:$0xff]
    %v2521 = vld [vmem:[#allocation4 + $0x390] sm:$0xff]
    %v2522 = vld [vmem:[#allocation4 + $0x398] sm:$0xff]
    %v2523 = vld [vmem:[#allocation4 + $0x3a0] sm:$0xff]
    %v2524 = vld [vmem:[#allocation4 + $0x3a8] sm:$0xff]
    %v2525 = vld [vmem:[#allocation4 + $0x3b0] sm:$0xff]
    %v2526 = vld [vmem:[#allocation4 + $0x3b8] sm:$0xff]
    %v2527 = vld [vmem:[#allocation4 + $0x3c0] sm:$0xff]
    %v2528 = vld [vmem:[#allocation4 + $0x3c8] sm:$0xff]
    %v2529 = vld [vmem:[#allocation4 + $0x3d0] sm:$0xff]
    %v2530 = vld [vmem:[#allocation4 + $0x3d8] sm:$0xff]
    %v2531 = vld [vmem:[#allocation4 + $0x3e0] sm:$0xff]
    %v2532 = vld [vmem:[#allocation4 + $0x3e8] sm:$0xff]
    %v2533 = vld [vmem:[#allocation4 + $0x3f0] sm:$0xff]
    %v2534 = vld [vmem:[#allocation4 + $0x3f8] sm:$0xff]
    %v2535 = vld [vmem:[#allocation4 + $0x400] sm:$0xff]
    %v2536 = vld [vmem:[#allocation4 + $0x408] sm:$0xff]
    %v2537 = vld [vmem:[#allocation4 + $0x410] sm:$0xff]
    %v2538 = vld [vmem:[#allocation4 + $0x418] sm:$0xff]
    %v2539 = vld [vmem:[#allocation4 + $0x420] sm:$0xff]
    %v2540 = vld [vmem:[#allocation4 + $0x428] sm:$0xff]
    %v2541 = vld [vmem:[#allocation4 + $0x430] sm:$0xff]
    %v2542 = vld [vmem:[#allocation4 + $0x438] sm:$0xff]
    %v2543 = vld [vmem:[#allocation4 + $0x440] sm:$0xff]
    %v2544 = vld [vmem:[#allocation4 + $0x448] sm:$0xff]
    %v2545 = vld [vmem:[#allocation4 + $0x450] sm:$0xff]
    %v2546 = vld [vmem:[#allocation4 + $0x458] sm:$0xff]
    %v2547 = vld [vmem:[#allocation4 + $0x460] sm:$0xff]
    %v2548 = vld [vmem:[#allocation4 + $0x468] sm:$0xff]
    %v2549 = vld [vmem:[#allocation4 + $0x470] sm:$0xff]
    %v2550 = vld [vmem:[#allocation4 + $0x478] sm:$0xff]
    %2551 = vmatpush.msra.mxu0 %v2542
    %2552 = vmatpush.msra.mxu0 %v2533
    %2553 = vmatpush.msra.mxu0 %v2524
    %2554 = vmatpush.msra.mxu0 %v2515
    %2555 = vmatpush.msra.mxu0 %v2506
    %2556 = vmatpush.msra.mxu0 %v2497
    %2557 = vmatpush.msra.mxu0 %v2488
    %2558 = vmatpush.msra.mxu0 %v2479
    %2559 = vmatpush.msra.mxu0 %v2470
    %2560 = vmatpush.msra.mxu0 %v2461
    %2561 = vmatpush.msra.mxu0 %v2452
    %2562 = vmatpush.msra.mxu0 %v2443
    %2563 = vmatpush.msra.mxu0 %v2434
    %2564 = vmatpush.msra.mxu0 %v2425
    %2565 = vmatpush.msra.mxu0 %v2416
    %2566 = vmatpush.msra.mxu0 %v2407
    %2567 = vmatmul.f32.gmra.mxu0 %v2406
    %v2568 = vpop.f32.mrf.mxu0
    %v2569 = vadd.f32 0.0, %v2568
    %2570 = vdwg.mxu0
    %2571 = vmatpush.msra.mxu0 %v2543
    %2572 = vmatpush.msra.mxu0 %v2534
    %2573 = vmatpush.msra.mxu0 %v2525
    %2574 = vmatpush.msra.mxu0 %v2516
    %2575 = vmatpush.msra.mxu0 %v2507
    %2576 = vmatpush.msra.mxu0 %v2498
    %2577 = vmatpush.msra.mxu0 %v2489
    %2578 = vmatpush.msra.mxu0 %v2480
    %2579 = vmatpush.msra.mxu0 %v2471
    %2580 = vmatpush.msra.mxu0 %v2462
    %2581 = vmatpush.msra.mxu0 %v2453
    %2582 = vmatpush.msra.mxu0 %v2444
    %2583 = vmatpush.msra.mxu0 %v2435
    %2584 = vmatpush.msra.mxu0 %v2426
    %2585 = vmatpush.msra.mxu0 %v2417
    %2586 = vmatpush.msra.mxu0 %v2408
    %2587 = vmatmul.f32.gmra.mxu0 %v2406
    %v2588 = vpop.f32.mrf.mxu0
    %v2589 = vadd.f32 0.0, %v2588
    %2590 = vdwg.mxu0
    %2591 = vmatpush.msra.mxu0 %v2544
    %2592 = vmatpush.msra.mxu0 %v2535
    %2593 = vmatpush.msra.mxu0 %v2526
    %2594 = vmatpush.msra.mxu0 %v2517
    %2595 = vmatpush.msra.mxu0 %v2508
    %2596 = vmatpush.msra.mxu0 %v2499
    %2597 = vmatpush.msra.mxu0 %v2490
    %2598 = vmatpush.msra.mxu0 %v2481
    %2599 = vmatpush.msra.mxu0 %v2472
    %2600 = vmatpush.msra.mxu0 %v2463
    %2601 = vmatpush.msra.mxu0 %v2454
    %2602 = vmatpush.msra.mxu0 %v2445
    %2603 = vmatpush.msra.mxu0 %v2436
    %2604 = vmatpush.msra.mxu0 %v2427
    %2605 = vmatpush.msra.mxu0 %v2418
    %2606 = vmatpush.msra.mxu0 %v2409
    %2607 = vmatmul.f32.gmra.mxu0 %v2406
    %v2608 = vpop.f32.mrf.mxu0
    %v2609 = vadd.f32 0.0, %v2608
    %2610 = vdwg.mxu0
    %2611 = vmatpush.msra.mxu0 %v2545
    %2612 = vmatpush.msra.mxu0 %v2536
    %2613 = vmatpush.msra.mxu0 %v2527
    %2614 = vmatpush.msra.mxu0 %v2518
    %2615 = vmatpush.msra.mxu0 %v2509
    %2616 = vmatpush.msra.mxu0 %v2500
    %2617 = vmatpush.msra.mxu0 %v2491
    %2618 = vmatpush.msra.mxu0 %v2482
    %2619 = vmatpush.msra.mxu0 %v2473
    %2620 = vmatpush.msra.mxu0 %v2464
    %2621 = vmatpush.msra.mxu0 %v2455
    %2622 = vmatpush.msra.mxu0 %v2446
    %2623 = vmatpush.msra.mxu0 %v2437
    %2624 = vmatpush.msra.mxu0 %v2428
    %2625 = vmatpush.msra.mxu0 %v2419
    %2626 = vmatpush.msra.mxu0 %v2410
    %2627 = vmatmul.f32.gmra.mxu0 %v2406
    %v2628 = vpop.f32.mrf.mxu0
    %v2629 = vadd.f32 0.0, %v2628
    %2630 = vdwg.mxu0
    %2631 = vmatpush.msra.mxu0 %v2546
    %2632 = vmatpush.msra.mxu0 %v2537
    %2633 = vmatpush.msra.mxu0 %v2528
    %2634 = vmatpush.msra.mxu0 %v2519
    %2635 = vmatpush.msra.mxu0 %v2510
    %2636 = vmatpush.msra.mxu0 %v2501
    %2637 = vmatpush.msra.mxu0 %v2492
    %2638 = vmatpush.msra.mxu0 %v2483
    %2639 = vmatpush.msra.mxu0 %v2474
    %2640 = vmatpush.msra.mxu0 %v2465
    %2641 = vmatpush.msra.mxu0 %v2456
    %2642 = vmatpush.msra.mxu0 %v2447
    %2643 = vmatpush.msra.mxu0 %v2438
    %2644 = vmatpush.msra.mxu0 %v2429
    %2645 = vmatpush.msra.mxu0 %v2420
    %2646 = vmatpush.msra.mxu0 %v2411
    %2647 = vmatmul.f32.gmra.mxu0 %v2406
    %v2648 = vpop.f32.mrf.mxu0
    %v2649 = vadd.f32 0.0, %v2648
    %2650 = vdwg.mxu0
    %2651 = vmatpush.msra.mxu0 %v2547
    %2652 = vmatpush.msra.mxu0 %v2538
    %2653 = vmatpush.msra.mxu0 %v2529
    %2654 = vmatpush.msra.mxu0 %v2520
    %2655 = vmatpush.msra.mxu0 %v2511
    %2656 = vmatpush.msra.mxu0 %v2502
    %2657 = vmatpush.msra.mxu0 %v2493
    %2658 = vmatpush.msra.mxu0 %v2484
    %2659 = vmatpush.msra.mxu0 %v2475
    %2660 = vmatpush.msra.mxu0 %v2466
    %2661 = vmatpush.msra.mxu0 %v2457
    %2662 = vmatpush.msra.mxu0 %v2448
    %2663 = vmatpush.msra.mxu0 %v2439
    %2664 = vmatpush.msra.mxu0 %v2430
    %2665 = vmatpush.msra.mxu0 %v2421
    %2666 = vmatpush.msra.mxu0 %v2412
    %2667 = vmatmul.f32.gmra.mxu0 %v2406
    %v2668 = vpop.f32.mrf.mxu0
    %v2669 = vadd.f32 0.0, %v2668
    %2670 = vdwg.mxu0
    %2671 = vmatpush.msra.mxu0 %v2548
    %2672 = vmatpush.msra.mxu0 %v2539
    %2673 = vmatpush.msra.mxu0 %v2530
    %2674 = vmatpush.msra.mxu0 %v2521
    %2675 = vmatpush.msra.mxu0 %v2512
    %2676 = vmatpush.msra.mxu0 %v2503
    %2677 = vmatpush.msra.mxu0 %v2494
    %2678 = vmatpush.msra.mxu0 %v2485
    %2679 = vmatpush.msra.mxu0 %v2476
    %2680 = vmatpush.msra.mxu0 %v2467
    %2681 = vmatpush.msra.mxu0 %v2458
    %2682 = vmatpush.msra.mxu0 %v2449
    %2683 = vmatpush.msra.mxu0 %v2440
    %2684 = vmatpush.msra.mxu0 %v2431
    %2685 = vmatpush.msra.mxu0 %v2422
    %2686 = vmatpush.msra.mxu0 %v2413
    %2687 = vmatmul.f32.gmra.mxu0 %v2406
    %v2688 = vpop.f32.mrf.mxu0
    %v2689 = vadd.f32 0.0, %v2688
    %2690 = vdwg.mxu0
    %2691 = vmatpush.msra.mxu0 %v2549
    %2692 = vmatpush.msra.mxu0 %v2540
    %2693 = vmatpush.msra.mxu0 %v2531
    %2694 = vmatpush.msra.mxu0 %v2522
    %2695 = vmatpush.msra.mxu0 %v2513
    %2696 = vmatpush.msra.mxu0 %v2504
    %2697 = vmatpush.msra.mxu0 %v2495
    %2698 = vmatpush.msra.mxu0 %v2486
    %2699 = vmatpush.msra.mxu0 %v2477
    %2700 = vmatpush.msra.mxu0 %v2468
    %2701 = vmatpush.msra.mxu0 %v2459
    %2702 = vmatpush.msra.mxu0 %v2450
    %2703 = vmatpush.msra.mxu0 %v2441
    %2704 = vmatpush.msra.mxu0 %v2432
    %2705 = vmatpush.msra.mxu0 %v2423
    %2706 = vmatpush.msra.mxu0 %v2414
    %2707 = vmatmul.f32.gmra.mxu0 %v2406
    %v2708 = vpop.f32.mrf.mxu0
    %v2709 = vadd.f32 0.0, %v2708
    %2710 = vdwg.mxu0
    %2711 = vmatpush.msra.mxu0 %v2550
    %2712 = vmatpush.msra.mxu0 %v2541
    %2713 = vmatpush.msra.mxu0 %v2532
    %2714 = vmatpush.msra.mxu0 %v2523
    %2715 = vmatpush.msra.mxu0 %v2514
    %2716 = vmatpush.msra.mxu0 %v2505
    %2717 = vmatpush.msra.mxu0 %v2496
    %2718 = vmatpush.msra.mxu0 %v2487
    %2719 = vmatpush.msra.mxu0 %v2478
    %2720 = vmatpush.msra.mxu0 %v2469
    %2721 = vmatpush.msra.mxu0 %v2460
    %2722 = vmatpush.msra.mxu0 %v2451
    %2723 = vmatpush.msra.mxu0 %v2442
    %2724 = vmatpush.msra.mxu0 %v2433
    %2725 = vmatpush.msra.mxu0 %v2424
    %2726 = vmatpush.msra.mxu0 %v2415
    %2727 = vmatmul.f32.gmra.mxu0 %v2406
    %v2728 = vpop.f32.mrf.mxu0
    %v2729 = vadd.f32 0.0, %v2728
    %2730 = vdwg.mxu0
    %2731 = vst [vmem:[#allocation2] sm:$0xff] %v2569
    %2732 = vst [vmem:[#allocation2 + $0x8] sm:$0xff] %v2589
    %2733 = vst [vmem:[#allocation2 + $0x10] sm:$0xff] %v2609
    %2734 = vst [vmem:[#allocation2 + $0x18] sm:$0xff] %v2629
    %2735 = vst [vmem:[#allocation2 + $0x20] sm:$0xff] %v2649
    %2736 = vst [vmem:[#allocation2 + $0x28] sm:$0xff] %v2669
    %2737 = vst [vmem:[#allocation2 + $0x30] sm:$0xff] %v2689
    %2738 = vst [vmem:[#allocation2 + $0x38] sm:$0xff] %v2709
    %2739 = vst [vmem:[#allocation2 + $0x40] sm:$0xff] %v2729
    %v2740 = vld [vmem:[#allocation2] sm:$0xff]
    %v2741 = vld [vmem:[#allocation2 + $0x8] sm:$0xff]
    %v2742 = vld [vmem:[#allocation2 + $0x10] sm:$0xff]
    %v2743 = vld [vmem:[#allocation2 + $0x18] sm:$0xff]
    %v2744 = vld [vmem:[#allocation2 + $0x20] sm:$0xff]
    %v2745 = vld [vmem:[#allocation2 + $0x28] sm:$0xff]
    %v2746 = vld [vmem:[#allocation2 + $0x30] sm:$0xff]
    %v2747 = vld [vmem:[#allocation2 + $0x38] sm:$0xff]
    %v2748 = vld [vmem:[#allocation2 + $0x40] sm:$0xff]
    %2750 = vset.pattern.permute.xlu0 0
    %2751 = vperm.xlu0 %2750, %v2402
    %v2752 = vpop.permute.xlu0 %2751
    %v2755 = vsel %vm519, %v2401, 0
    %2757 = vmatpush.msra.mxu0 0.0
    %2758 = vmatpush.msra.mxu0 0.0
    %2759 = vmatpush.msra.mxu0 0.0
    %2760 = vmatpush.msra.mxu0 0.0
    %2761 = vmatpush.msra.mxu0 0.0
    %2762 = vmatpush.msra.mxu0 0.0
    %2763 = vmatpush.msra.mxu0 0.0
    %2764 = vmatpush.msra.mxu0 %v2748
    %2765 = vmatpush.msra.mxu0 %v2747
    %2766 = vmatpush.msra.mxu0 %v2746
    %2767 = vmatpush.msra.mxu0 %v2745
    %2768 = vmatpush.msra.mxu0 %v2744
    %2769 = vmatpush.msra.mxu0 %v2743
    %2770 = vmatpush.msra.mxu0 %v2742
    %2771 = vmatpush.msra.mxu0 %v2741
    %2772 = vmatpush.msra.mxu0 %v2740
    %2773 = vmatmul.f32.gmra.mxu0 %v2755
    %v2774 = vpop.f32.mrf.mxu0
    %v2775 = vadd.f32 %v2752, %v2774
    %2776 = vdwg.mxu0
    %vm2777 = vcmp.gt.f32.partialorder %v2775, 0.0
    %v2778 = vmul.f32 %v2775, 0.2
    %v2779 = vsel %vm2777, %v2775, %v2778
    %v2780 = vld [vmem:[#allocation4] sm:$0xff]
    %v2781 = vld [vmem:[#allocation4 + $0x8] sm:$0xff]
    %v2782 = vld [vmem:[#allocation4 + $0x10] sm:$0xff]
    %v2783 = vld [vmem:[#allocation4 + $0x18] sm:$0xff]
    %v2784 = vld [vmem:[#allocation4 + $0x20] sm:$0xff]
    %v2785 = vld [vmem:[#allocation4 + $0x28] sm:$0xff]
    %v2786 = vld [vmem:[#allocation4 + $0x30] sm:$0xff]
    %v2787 = vld [vmem:[#allocation4 + $0x38] sm:$0xff]
    %v2788 = vld [vmem:[#allocation4 + $0x40] sm:$0xff]
    %v2789 = vld [vmem:[#allocation4 + $0x48] sm:$0xff]
    %v2790 = vld [vmem:[#allocation4 + $0x50] sm:$0xff]
    %v2791 = vld [vmem:[#allocation4 + $0x58] sm:$0xff]
    %v2792 = vld [vmem:[#allocation4 + $0x60] sm:$0xff]
    %v2793 = vld [vmem:[#allocation4 + $0x68] sm:$0xff]
    %v2794 = vld [vmem:[#allocation4 + $0x70] sm:$0xff]
    %v2795 = vld [vmem:[#allocation4 + $0x78] sm:$0xff]
    %v2796 = vld [vmem:[#allocation4 + $0x80] sm:$0xff]
    %v2797 = vld [vmem:[#allocation4 + $0x88] sm:$0xff]
    %v2798 = vld [vmem:[#allocation4 + $0x90] sm:$0xff]
    %v2799 = vld [vmem:[#allocation4 + $0x98] sm:$0xff]
    %v2800 = vld [vmem:[#allocation4 + $0xa0] sm:$0xff]
    %v2801 = vld [vmem:[#allocation4 + $0xa8] sm:$0xff]
    %v2802 = vld [vmem:[#allocation4 + $0xb0] sm:$0xff]
    %v2803 = vld [vmem:[#allocation4 + $0xb8] sm:$0xff]
    %v2804 = vld [vmem:[#allocation4 + $0xc0] sm:$0xff]
    %v2805 = vld [vmem:[#allocation4 + $0xc8] sm:$0xff]
    %v2806 = vld [vmem:[#allocation4 + $0xd0] sm:$0xff]
    %v2807 = vld [vmem:[#allocation4 + $0xd8] sm:$0xff]
    %v2808 = vld [vmem:[#allocation4 + $0xe0] sm:$0xff]
    %v2809 = vld [vmem:[#allocation4 + $0xe8] sm:$0xff]
    %v2810 = vld [vmem:[#allocation4 + $0xf0] sm:$0xff]
    %v2811 = vld [vmem:[#allocation4 + $0xf8] sm:$0xff]
    %v2812 = vld [vmem:[#allocation4 + $0x100] sm:$0xff]
    %v2813 = vld [vmem:[#allocation4 + $0x108] sm:$0xff]
    %v2814 = vld [vmem:[#allocation4 + $0x110] sm:$0xff]
    %v2815 = vld [vmem:[#allocation4 + $0x118] sm:$0xff]
    %v2816 = vld [vmem:[#allocation4 + $0x120] sm:$0xff]
    %v2817 = vld [vmem:[#allocation4 + $0x128] sm:$0xff]
    %v2818 = vld [vmem:[#allocation4 + $0x130] sm:$0xff]
    %v2819 = vld [vmem:[#allocation4 + $0x138] sm:$0xff]
    %v2820 = vld [vmem:[#allocation4 + $0x140] sm:$0xff]
    %v2821 = vld [vmem:[#allocation4 + $0x148] sm:$0xff]
    %v2822 = vld [vmem:[#allocation4 + $0x150] sm:$0xff]
    %v2823 = vld [vmem:[#allocation4 + $0x158] sm:$0xff]
    %v2824 = vld [vmem:[#allocation4 + $0x160] sm:$0xff]
    %v2825 = vld [vmem:[#allocation4 + $0x168] sm:$0xff]
    %v2826 = vld [vmem:[#allocation4 + $0x170] sm:$0xff]
    %v2827 = vld [vmem:[#allocation4 + $0x178] sm:$0xff]
    %v2828 = vld [vmem:[#allocation4 + $0x180] sm:$0xff]
    %v2829 = vld [vmem:[#allocation4 + $0x188] sm:$0xff]
    %v2830 = vld [vmem:[#allocation4 + $0x190] sm:$0xff]
    %v2831 = vld [vmem:[#allocation4 + $0x198] sm:$0xff]
    %v2832 = vld [vmem:[#allocation4 + $0x1a0] sm:$0xff]
    %v2833 = vld [vmem:[#allocation4 + $0x1a8] sm:$0xff]
    %v2834 = vld [vmem:[#allocation4 + $0x1b0] sm:$0xff]
    %v2835 = vld [vmem:[#allocation4 + $0x1b8] sm:$0xff]
    %v2836 = vld [vmem:[#allocation4 + $0x1c0] sm:$0xff]
    %v2837 = vld [vmem:[#allocation4 + $0x1c8] sm:$0xff]
    %v2838 = vld [vmem:[#allocation4 + $0x1d0] sm:$0xff]
    %v2839 = vld [vmem:[#allocation4 + $0x1d8] sm:$0xff]
    %v2840 = vld [vmem:[#allocation4 + $0x1e0] sm:$0xff]
    %v2841 = vld [vmem:[#allocation4 + $0x1e8] sm:$0xff]
    %v2842 = vld [vmem:[#allocation4 + $0x1f0] sm:$0xff]
    %v2843 = vld [vmem:[#allocation4 + $0x1f8] sm:$0xff]
    %v2844 = vld [vmem:[#allocation4 + $0x200] sm:$0xff]
    %v2845 = vld [vmem:[#allocation4 + $0x208] sm:$0xff]
    %v2846 = vld [vmem:[#allocation4 + $0x210] sm:$0xff]
    %v2847 = vld [vmem:[#allocation4 + $0x218] sm:$0xff]
    %v2848 = vld [vmem:[#allocation4 + $0x220] sm:$0xff]
    %v2849 = vld [vmem:[#allocation4 + $0x228] sm:$0xff]
    %v2850 = vld [vmem:[#allocation4 + $0x230] sm:$0xff]
    %v2851 = vld [vmem:[#allocation4 + $0x238] sm:$0xff]
    %v2852 = vld [vmem:[#allocation4 + $0x240] sm:$0xff]
    %v2853 = vld [vmem:[#allocation4 + $0x248] sm:$0xff]
    %v2854 = vld [vmem:[#allocation4 + $0x250] sm:$0xff]
    %v2855 = vld [vmem:[#allocation4 + $0x258] sm:$0xff]
    %v2856 = vld [vmem:[#allocation4 + $0x260] sm:$0xff]
    %v2857 = vld [vmem:[#allocation4 + $0x268] sm:$0xff]
    %v2858 = vld [vmem:[#allocation4 + $0x270] sm:$0xff]
    %v2859 = vld [vmem:[#allocation4 + $0x278] sm:$0xff]
    %v2860 = vld [vmem:[#allocation4 + $0x280] sm:$0xff]
    %v2861 = vld [vmem:[#allocation4 + $0x288] sm:$0xff]
    %v2862 = vld [vmem:[#allocation4 + $0x290] sm:$0xff]
    %v2863 = vld [vmem:[#allocation4 + $0x298] sm:$0xff]
    %v2864 = vld [vmem:[#allocation4 + $0x2a0] sm:$0xff]
    %v2865 = vld [vmem:[#allocation4 + $0x2a8] sm:$0xff]
    %v2866 = vld [vmem:[#allocation4 + $0x2b0] sm:$0xff]
    %v2867 = vld [vmem:[#allocation4 + $0x2b8] sm:$0xff]
    %v2868 = vld [vmem:[#allocation4 + $0x2c0] sm:$0xff]
    %v2869 = vld [vmem:[#allocation4 + $0x2c8] sm:$0xff]
    %v2870 = vld [vmem:[#allocation4 + $0x2d0] sm:$0xff]
    %v2871 = vld [vmem:[#allocation4 + $0x2d8] sm:$0xff]
    %v2872 = vld [vmem:[#allocation4 + $0x2e0] sm:$0xff]
    %v2873 = vld [vmem:[#allocation4 + $0x2e8] sm:$0xff]
    %v2874 = vld [vmem:[#allocation4 + $0x2f0] sm:$0xff]
    %v2875 = vld [vmem:[#allocation4 + $0x2f8] sm:$0xff]
    %v2876 = vld [vmem:[#allocation4 + $0x300] sm:$0xff]
    %v2877 = vld [vmem:[#allocation4 + $0x308] sm:$0xff]
    %v2878 = vld [vmem:[#allocation4 + $0x310] sm:$0xff]
    %v2879 = vld [vmem:[#allocation4 + $0x318] sm:$0xff]
    %v2880 = vld [vmem:[#allocation4 + $0x320] sm:$0xff]
    %v2881 = vld [vmem:[#allocation4 + $0x328] sm:$0xff]
    %v2882 = vld [vmem:[#allocation4 + $0x330] sm:$0xff]
    %v2883 = vld [vmem:[#allocation4 + $0x338] sm:$0xff]
    %v2884 = vld [vmem:[#allocation4 + $0x340] sm:$0xff]
    %v2885 = vld [vmem:[#allocation4 + $0x348] sm:$0xff]
    %v2886 = vld [vmem:[#allocation4 + $0x350] sm:$0xff]
    %v2887 = vld [vmem:[#allocation4 + $0x358] sm:$0xff]
    %v2888 = vld [vmem:[#allocation4 + $0x360] sm:$0xff]
    %v2889 = vld [vmem:[#allocation4 + $0x368] sm:$0xff]
    %v2890 = vld [vmem:[#allocation4 + $0x370] sm:$0xff]
    %v2891 = vld [vmem:[#allocation4 + $0x378] sm:$0xff]
    %v2892 = vld [vmem:[#allocation4 + $0x380] sm:$0xff]
    %v2893 = vld [vmem:[#allocation4 + $0x388] sm:$0xff]
    %v2894 = vld [vmem:[#allocation4 + $0x390] sm:$0xff]
    %v2895 = vld [vmem:[#allocation4 + $0x398] sm:$0xff]
    %v2896 = vld [vmem:[#allocation4 + $0x3a0] sm:$0xff]
    %v2897 = vld [vmem:[#allocation4 + $0x3a8] sm:$0xff]
    %v2898 = vld [vmem:[#allocation4 + $0x3b0] sm:$0xff]
    %v2899 = vld [vmem:[#allocation4 + $0x3b8] sm:$0xff]
    %v2900 = vld [vmem:[#allocation4 + $0x3c0] sm:$0xff]
    %v2901 = vld [vmem:[#allocation4 + $0x3c8] sm:$0xff]
    %v2902 = vld [vmem:[#allocation4 + $0x3d0] sm:$0xff]
    %v2903 = vld [vmem:[#allocation4 + $0x3d8] sm:$0xff]
    %v2904 = vld [vmem:[#allocation4 + $0x3e0] sm:$0xff]
    %v2905 = vld [vmem:[#allocation4 + $0x3e8] sm:$0xff]
    %v2906 = vld [vmem:[#allocation4 + $0x3f0] sm:$0xff]
    %v2907 = vld [vmem:[#allocation4 + $0x3f8] sm:$0xff]
    %v2908 = vld [vmem:[#allocation4 + $0x400] sm:$0xff]
    %v2909 = vld [vmem:[#allocation4 + $0x408] sm:$0xff]
    %v2910 = vld [vmem:[#allocation4 + $0x410] sm:$0xff]
    %v2911 = vld [vmem:[#allocation4 + $0x418] sm:$0xff]
    %v2912 = vld [vmem:[#allocation4 + $0x420] sm:$0xff]
    %v2913 = vld [vmem:[#allocation4 + $0x428] sm:$0xff]
    %v2914 = vld [vmem:[#allocation4 + $0x430] sm:$0xff]
    %v2915 = vld [vmem:[#allocation4 + $0x438] sm:$0xff]
    %v2916 = vld [vmem:[#allocation4 + $0x440] sm:$0xff]
    %v2917 = vld [vmem:[#allocation4 + $0x448] sm:$0xff]
    %v2918 = vld [vmem:[#allocation4 + $0x450] sm:$0xff]
    %v2919 = vld [vmem:[#allocation4 + $0x458] sm:$0xff]
    %v2920 = vld [vmem:[#allocation4 + $0x460] sm:$0xff]
    %v2921 = vld [vmem:[#allocation4 + $0x468] sm:$0xff]
    %v2922 = vld [vmem:[#allocation4 + $0x470] sm:$0xff]
    %v2923 = vld [vmem:[#allocation4 + $0x478] sm:$0xff]
    %2924 = vmatpush.msra.mxu0 %v2915
    %2925 = vmatpush.msra.mxu0 %v2906
    %2926 = vmatpush.msra.mxu0 %v2897
    %2927 = vmatpush.msra.mxu0 %v2888
    %2928 = vmatpush.msra.mxu0 %v2879
    %2929 = vmatpush.msra.mxu0 %v2870
    %2930 = vmatpush.msra.mxu0 %v2861
    %2931 = vmatpush.msra.mxu0 %v2852
    %2932 = vmatpush.msra.mxu0 %v2843
    %2933 = vmatpush.msra.mxu0 %v2834
    %2934 = vmatpush.msra.mxu0 %v2825
    %2935 = vmatpush.msra.mxu0 %v2816
    %2936 = vmatpush.msra.mxu0 %v2807
    %2937 = vmatpush.msra.mxu0 %v2798
    %2938 = vmatpush.msra.mxu0 %v2789
    %2939 = vmatpush.msra.mxu0 %v2780
    %2940 = vmatmul.f32.gmra.mxu0 %v2779
    %v2941 = vpop.f32.mrf.mxu0
    %v2942 = vadd.f32 0.0, %v2941
    %2943 = vdwg.mxu0
    %2944 = vmatpush.msra.mxu0 %v2916
    %2945 = vmatpush.msra.mxu0 %v2907
    %2946 = vmatpush.msra.mxu0 %v2898
    %2947 = vmatpush.msra.mxu0 %v2889
    %2948 = vmatpush.msra.mxu0 %v2880
    %2949 = vmatpush.msra.mxu0 %v2871
    %2950 = vmatpush.msra.mxu0 %v2862
    %2951 = vmatpush.msra.mxu0 %v2853
    %2952 = vmatpush.msra.mxu0 %v2844
    %2953 = vmatpush.msra.mxu0 %v2835
    %2954 = vmatpush.msra.mxu0 %v2826
    %2955 = vmatpush.msra.mxu0 %v2817
    %2956 = vmatpush.msra.mxu0 %v2808
    %2957 = vmatpush.msra.mxu0 %v2799
    %2958 = vmatpush.msra.mxu0 %v2790
    %2959 = vmatpush.msra.mxu0 %v2781
    %2960 = vmatmul.f32.gmra.mxu0 %v2779
    %v2961 = vpop.f32.mrf.mxu0
    %v2962 = vadd.f32 0.0, %v2961
    %2963 = vdwg.mxu0
    %2964 = vmatpush.msra.mxu0 %v2917
    %2965 = vmatpush.msra.mxu0 %v2908
    %2966 = vmatpush.msra.mxu0 %v2899
    %2967 = vmatpush.msra.mxu0 %v2890
    %2968 = vmatpush.msra.mxu0 %v2881
    %2969 = vmatpush.msra.mxu0 %v2872
    %2970 = vmatpush.msra.mxu0 %v2863
    %2971 = vmatpush.msra.mxu0 %v2854
    %2972 = vmatpush.msra.mxu0 %v2845
    %2973 = vmatpush.msra.mxu0 %v2836
    %2974 = vmatpush.msra.mxu0 %v2827
    %2975 = vmatpush.msra.mxu0 %v2818
    %2976 = vmatpush.msra.mxu0 %v2809
    %2977 = vmatpush.msra.mxu0 %v2800
    %2978 = vmatpush.msra.mxu0 %v2791
    %2979 = vmatpush.msra.mxu0 %v2782
    %2980 = vmatmul.f32.gmra.mxu0 %v2779
    %v2981 = vpop.f32.mrf.mxu0
    %v2982 = vadd.f32 0.0, %v2981
    %2983 = vdwg.mxu0
    %2984 = vmatpush.msra.mxu0 %v2918
    %2985 = vmatpush.msra.mxu0 %v2909
    %2986 = vmatpush.msra.mxu0 %v2900
    %2987 = vmatpush.msra.mxu0 %v2891
    %2988 = vmatpush.msra.mxu0 %v2882
    %2989 = vmatpush.msra.mxu0 %v2873
    %2990 = vmatpush.msra.mxu0 %v2864
    %2991 = vmatpush.msra.mxu0 %v2855
    %2992 = vmatpush.msra.mxu0 %v2846
    %2993 = vmatpush.msra.mxu0 %v2837
    %2994 = vmatpush.msra.mxu0 %v2828
    %2995 = vmatpush.msra.mxu0 %v2819
    %2996 = vmatpush.msra.mxu0 %v2810
    %2997 = vmatpush.msra.mxu0 %v2801
    %2998 = vmatpush.msra.mxu0 %v2792
    %2999 = vmatpush.msra.mxu0 %v2783
    %3000 = vmatmul.f32.gmra.mxu0 %v2779
    %v3001 = vpop.f32.mrf.mxu0
    %v3002 = vadd.f32 0.0, %v3001
    %3003 = vdwg.mxu0
    %3004 = vmatpush.msra.mxu0 %v2919
    %3005 = vmatpush.msra.mxu0 %v2910
    %3006 = vmatpush.msra.mxu0 %v2901
    %3007 = vmatpush.msra.mxu0 %v2892
    %3008 = vmatpush.msra.mxu0 %v2883
    %3009 = vmatpush.msra.mxu0 %v2874
    %3010 = vmatpush.msra.mxu0 %v2865
    %3011 = vmatpush.msra.mxu0 %v2856
    %3012 = vmatpush.msra.mxu0 %v2847
    %3013 = vmatpush.msra.mxu0 %v2838
    %3014 = vmatpush.msra.mxu0 %v2829
    %3015 = vmatpush.msra.mxu0 %v2820
    %3016 = vmatpush.msra.mxu0 %v2811
    %3017 = vmatpush.msra.mxu0 %v2802
    %3018 = vmatpush.msra.mxu0 %v2793
    %3019 = vmatpush.msra.mxu0 %v2784
    %3020 = vmatmul.f32.gmra.mxu0 %v2779
    %v3021 = vpop.f32.mrf.mxu0
    %v3022 = vadd.f32 0.0, %v3021
    %3023 = vdwg.mxu0
    %3024 = vmatpush.msra.mxu0 %v2920
    %3025 = vmatpush.msra.mxu0 %v2911
    %3026 = vmatpush.msra.mxu0 %v2902
    %3027 = vmatpush.msra.mxu0 %v2893
    %3028 = vmatpush.msra.mxu0 %v2884
    %3029 = vmatpush.msra.mxu0 %v2875
    %3030 = vmatpush.msra.mxu0 %v2866
    %3031 = vmatpush.msra.mxu0 %v2857
    %3032 = vmatpush.msra.mxu0 %v2848
    %3033 = vmatpush.msra.mxu0 %v2839
    %3034 = vmatpush.msra.mxu0 %v2830
    %3035 = vmatpush.msra.mxu0 %v2821
    %3036 = vmatpush.msra.mxu0 %v2812
    %3037 = vmatpush.msra.mxu0 %v2803
    %3038 = vmatpush.msra.mxu0 %v2794
    %3039 = vmatpush.msra.mxu0 %v2785
    %3040 = vmatmul.f32.gmra.mxu0 %v2779
    %v3041 = vpop.f32.mrf.mxu0
    %v3042 = vadd.f32 0.0, %v3041
    %3043 = vdwg.mxu0
    %3044 = vmatpush.msra.mxu0 %v2921
    %3045 = vmatpush.msra.mxu0 %v2912
    %3046 = vmatpush.msra.mxu0 %v2903
    %3047 = vmatpush.msra.mxu0 %v2894
    %3048 = vmatpush.msra.mxu0 %v2885
    %3049 = vmatpush.msra.mxu0 %v2876
    %3050 = vmatpush.msra.mxu0 %v2867
    %3051 = vmatpush.msra.mxu0 %v2858
    %3052 = vmatpush.msra.mxu0 %v2849
    %3053 = vmatpush.msra.mxu0 %v2840
    %3054 = vmatpush.msra.mxu0 %v2831
    %3055 = vmatpush.msra.mxu0 %v2822
    %3056 = vmatpush.msra.mxu0 %v2813
    %3057 = vmatpush.msra.mxu0 %v2804
    %3058 = vmatpush.msra.mxu0 %v2795
    %3059 = vmatpush.msra.mxu0 %v2786
    %3060 = vmatmul.f32.gmra.mxu0 %v2779
    %v3061 = vpop.f32.mrf.mxu0
    %v3062 = vadd.f32 0.0, %v3061
    %3063 = vdwg.mxu0
    %3064 = vmatpush.msra.mxu0 %v2922
    %3065 = vmatpush.msra.mxu0 %v2913
    %3066 = vmatpush.msra.mxu0 %v2904
    %3067 = vmatpush.msra.mxu0 %v2895
    %3068 = vmatpush.msra.mxu0 %v2886
    %3069 = vmatpush.msra.mxu0 %v2877
    %3070 = vmatpush.msra.mxu0 %v2868
    %3071 = vmatpush.msra.mxu0 %v2859
    %3072 = vmatpush.msra.mxu0 %v2850
    %3073 = vmatpush.msra.mxu0 %v2841
    %3074 = vmatpush.msra.mxu0 %v2832
    %3075 = vmatpush.msra.mxu0 %v2823
    %3076 = vmatpush.msra.mxu0 %v2814
    %3077 = vmatpush.msra.mxu0 %v2805
    %3078 = vmatpush.msra.mxu0 %v2796
    %3079 = vmatpush.msra.mxu0 %v2787
    %3080 = vmatmul.f32.gmra.mxu0 %v2779
    %v3081 = vpop.f32.mrf.mxu0
    %v3082 = vadd.f32 0.0, %v3081
    %3083 = vdwg.mxu0
    %3084 = vmatpush.msra.mxu0 %v2923
    %3085 = vmatpush.msra.mxu0 %v2914
    %3086 = vmatpush.msra.mxu0 %v2905
    %3087 = vmatpush.msra.mxu0 %v2896
    %3088 = vmatpush.msra.mxu0 %v2887
    %3089 = vmatpush.msra.mxu0 %v2878
    %3090 = vmatpush.msra.mxu0 %v2869
    %3091 = vmatpush.msra.mxu0 %v2860
    %3092 = vmatpush.msra.mxu0 %v2851
    %3093 = vmatpush.msra.mxu0 %v2842
    %3094 = vmatpush.msra.mxu0 %v2833
    %3095 = vmatpush.msra.mxu0 %v2824
    %3096 = vmatpush.msra.mxu0 %v2815
    %3097 = vmatpush.msra.mxu0 %v2806
    %3098 = vmatpush.msra.mxu0 %v2797
    %3099 = vmatpush.msra.mxu0 %v2788
    %3100 = vmatmul.f32.gmra.mxu0 %v2779
    %v3101 = vpop.f32.mrf.mxu0
    %v3102 = vadd.f32 0.0, %v3101
    %3103 = vdwg.mxu0
    %3104 = vst [vmem:[#allocation2] sm:$0xff] %v2942
    %3105 = vst [vmem:[#allocation2 + $0x8] sm:$0xff] %v2962
    %3106 = vst [vmem:[#allocation2 + $0x10] sm:$0xff] %v2982
    %3107 = vst [vmem:[#allocation2 + $0x18] sm:$0xff] %v3002
    %3108 = vst [vmem:[#allocation2 + $0x20] sm:$0xff] %v3022
    %3109 = vst [vmem:[#allocation2 + $0x28] sm:$0xff] %v3042
    %3110 = vst [vmem:[#allocation2 + $0x30] sm:$0xff] %v3062
    %3111 = vst [vmem:[#allocation2 + $0x38] sm:$0xff] %v3082
    %3112 = vst [vmem:[#allocation2 + $0x40] sm:$0xff] %v3102
    %v3113 = vld [vmem:[#allocation2] sm:$0xff]
    %v3114 = vld [vmem:[#allocation2 + $0x8] sm:$0xff]
    %v3115 = vld [vmem:[#allocation2 + $0x10] sm:$0xff]
    %v3116 = vld [vmem:[#allocation2 + $0x18] sm:$0xff]
    %v3117 = vld [vmem:[#allocation2 + $0x20] sm:$0xff]
    %v3118 = vld [vmem:[#allocation2 + $0x28] sm:$0xff]
    %v3119 = vld [vmem:[#allocation2 + $0x30] sm:$0xff]
    %v3120 = vld [vmem:[#allocation2 + $0x38] sm:$0xff]
    %v3121 = vld [vmem:[#allocation2 + $0x40] sm:$0xff]
    %v3123 = vsel %vm519, %v2403, 0
    %3125 = vmatpush.msra.mxu0 0.0
    %3126 = vmatpush.msra.mxu0 0.0
    %3127 = vmatpush.msra.mxu0 0.0
    %3128 = vmatpush.msra.mxu0 0.0
    %3129 = vmatpush.msra.mxu0 0.0
    %3130 = vmatpush.msra.mxu0 0.0
    %3131 = vmatpush.msra.mxu0 0.0
    %3132 = vmatpush.msra.mxu0 %v3121
    %3133 = vmatpush.msra.mxu0 %v3120
    %3134 = vmatpush.msra.mxu0 %v3119
    %3135 = vmatpush.msra.mxu0 %v3118
    %3136 = vmatpush.msra.mxu0 %v3117
    %3137 = vmatpush.msra.mxu0 %v3116
    %3138 = vmatpush.msra.mxu0 %v3115
    %3139 = vmatpush.msra.mxu0 %v3114
    %3140 = vmatpush.msra.mxu0 %v3113
    %3141 = vmatmul.f32.gmra.mxu0 %v3123
    %v3142 = vpop.f32.mrf.mxu0
    %v3143 = vadd.f32 0.0, %v3142
    %3144 = vdwg.mxu0
    %v3145 = vmul.f32 %v3143, 0.1
    %v3146 = vadd.f32 %v2400, %v3145
    %v3147 = vmul.f32 %v2217, %v3146
    %v3148 = vadd.f32 %v2219, %v3147
    %s3149 = scalar_lea.vmem %s63, 16
    %3150 = vst [vmem:[%s3149] sm:$0xff] %v3148
    %v3151 = vld [vmem:[%s33] sm:$0xff]
    %v3152 = vld [vmem:[%s35] sm:$0xff]
    %v3153 = vld [vmem:[%s37] sm:$0xff]
    %v3154 = vld [vmem:[%s37 + $0x8] sm:$0xff]
    %v3155 = vld [vmem:[%s37 + $0x10] sm:$0xff]
    %v3156 = vld [vmem:[%s37 + $0x18] sm:$0x1]
    %v3157 = vld [vmem:[%s31] sm:$0xff]
    %v3158 = vld [vmem:[%s31 + $0x8] sm:$0xff]
    %v3159 = vld [vmem:[%s31 + $0x10] sm:$0xff]
    %v3160 = vld [vmem:[%s31 + $0x18] sm:$0x1]
    %vm3161 = vcmp.gt.f32.partialorder %v3148, 0.0
    %v3162 = vmul.f32 %v3148, 0.2
    %v3163 = vsel %vm3161, %v3148, %v3162
    %3165 = vset.pattern.permute.xlu0 0
    %3166 = vperm.xlu0 %3165, %v3152
    %v3167 = vpop.permute.xlu0 %3166
    %v3170 = vsel %vm1391, %v3151, 0
    %3172 = vmatpush.msra.mxu0 0.0
    %3173 = vmatpush.msra.mxu0 0.0
    %3174 = vmatpush.msra.mxu0 0.0
    %3175 = vmatpush.msra.mxu0 0.0
    %3176 = vmatpush.msra.mxu0 0.0
    %3177 = vmatpush.msra.mxu0 0.0
    %3178 = vmatpush.msra.mxu0 0.0
    %3179 = vmatpush.msra.mxu0 0.0
    %3180 = vmatpush.msra.mxu0 0.0
    %3181 = vmatpush.msra.mxu0 0.0
    %3182 = vmatpush.msra.mxu0 0.0
    %3183 = vmatpush.msra.mxu0 0.0
    %3184 = vmatpush.msra.mxu0 0.0
    %3185 = vmatpush.msra.mxu0 0.0
    %3186 = vmatpush.msra.mxu0 0.0
    %3187 = vmatpush.msra.mxu0 %v3163
    %3188 = vmatmul.f32.gmra.mxu0 %v3170
    %v3189 = vpop.f32.mrf.mxu0
    %v3190 = vadd.f32 %v3167, %v3189
    %3191 = vdwg.mxu0
    %vm3192 = vcmp.gt.f32.partialorder %v3190, 0.0
    %v3193 = vmul.f32 %v3190, 0.2
    %v3194 = vsel %vm3192, %v3190, %v3193
    %v3196 = vsel %vm1391, %v3153, 0
    %v3199 = vsel %vm1391, %v3154, 0
    %v3202 = vsel %vm1391, %v3155, 0
    %v3205 = vsel %vm1391, %v3156, 0
    %3207 = vmatpush.msra.mxu0 0.0
    %3208 = vmatpush.msra.mxu0 0.0
    %3209 = vmatpush.msra.mxu0 0.0
    %3210 = vmatpush.msra.mxu0 0.0
    %3211 = vmatpush.msra.mxu0 0.0
    %3212 = vmatpush.msra.mxu0 0.0
    %3213 = vmatpush.msra.mxu0 0.0
    %3214 = vmatpush.msra.mxu0 0.0
    %3215 = vmatpush.msra.mxu0 0.0
    %3216 = vmatpush.msra.mxu0 0.0
    %3217 = vmatpush.msra.mxu0 0.0
    %3218 = vmatpush.msra.mxu0 0.0
    %3219 = vmatpush.msra.mxu0 0.0
    %3220 = vmatpush.msra.mxu0 0.0
    %3221 = vmatpush.msra.mxu0 0.0
    %3222 = vmatpush.msra.mxu0 %v3194
    %3223 = vmatmul.f32.gmra.mxu0 %v3196
    %v3224 = vpop.f32.mrf.mxu0
    %v3225 = vadd.f32 0.0, %v3224
    %3226 = vmatmul.f32.gmra.mxu0 %v3199
    %v3227 = vpop.f32.mrf.mxu0
    %v3228 = vadd.f32 0.0, %v3227
    %3229 = vmatmul.f32.gmra.mxu0 %v3202
    %v3230 = vpop.f32.mrf.mxu0
    %v3231 = vadd.f32 0.0, %v3230
    %3232 = vmatmul.f32.gmra.mxu0 %v3205
    %v3233 = vpop.f32.mrf.mxu0
    %v3234 = vadd.f32 0.0, %v3233
    %3235 = vdwg.mxu0
    %v3236 = vmul.f32 %v3225, 0.1
    %v3237 = vmul.f32 %v3228, 0.1
    %v3238 = vmul.f32 %v3231, 0.1
    %v3239 = vmul.f32 %v3234, 0.1
    %v3241 = vsel %vm1391, %v3157, 0
    %v3244 = vsel %vm1391, %v3158, 0
    %v3247 = vsel %vm1391, %v3159, 0
    %v3250 = vsel %vm1391, %v3160, 0
    %3252 = vmatpush.msra.mxu0 0.0
    %3253 = vmatpush.msra.mxu0 0.0
    %3254 = vmatpush.msra.mxu0 0.0
    %3255 = vmatpush.msra.mxu0 0.0
    %3256 = vmatpush.msra.mxu0 0.0
    %3257 = vmatpush.msra.mxu0 0.0
    %3258 = vmatpush.msra.mxu0 0.0
    %3259 = vmatpush.msra.mxu0 0.0
    %3260 = vmatpush.msra.mxu0 0.0
    %3261 = vmatpush.msra.mxu0 0.0
    %3262 = vmatpush.msra.mxu0 0.0
    %3263 = vmatpush.msra.mxu0 0.0
    %3264 = vmatpush.msra.mxu0 0.0
    %3265 = vmatpush.msra.mxu0 0.0
    %3266 = vmatpush.msra.mxu0 0.0
    %3267 = vmatpush.msra.mxu0 %v3148
    %3268 = vmatmul.f32.gmra.mxu0 %v3241
    %v3269 = vpop.f32.mrf.mxu0
    %v3270 = vadd.f32 %v3236, %v3269
    %3271 = vmatmul.f32.gmra.mxu0 %v3244
    %v3272 = vpop.f32.mrf.mxu0
    %v3273 = vadd.f32 %v3237, %v3272
    %3274 = vmatmul.f32.gmra.mxu0 %v3247
    %v3275 = vpop.f32.mrf.mxu0
    %v3276 = vadd.f32 %v3238, %v3275
    %3277 = vmatmul.f32.gmra.mxu0 %v3250
    %v3278 = vpop.f32.mrf.mxu0
    %v3279 = vadd.f32 %v3239, %v3278
    %3280 = vdwg.mxu0
    %v3281 = vld [vmem:[%s43] sm:$0xff]
    %v3282 = vld [vmem:[%s43 + $0x8] sm:$0xff]
    %v3283 = vld [vmem:[%s43 + $0x10] sm:$0xff]
    %v3284 = vld [vmem:[%s43 + $0x18] sm:$0xff]
    %v3285 = vld [vmem:[%s43 + $0x20] sm:$0xff]
    %v3286 = vld [vmem:[%s43 + $0x28] sm:$0xff]
    %v3287 = vld [vmem:[%s43 + $0x30] sm:$0xff]
    %v3288 = vld [vmem:[%s43 + $0x38] sm:$0xff]
    %v3289 = vld [vmem:[%s43 + $0x40] sm:$0xff]
    %v3290 = vld [vmem:[%s43 + $0x48] sm:$0xff]
    %v3291 = vld [vmem:[%s43 + $0x50] sm:$0xff]
    %v3292 = vld [vmem:[%s43 + $0x58] sm:$0xff]
    %v3293 = vld [vmem:[%s43 + $0x60] sm:$0xff]
    %v3294 = vld [vmem:[%s43 + $0x68] sm:$0xff]
    %v3295 = vld [vmem:[%s43 + $0x70] sm:$0xff]
    %v3296 = vld [vmem:[%s43 + $0x78] sm:$0xff]
    %3297 = vmatpush.msra.mxu0 %v3296
    %3298 = vmatpush.msra.mxu0 %v3295
    %3299 = vmatpush.msra.mxu0 %v3294
    %3300 = vmatpush.msra.mxu0 %v3293
    %3301 = vmatpush.msra.mxu0 %v3292
    %3302 = vmatpush.msra.mxu0 %v3291
    %3303 = vmatpush.msra.mxu0 %v3290
    %3304 = vmatpush.msra.mxu0 %v3289
    %3305 = vmatpush.msra.mxu0 %v3288
    %3306 = vmatpush.msra.mxu0 %v3287
    %3307 = vmatpush.msra.mxu0 %v3286
    %3308 = vmatpush.msra.mxu0 %v3285
    %3309 = vmatpush.msra.mxu0 %v3284
    %3310 = vmatpush.msra.mxu0 %v3283
    %3311 = vmatpush.msra.mxu0 %v3282
    %3312 = vmatpush.msra.mxu0 %v3281
    %3313 = vmatmul.f32.gmra.mxu0 %v3270
    %v3314 = vpop.f32.mrf.mxu0
    %v3315 = vadd.f32 0.0, %v3314
    %3316 = vdwg.mxu0
    %v3317 = vmul.f32 %v3315, 0.015625
    %v3318 = vld [vmem:[%s39] sm:$0xff]
    %v3319 = vld [vmem:[%s39 + $0x8] sm:$0xff]
    %v3320 = vld [vmem:[%s39 + $0x10] sm:$0xff]
    %v3321 = vld [vmem:[%s39 + $0x18] sm:$0xff]
    %v3322 = vld [vmem:[%s39 + $0x20] sm:$0xff]
    %v3323 = vld [vmem:[%s39 + $0x28] sm:$0xff]
    %v3324 = vld [vmem:[%s39 + $0x30] sm:$0xff]
    %v3325 = vld [vmem:[%s39 + $0x38] sm:$0xff]
    %v3327 = vsel %vm1391, %v3318, 0
    %v3330 = vsel %vm1391, %v3319, 0
    %v3333 = vsel %vm1391, %v3320, 0
    %v3336 = vsel %vm1391, %v3321, 0
    %v3339 = vsel %vm1391, %v3322, 0
    %v3342 = vsel %vm1391, %v3323, 0
    %v3345 = vsel %vm1391, %v3324, 0
    %v3348 = vsel %vm1391, %v3325, 0
    %3350 = vmatpush.msra.mxu0 0.0
    %3351 = vmatpush.msra.mxu0 0.0
    %3352 = vmatpush.msra.mxu0 0.0
    %3353 = vmatpush.msra.mxu0 0.0
    %3354 = vmatpush.msra.mxu0 0.0
    %3355 = vmatpush.msra.mxu0 0.0
    %3356 = vmatpush.msra.mxu0 0.0
    %3357 = vmatpush.msra.mxu0 0.0
    %3358 = vmatpush.msra.mxu0 0.0
    %3359 = vmatpush.msra.mxu0 0.0
    %3360 = vmatpush.msra.mxu0 0.0
    %3361 = vmatpush.msra.mxu0 0.0
    %3362 = vmatpush.msra.mxu0 0.0
    %3363 = vmatpush.msra.mxu0 0.0
    %3364 = vmatpush.msra.mxu0 0.0
    %3365 = vmatpush.msra.mxu0 %v3273
    %3366 = vmatmul.f32.gmra.mxu0 %v3327
    %v3367 = vpop.f32.mrf.mxu0
    %v3368 = vadd.f32 0.0, %v3367
    %3369 = vmatmul.f32.gmra.mxu0 %v3330
    %v3370 = vpop.f32.mrf.mxu0
    %v3371 = vadd.f32 0.0, %v3370
    %3372 = vmatmul.f32.gmra.mxu0 %v3333
    %v3373 = vpop.f32.mrf.mxu0
    %v3374 = vadd.f32 0.0, %v3373
    %3375 = vmatmul.f32.gmra.mxu0 %v3336
    %v3376 = vpop.f32.mrf.mxu0
    %v3377 = vadd.f32 0.0, %v3376
    %3378 = vmatmul.f32.gmra.mxu0 %v3339
    %v3379 = vpop.f32.mrf.mxu0
    %v3380 = vadd.f32 0.0, %v3379
    %3381 = vmatmul.f32.gmra.mxu0 %v3342
    %v3382 = vpop.f32.mrf.mxu0
    %v3383 = vadd.f32 0.0, %v3382
    %3384 = vmatmul.f32.gmra.mxu0 %v3345
    %v3385 = vpop.f32.mrf.mxu0
    %v3386 = vadd.f32 0.0, %v3385
    %3387 = vmatmul.f32.gmra.mxu0 %v3348
    %v3388 = vpop.f32.mrf.mxu0
    %v3389 = vadd.f32 0.0, %v3388
    %3390 = vdwg.mxu0
    %v3391 = vld [vmem:[%s41] sm:$0xff]
    %v3392 = vld [vmem:[%s41 + $0x8] sm:$0xff]
    %v3393 = vld [vmem:[%s41 + $0x10] sm:$0xff]
    %v3394 = vld [vmem:[%s41 + $0x18] sm:$0xff]
    %v3395 = vld [vmem:[%s41 + $0x20] sm:$0xff]
    %v3396 = vld [vmem:[%s41 + $0x28] sm:$0xff]
    %v3397 = vld [vmem:[%s41 + $0x30] sm:$0xff]
    %v3398 = vld [vmem:[%s41 + $0x38] sm:$0xff]
    %v3399 = vmul.f32 %v3368, %v3391
    %v3400 = vmul.f32 %v3371, %v3392
    %v3401 = vmul.f32 %v3374, %v3393
    %v3402 = vmul.f32 %v3377, %v3394
    %v3403 = vmul.f32 %v3380, %v3395
    %v3404 = vmul.f32 %v3383, %v3396
    %v3405 = vmul.f32 %v3386, %v3397
    %v3406 = vmul.f32 %v3389, %v3398
    %3407 = vmatpush.msra.mxu0 %v3296
    %3408 = vmatpush.msra.mxu0 %v3295
    %3409 = vmatpush.msra.mxu0 %v3294
    %3410 = vmatpush.msra.mxu0 %v3293
    %3411 = vmatpush.msra.mxu0 %v3292
    %3412 = vmatpush.msra.mxu0 %v3291
    %3413 = vmatpush.msra.mxu0 %v3290
    %3414 = vmatpush.msra.mxu0 %v3289
    %3415 = vmatpush.msra.mxu0 %v3288
    %3416 = vmatpush.msra.mxu0 %v3287
    %3417 = vmatpush.msra.mxu0 %v3286
    %3418 = vmatpush.msra.mxu0 %v3285
    %3419 = vmatpush.msra.mxu0 %v3284
    %3420 = vmatpush.msra.mxu0 %v3283
    %3421 = vmatpush.msra.mxu0 %v3282
    %3422 = vmatpush.msra.mxu0 %v3281
    %3423 = vmatmul.f32.gmra.mxu0 %v3399
    %v3424 = vpop.f32.mrf.mxu0
    %v3425 = vadd.f32 0.0, %v3424
    %3426 = vmatmul.f32.gmra.mxu0 %v3400
    %v3427 = vpop.f32.mrf.mxu0
    %v3428 = vadd.f32 0.0, %v3427
    %3429 = vmatmul.f32.gmra.mxu0 %v3401
    %v3430 = vpop.f32.mrf.mxu0
    %v3431 = vadd.f32 0.0, %v3430
    %3432 = vmatmul.f32.gmra.mxu0 %v3402
    %v3433 = vpop.f32.mrf.mxu0
    %v3434 = vadd.f32 0.0, %v3433
    %3435 = vmatmul.f32.gmra.mxu0 %v3403
    %v3436 = vpop.f32.mrf.mxu0
    %v3437 = vadd.f32 0.0, %v3436
    %3438 = vmatmul.f32.gmra.mxu0 %v3404
    %v3439 = vpop.f32.mrf.mxu0
    %v3440 = vadd.f32 0.0, %v3439
    %3441 = vmatmul.f32.gmra.mxu0 %v3405
    %v3442 = vpop.f32.mrf.mxu0
    %v3443 = vadd.f32 0.0, %v3442
    %3444 = vmatmul.f32.gmra.mxu0 %v3406
    %v3445 = vpop.f32.mrf.mxu0
    %v3446 = vadd.f32 0.0, %v3445
    %3447 = vdwg.mxu0
    %3448 = vmatpush.msra.mxu0 0.0
    %3449 = vmatpush.msra.mxu0 0.0
    %3450 = vmatpush.msra.mxu0 0.0
    %3451 = vmatpush.msra.mxu0 0.0
    %3452 = vmatpush.msra.mxu0 0.0
    %3453 = vmatpush.msra.mxu0 0.0
    %3454 = vmatpush.msra.mxu0 0.0
    %3455 = vmatpush.msra.mxu0 0.0
    %3456 = vmatpush.msra.mxu0 0.0
    %3457 = vmatpush.msra.mxu0 0.0
    %3458 = vmatpush.msra.mxu0 0.0
    %3459 = vmatpush.msra.mxu0 0.0
    %3460 = vmatpush.msra.mxu0 0.0
    %3461 = vmatpush.msra.mxu0 0.0
    %3462 = vmatpush.msra.mxu0 0.0
    %3463 = vmatpush.msra.mxu0 %v3276
    %3464 = vmatmul.f32.gmra.mxu0 %v3327
    %v3465 = vpop.f32.mrf.mxu0
    %v3466 = vadd.f32 0.0, %v3465
    %3467 = vmatmul.f32.gmra.mxu0 %v3330
    %v3468 = vpop.f32.mrf.mxu0
    %v3469 = vadd.f32 0.0, %v3468
    %3470 = vmatmul.f32.gmra.mxu0 %v3333
    %v3471 = vpop.f32.mrf.mxu0
    %v3472 = vadd.f32 0.0, %v3471
    %3473 = vmatmul.f32.gmra.mxu0 %v3336
    %v3474 = vpop.f32.mrf.mxu0
    %v3475 = vadd.f32 0.0, %v3474
    %3476 = vmatmul.f32.gmra.mxu0 %v3339
    %v3477 = vpop.f32.mrf.mxu0
    %v3478 = vadd.f32 0.0, %v3477
    %3479 = vmatmul.f32.gmra.mxu0 %v3342
    %v3480 = vpop.f32.mrf.mxu0
    %v3481 = vadd.f32 0.0, %v3480
    %3482 = vmatmul.f32.gmra.mxu0 %v3345
    %v3483 = vpop.f32.mrf.mxu0
    %v3484 = vadd.f32 0.0, %v3483
    %3485 = vmatmul.f32.gmra.mxu0 %v3348
    %v3486 = vpop.f32.mrf.mxu0
    %v3487 = vadd.f32 0.0, %v3486
    %3488 = vdwg.mxu0
    %s3489 = scalar_lea.vmem %s41, 64
    %v3490 = vld [vmem:[%s3489] sm:$0xff]
    %v3491 = vld [vmem:[%s3489 + $0x8] sm:$0xff]
    %v3492 = vld [vmem:[%s3489 + $0x10] sm:$0xff]
    %v3493 = vld [vmem:[%s3489 + $0x18] sm:$0xff]
    %v3494 = vld [vmem:[%s3489 + $0x20] sm:$0xff]
    %v3495 = vld [vmem:[%s3489 + $0x28] sm:$0xff]
    %v3496 = vld [vmem:[%s3489 + $0x30] sm:$0xff]
    %v3497 = vld [vmem:[%s3489 + $0x38] sm:$0xff]
    %v3498 = vmul.f32 %v3466, %v3490
    %v3499 = vmul.f32 %v3469, %v3491
    %v3500 = vmul.f32 %v3472, %v3492
    %v3501 = vmul.f32 %v3475, %v3493
    %v3502 = vmul.f32 %v3478, %v3494
    %v3503 = vmul.f32 %v3481, %v3495
    %v3504 = vmul.f32 %v3484, %v3496
    %v3505 = vmul.f32 %v3487, %v3497
    %3506 = vmatpush.msra.mxu0 %v3296
    %3507 = vmatpush.msra.mxu0 %v3295
    %3508 = vmatpush.msra.mxu0 %v3294
    %3509 = vmatpush.msra.mxu0 %v3293
    %3510 = vmatpush.msra.mxu0 %v3292
    %3511 = vmatpush.msra.mxu0 %v3291
    %3512 = vmatpush.msra.mxu0 %v3290
    %3513 = vmatpush.msra.mxu0 %v3289
    %3514 = vmatpush.msra.mxu0 %v3288
    %3515 = vmatpush.msra.mxu0 %v3287
    %3516 = vmatpush.msra.mxu0 %v3286
    %3517 = vmatpush.msra.mxu0 %v3285
    %3518 = vmatpush.msra.mxu0 %v3284
    %3519 = vmatpush.msra.mxu0 %v3283
    %3520 = vmatpush.msra.mxu0 %v3282
    %3521 = vmatpush.msra.mxu0 %v3281
    %3522 = vmatmul.f32.gmra.mxu0 %v3498
    %v3523 = vpop.f32.mrf.mxu0
    %v3524 = vadd.f32 0.0, %v3523
    %3525 = vmatmul.f32.gmra.mxu0 %v3499
    %v3526 = vpop.f32.mrf.mxu0
    %v3527 = vadd.f32 0.0, %v3526
    %3528 = vmatmul.f32.gmra.mxu0 %v3500
    %v3529 = vpop.f32.mrf.mxu0
    %v3530 = vadd.f32 0.0, %v3529
    %3531 = vmatmul.f32.gmra.mxu0 %v3501
    %v3532 = vpop.f32.mrf.mxu0
    %v3533 = vadd.f32 0.0, %v3532
    %3534 = vmatmul.f32.gmra.mxu0 %v3502
    %v3535 = vpop.f32.mrf.mxu0
    %v3536 = vadd.f32 0.0, %v3535
    %3537 = vmatmul.f32.gmra.mxu0 %v3503
    %v3538 = vpop.f32.mrf.mxu0
    %v3539 = vadd.f32 0.0, %v3538
    %3540 = vmatmul.f32.gmra.mxu0 %v3504
    %v3541 = vpop.f32.mrf.mxu0
    %v3542 = vadd.f32 0.0, %v3541
    %3543 = vmatmul.f32.gmra.mxu0 %v3505
    %v3544 = vpop.f32.mrf.mxu0
    %v3545 = vadd.f32 0.0, %v3544
    %3546 = vdwg.mxu0
    %v3547 = vperm.slane %v3279, 0
    %s3548 = scalar_lea.vmem %s41, 128
    %v3549 = vld [vmem:[%s3548] sm:$0xff]
    %v3550 = vld [vmem:[%s3548 + $0x8] sm:$0xff]
    %v3551 = vld [vmem:[%s3548 + $0x10] sm:$0xff]
    %v3552 = vld [vmem:[%s3548 + $0x18] sm:$0xff]
    %v3553 = vld [vmem:[%s3548 + $0x20] sm:$0xff]
    %v3554 = vld [vmem:[%s3548 + $0x28] sm:$0xff]
    %v3555 = vld [vmem:[%s3548 + $0x30] sm:$0xff]
    %v3556 = vld [vmem:[%s3548 + $0x38] sm:$0xff]
    %v3557 = vmul.f32 %v3547, %v3549
    %v3558 = vmul.f32 %v3547, %v3550
    %v3559 = vmul.f32 %v3547, %v3551
    %v3560 = vmul.f32 %v3547, %v3552
    %v3561 = vmul.f32 %v3547, %v3553
    %v3562 = vmul.f32 %v3547, %v3554
    %v3563 = vmul.f32 %v3547, %v3555
    %v3564 = vmul.f32 %v3547, %v3556
    %3565 = vmatpush.msra.mxu0 %v3296
    %3566 = vmatpush.msra.mxu0 %v3295
    %3567 = vmatpush.msra.mxu0 %v3294
    %3568 = vmatpush.msra.mxu0 %v3293
    %3569 = vmatpush.msra.mxu0 %v3292
    %3570 = vmatpush.msra.mxu0 %v3291
    %3571 = vmatpush.msra.mxu0 %v3290
    %3572 = vmatpush.msra.mxu0 %v3289
    %3573 = vmatpush.msra.mxu0 %v3288
    %3574 = vmatpush.msra.mxu0 %v3287
    %3575 = vmatpush.msra.mxu0 %v3286
    %3576 = vmatpush.msra.mxu0 %v3285
    %3577 = vmatpush.msra.mxu0 %v3284
    %3578 = vmatpush.msra.mxu0 %v3283
    %3579 = vmatpush.msra.mxu0 %v3282
    %3580 = vmatpush.msra.mxu0 %v3281
    %3581 = vmatmul.f32.gmra.mxu0 %v3557
    %v3582 = vpop.f32.mrf.mxu0
    %v3583 = vadd.f32 0.0, %v3582
    %3584 = vmatmul.f32.gmra.mxu0 %v3558
    %v3585 = vpop.f32.mrf.mxu0
    %v3586 = vadd.f32 0.0, %v3585
    %3587 = vmatmul.f32.gmra.mxu0 %v3559
    %v3588 = vpop.f32.mrf.mxu0
    %v3589 = vadd.f32 0.0, %v3588
    %3590 = vmatmul.f32.gmra.mxu0 %v3560
    %v3591 = vpop.f32.mrf.mxu0
    %v3592 = vadd.f32 0.0, %v3591
    %3593 = vmatmul.f32.gmra.mxu0 %v3561
    %v3594 = vpop.f32.mrf.mxu0
    %v3595 = vadd.f32 0.0, %v3594
    %3596 = vmatmul.f32.gmra.mxu0 %v3562
    %v3597 = vpop.f32.mrf.mxu0
    %v3598 = vadd.f32 0.0, %v3597
    %3599 = vmatmul.f32.gmra.mxu0 %v3563
    %v3600 = vpop.f32.mrf.mxu0
    %v3601 = vadd.f32 0.0, %v3600
    %3602 = vmatmul.f32.gmra.mxu0 %v3564
    %v3603 = vpop.f32.mrf.mxu0
    %v3604 = vadd.f32 0.0, %v3603
    %3605 = vdwg.mxu0
    %v3606 = vld [vmem:[%s45] sm:$0xff]
    %v3607 = vld [vmem:[%s45 + $0x8] sm:$0xff]
    %v3608 = vld [vmem:[%s45 + $0x10] sm:$0xff]
    %v3609 = vld [vmem:[%s45 + $0x18] sm:$0xff]
    %v3610 = vld [vmem:[%s45 + $0x20] sm:$0xff]
    %v3611 = vld [vmem:[%s45 + $0x28] sm:$0xff]
    %v3612 = vld [vmem:[%s45 + $0x30] sm:$0xff]
    %v3613 = vld [vmem:[%s45 + $0x38] sm:$0xff]
    %v3614 = vld [vmem:[#allocation6] sm:$0xff]
    %v3615 = vld [vmem:[#allocation6 + $0x8] sm:$0xff]
    %v3616 = vld [vmem:[#allocation6 + $0x10] sm:$0xff]
    %v3617 = vld [vmem:[#allocation6 + $0x18] sm:$0xff]
    %v3618 = vld [vmem:[#allocation6 + $0x20] sm:$0xff]
    %v3619 = vld [vmem:[#allocation6 + $0x28] sm:$0xff]
    %v3620 = vld [vmem:[#allocation6 + $0x30] sm:$0xff]
    %v3621 = vld [vmem:[#allocation6 + $0x38] sm:$0xff]
    %v3622 = vld [vmem:[#allocation6 + $0x40] sm:$0xff]
    %v3623 = vld [vmem:[#allocation6 + $0x48] sm:$0xff]
    %v3624 = vld [vmem:[#allocation6 + $0x50] sm:$0xff]
    %v3625 = vld [vmem:[#allocation6 + $0x58] sm:$0xff]
    %v3626 = vld [vmem:[#allocation6 + $0x60] sm:$0xff]
    %v3627 = vld [vmem:[#allocation6 + $0x68] sm:$0xff]
    %v3628 = vld [vmem:[#allocation6 + $0x70] sm:$0xff]
    %v3629 = vld [vmem:[#allocation6 + $0x78] sm:$0xff]
    %vm3630 = vcmp.gt.f32.partialorder %v3317, 0.0
    %vm3631 = vcmp.gt.f32.partialorder %v3425, 0.0
    %vm3632 = vcmp.gt.f32.partialorder %v3428, 0.0
    %vm3633 = vcmp.gt.f32.partialorder %v3431, 0.0
    %vm3634 = vcmp.gt.f32.partialorder %v3434, 0.0
    %vm3635 = vcmp.gt.f32.partialorder %v3437, 0.0
    %vm3636 = vcmp.gt.f32.partialorder %v3440, 0.0
    %vm3637 = vcmp.gt.f32.partialorder %v3443, 0.0
    %vm3638 = vcmp.gt.f32.partialorder %v3446, 0.0
    %vm3639 = vcmp.gt.f32.partialorder %v3524, 0.0
    %vm3640 = vcmp.gt.f32.partialorder %v3527, 0.0
    %vm3641 = vcmp.gt.f32.partialorder %v3530, 0.0
    %vm3642 = vcmp.gt.f32.partialorder %v3533, 0.0
    %vm3643 = vcmp.gt.f32.partialorder %v3536, 0.0
    %vm3644 = vcmp.gt.f32.partialorder %v3539, 0.0
    %vm3645 = vcmp.gt.f32.partialorder %v3542, 0.0
    %vm3646 = vcmp.gt.f32.partialorder %v3545, 0.0
    %vm3647 = vcmp.gt.f32.partialorder %v3583, 0.0
    %vm3648 = vcmp.gt.f32.partialorder %v3586, 0.0
    %vm3649 = vcmp.gt.f32.partialorder %v3589, 0.0
    %vm3650 = vcmp.gt.f32.partialorder %v3592, 0.0
    %vm3651 = vcmp.gt.f32.partialorder %v3595, 0.0
    %vm3652 = vcmp.gt.f32.partialorder %v3598, 0.0
    %vm3653 = vcmp.gt.f32.partialorder %v3601, 0.0
    %vm3654 = vcmp.gt.f32.partialorder %v3604, 0.0
    %v3655 = vmul.f32 %v3317, 0.2
    %v3656 = vmul.f32 %v3425, 0.2
    %v3657 = vmul.f32 %v3428, 0.2
    %v3658 = vmul.f32 %v3431, 0.2
    %v3659 = vmul.f32 %v3434, 0.2
    %v3660 = vmul.f32 %v3437, 0.2
    %v3661 = vmul.f32 %v3440, 0.2
    %v3662 = vmul.f32 %v3443, 0.2
    %v3663 = vmul.f32 %v3446, 0.2
    %v3664 = vmul.f32 %v3524, 0.2
    %v3665 = vmul.f32 %v3527, 0.2
    %v3666 = vmul.f32 %v3530, 0.2
    %v3667 = vmul.f32 %v3533, 0.2
    %v3668 = vmul.f32 %v3536, 0.2
    %v3669 = vmul.f32 %v3539, 0.2
    %v3670 = vmul.f32 %v3542, 0.2
    %v3671 = vmul.f32 %v3545, 0.2
    %v3672 = vmul.f32 %v3583, 0.2
    %v3673 = vmul.f32 %v3586, 0.2
    %v3674 = vmul.f32 %v3589, 0.2
    %v3675 = vmul.f32 %v3592, 0.2
    %v3676 = vmul.f32 %v3595, 0.2
    %v3677 = vmul.f32 %v3598, 0.2
    %v3678 = vmul.f32 %v3601, 0.2
    %v3679 = vmul.f32 %v3604, 0.2
    %v3680 = vsel %vm3630, %v3317, %v3655
    %v3681 = vsel %vm3631, %v3425, %v3656
    %v3682 = vsel %vm3632, %v3428, %v3657
    %v3683 = vsel %vm3633, %v3431, %v3658
    %v3684 = vsel %vm3634, %v3434, %v3659
    %v3685 = vsel %vm3635, %v3437, %v3660
    %v3686 = vsel %vm3636, %v3440, %v3661
    %v3687 = vsel %vm3637, %v3443, %v3662
    %v3688 = vsel %vm3638, %v3446, %v3663
    %v3689 = vsel %vm3639, %v3524, %v3664
    %v3690 = vsel %vm3640, %v3527, %v3665
    %v3691 = vsel %vm3641, %v3530, %v3666
    %v3692 = vsel %vm3642, %v3533, %v3667
    %v3693 = vsel %vm3643, %v3536, %v3668
    %v3694 = vsel %vm3644, %v3539, %v3669
    %v3695 = vsel %vm3645, %v3542, %v3670
    %v3696 = vsel %vm3646, %v3545, %v3671
    %v3697 = vsel %vm3647, %v3583, %v3672
    %v3698 = vsel %vm3648, %v3586, %v3673
    %v3699 = vsel %vm3649, %v3589, %v3674
    %v3700 = vsel %vm3650, %v3592, %v3675
    %v3701 = vsel %vm3651, %v3595, %v3676
    %v3702 = vsel %vm3652, %v3598, %v3677
    %v3703 = vsel %vm3653, %v3601, %v3678
    %v3704 = vsel %vm3654, %v3604, %v3679
    %v3705 = vld [vmem:[%s49] sm:$0xff]
    %v3706 = vld [vmem:[%s49 + $0x8] sm:$0xff]
    %v3707 = vld [vmem:[%s49 + $0x10] sm:$0xff]
    %v3708 = vld [vmem:[%s49 + $0x18] sm:$0xff]
    %v3709 = vld [vmem:[%s49 + $0x20] sm:$0xff]
    %v3710 = vld [vmem:[%s49 + $0x28] sm:$0xff]
    %v3711 = vld [vmem:[%s49 + $0x30] sm:$0xff]
    %v3712 = vld [vmem:[%s49 + $0x38] sm:$0xff]
    %3714 = vset.pattern.permute.xlu0 0
    %3715 = vperm.xlu0 %3714, %v3705
    %v3716 = vpop.permute.xlu0 %3715
    %3719 = vset.pattern.permute.xlu0 0
    %3720 = vperm.xlu0 %3719, %v3706
    %v3721 = vpop.permute.xlu0 %3720
    %3724 = vset.pattern.permute.xlu0 0
    %3725 = vperm.xlu0 %3724, %v3707
    %v3726 = vpop.permute.xlu0 %3725
    %3729 = vset.pattern.permute.xlu0 0
    %3730 = vperm.xlu0 %3729, %v3708
    %v3731 = vpop.permute.xlu0 %3730
    %3734 = vset.pattern.permute.xlu0 0
    %3735 = vperm.xlu0 %3734, %v3709
    %v3736 = vpop.permute.xlu0 %3735
    %3739 = vset.pattern.permute.xlu0 0
    %3740 = vperm.xlu0 %3739, %v3710
    %v3741 = vpop.permute.xlu0 %3740
    %3744 = vset.pattern.permute.xlu0 0
    %3745 = vperm.xlu0 %3744, %v3711
    %v3746 = vpop.permute.xlu0 %3745
    %3749 = vset.pattern.permute.xlu0 0
    %3750 = vperm.xlu0 %3749, %v3712
    %v3751 = vpop.permute.xlu0 %3750
    %v3754 = vsel %vm519, %v3615, 0
    %v3757 = vsel %vm519, %v3617, 0
    %v3760 = vsel %vm519, %v3619, 0
    %v3763 = vsel %vm519, %v3621, 0
    %v3766 = vsel %vm519, %v3623, 0
    %v3769 = vsel %vm519, %v3625, 0
    %v3772 = vsel %vm519, %v3627, 0
    %v3775 = vsel %vm519, %v3629, 0
    %3777 = vmatpush.msra.mxu0 %v3695
    %3778 = vmatpush.msra.mxu0 %v3694
    %3779 = vmatpush.msra.mxu0 %v3693
    %3780 = vmatpush.msra.mxu0 %v3692
    %3781 = vmatpush.msra.mxu0 %v3691
    %3782 = vmatpush.msra.mxu0 %v3690
    %3783 = vmatpush.msra.mxu0 %v3689
    %3784 = vmatpush.msra.mxu0 %v3688
    %3785 = vmatpush.msra.mxu0 %v3687
    %3786 = vmatpush.msra.mxu0 %v3686
    %3787 = vmatpush.msra.mxu0 %v3685
    %3788 = vmatpush.msra.mxu0 %v3684
    %3789 = vmatpush.msra.mxu0 %v3683
    %3790 = vmatpush.msra.mxu0 %v3682
    %3791 = vmatpush.msra.mxu0 %v3681
    %3792 = vmatpush.msra.mxu0 %v3680
    %3793 = vmatmul.f32.gmra.mxu0 %v3614
    %v3794 = vpop.f32.mrf.mxu0
    %v3795 = vadd.f32 %v3716, %v3794
    %3796 = vmatmul.f32.gmra.mxu0 %v3616
    %v3797 = vpop.f32.mrf.mxu0
    %v3798 = vadd.f32 %v3721, %v3797
    %3799 = vmatmul.f32.gmra.mxu0 %v3618
    %v3800 = vpop.f32.mrf.mxu0
    %v3801 = vadd.f32 %v3726, %v3800
    %3802 = vmatmul.f32.gmra.mxu0 %v3620
    %v3803 = vpop.f32.mrf.mxu0
    %v3804 = vadd.f32 %v3731, %v3803
    %3805 = vmatmul.f32.gmra.mxu0 %v3622
    %v3806 = vpop.f32.mrf.mxu0
    %v3807 = vadd.f32 %v3736, %v3806
    %3808 = vmatmul.f32.gmra.mxu0 %v3624
    %v3809 = vpop.f32.mrf.mxu0
    %v3810 = vadd.f32 %v3741, %v3809
    %3811 = vmatmul.f32.gmra.mxu0 %v3626
    %v3812 = vpop.f32.mrf.mxu0
    %v3813 = vadd.f32 %v3746, %v3812
    %3814 = vmatmul.f32.gmra.mxu0 %v3628
    %v3815 = vpop.f32.mrf.mxu0
    %v3816 = vadd.f32 %v3751, %v3815
    %3817 = vdwg.mxu0
    %3818 = vmatpush.msra.mxu0 0.0
    %3819 = vmatpush.msra.mxu0 0.0
    %3820 = vmatpush.msra.mxu0 0.0
    %3821 = vmatpush.msra.mxu0 0.0
    %3822 = vmatpush.msra.mxu0 0.0
    %3823 = vmatpush.msra.mxu0 0.0
    %3824 = vmatpush.msra.mxu0 0.0
    %3825 = vmatpush.msra.mxu0 %v3704
    %3826 = vmatpush.msra.mxu0 %v3703
    %3827 = vmatpush.msra.mxu0 %v3702
    %3828 = vmatpush.msra.mxu0 %v3701
    %3829 = vmatpush.msra.mxu0 %v3700
    %3830 = vmatpush.msra.mxu0 %v3699
    %3831 = vmatpush.msra.mxu0 %v3698
    %3832 = vmatpush.msra.mxu0 %v3697
    %3833 = vmatpush.msra.mxu0 %v3696
    %3834 = vmatmul.f32.gmra.mxu0 %v3754
    %v3835 = vpop.f32.mrf.mxu0
    %v3836 = vadd.f32 %v3795, %v3835
    %3837 = vmatmul.f32.gmra.mxu0 %v3757
    %v3838 = vpop.f32.mrf.mxu0
    %v3839 = vadd.f32 %v3798, %v3838
    %3840 = vmatmul.f32.gmra.mxu0 %v3760
    %v3841 = vpop.f32.mrf.mxu0
    %v3842 = vadd.f32 %v3801, %v3841
    %3843 = vmatmul.f32.gmra.mxu0 %v3763
    %v3844 = vpop.f32.mrf.mxu0
    %v3845 = vadd.f32 %v3804, %v3844
    %3846 = vmatmul.f32.gmra.mxu0 %v3766
    %v3847 = vpop.f32.mrf.mxu0
    %v3848 = vadd.f32 %v3807, %v3847
    %3849 = vmatmul.f32.gmra.mxu0 %v3769
    %v3850 = vpop.f32.mrf.mxu0
    %v3851 = vadd.f32 %v3810, %v3850
    %3852 = vmatmul.f32.gmra.mxu0 %v3772
    %v3853 = vpop.f32.mrf.mxu0
    %v3854 = vadd.f32 %v3813, %v3853
    %3855 = vmatmul.f32.gmra.mxu0 %v3775
    %v3856 = vpop.f32.mrf.mxu0
    %v3857 = vadd.f32 %v3816, %v3856
    %3858 = vdwg.mxu0
    %v3859 = vld [vmem:[%s51] sm:$0xff]
    %v3860 = vld [vmem:[%s51 + $0x8] sm:$0xff]
    %v3861 = vld [vmem:[%s51 + $0x10] sm:$0xff]
    %v3862 = vld [vmem:[%s51 + $0x18] sm:$0xff]
    %vm3863 = vcmp.gt.f32.partialorder %v3836, 0.0
    %vm3864 = vcmp.gt.f32.partialorder %v3839, 0.0
    %vm3865 = vcmp.gt.f32.partialorder %v3842, 0.0
    %vm3866 = vcmp.gt.f32.partialorder %v3845, 0.0
    %vm3867 = vcmp.gt.f32.partialorder %v3848, 0.0
    %vm3868 = vcmp.gt.f32.partialorder %v3851, 0.0
    %vm3869 = vcmp.gt.f32.partialorder %v3854, 0.0
    %vm3870 = vcmp.gt.f32.partialorder %v3857, 0.0
    %v3871 = vmul.f32 %v3836, 0.2
    %v3872 = vmul.f32 %v3839, 0.2
    %v3873 = vmul.f32 %v3842, 0.2
    %v3874 = vmul.f32 %v3845, 0.2
    %v3875 = vmul.f32 %v3848, 0.2
    %v3876 = vmul.f32 %v3851, 0.2
    %v3877 = vmul.f32 %v3854, 0.2
    %v3878 = vmul.f32 %v3857, 0.2
    %v3879 = vsel %vm3863, %v3836, %v3871
    %v3880 = vsel %vm3864, %v3839, %v3872
    %v3881 = vsel %vm3865, %v3842, %v3873
    %v3882 = vsel %vm3866, %v3845, %v3874
    %v3883 = vsel %vm3867, %v3848, %v3875
    %v3884 = vsel %vm3868, %v3851, %v3876
    %v3885 = vsel %vm3869, %v3854, %v3877
    %v3886 = vsel %vm3870, %v3857, %v3878
    %vm3887 = vcmask 523264
    %v3889 = vsel %vm3887, %v3859, 0
    %v3892 = vsel %vm3887, %v3860, 0
    %v3895 = vsel %vm3887, %v3861, 0
    %v3898 = vsel %vm3887, %v3862, 0
    %3900 = vmatpush.msra.mxu0 0.0
    %3901 = vmatpush.msra.mxu0 0.0
    %3902 = vmatpush.msra.mxu0 0.0
    %3903 = vmatpush.msra.mxu0 0.0
    %3904 = vmatpush.msra.mxu0 0.0
    %3905 = vmatpush.msra.mxu0 0.0
    %3906 = vmatpush.msra.mxu0 0.0
    %3907 = vmatpush.msra.mxu0 0.0
    %3908 = vmatpush.msra.mxu0 %v3886
    %3909 = vmatpush.msra.mxu0 %v3885
    %3910 = vmatpush.msra.mxu0 %v3884
    %3911 = vmatpush.msra.mxu0 %v3883
    %3912 = vmatpush.msra.mxu0 %v3882
    %3913 = vmatpush.msra.mxu0 %v3881
    %3914 = vmatpush.msra.mxu0 %v3880
    %3915 = vmatpush.msra.mxu0 %v3879
    %3916 = vmatmul.f32.gmra.mxu0 %v3889
    %v3917 = vpop.f32.mrf.mxu0
    %v3918 = vadd.f32 0.0, %v3917
    %3919 = vmatmul.f32.gmra.mxu0 %v3892
    %v3920 = vpop.f32.mrf.mxu0
    %v3921 = vadd.f32 0.0, %v3920
    %3922 = vmatmul.f32.gmra.mxu0 %v3895
    %v3923 = vpop.f32.mrf.mxu0
    %v3924 = vadd.f32 0.0, %v3923
    %3925 = vmatmul.f32.gmra.mxu0 %v3898
    %v3926 = vpop.f32.mrf.mxu0
    %v3927 = vadd.f32 0.0, %v3926
    %3928 = vdwg.mxu0
    %v3929 = vmul.f32 %v3918, 0.1
    %v3930 = vmul.f32 %v3921, 0.1
    %v3931 = vmul.f32 %v3924, 0.1
    %v3932 = vmul.f32 %v3927, 0.1
    %v3934 = vsel %vm519, %v3607, 0
    %v3937 = vsel %vm519, %v3609, 0
    %v3940 = vsel %vm519, %v3611, 0
    %v3943 = vsel %vm519, %v3613, 0
    %3945 = vmatpush.msra.mxu0 %v3542
    %3946 = vmatpush.msra.mxu0 %v3539
    %3947 = vmatpush.msra.mxu0 %v3536
    %3948 = vmatpush.msra.mxu0 %v3533
    %3949 = vmatpush.msra.mxu0 %v3530
    %3950 = vmatpush.msra.mxu0 %v3527
    %3951 = vmatpush.msra.mxu0 %v3524
    %3952 = vmatpush.msra.mxu0 %v3446
    %3953 = vmatpush.msra.mxu0 %v3443
    %3954 = vmatpush.msra.mxu0 %v3440
    %3955 = vmatpush.msra.mxu0 %v3437
    %3956 = vmatpush.msra.mxu0 %v3434
    %3957 = vmatpush.msra.mxu0 %v3431
    %3958 = vmatpush.msra.mxu0 %v3428
    %3959 = vmatpush.msra.mxu0 %v3425
    %3960 = vmatpush.msra.mxu0 %v3317
    %3961 = vmatmul.f32.gmra.mxu0 %v3606
    %v3962 = vpop.f32.mrf.mxu0
    %v3963 = vadd.f32 %v3929, %v3962
    %3964 = vmatmul.f32.gmra.mxu0 %v3608
    %v3965 = vpop.f32.mrf.mxu0
    %v3966 = vadd.f32 %v3930, %v3965
    %3967 = vmatmul.f32.gmra.mxu0 %v3610
    %v3968 = vpop.f32.mrf.mxu0
    %v3969 = vadd.f32 %v3931, %v3968
    %3970 = vmatmul.f32.gmra.mxu0 %v3612
    %v3971 = vpop.f32.mrf.mxu0
    %v3972 = vadd.f32 %v3932, %v3971
    %3973 = vdwg.mxu0
    %3974 = vmatpush.msra.mxu0 0.0
    %3975 = vmatpush.msra.mxu0 0.0
    %3976 = vmatpush.msra.mxu0 0.0
    %3977 = vmatpush.msra.mxu0 0.0
    %3978 = vmatpush.msra.mxu0 0.0
    %3979 = vmatpush.msra.mxu0 0.0
    %3980 = vmatpush.msra.mxu0 0.0
    %3981 = vmatpush.msra.mxu0 %v3604
    %3982 = vmatpush.msra.mxu0 %v3601
    %3983 = vmatpush.msra.mxu0 %v3598
    %3984 = vmatpush.msra.mxu0 %v3595
    %3985 = vmatpush.msra.mxu0 %v3592
    %3986 = vmatpush.msra.mxu0 %v3589
    %3987 = vmatpush.msra.mxu0 %v3586
    %3988 = vmatpush.msra.mxu0 %v3583
    %3989 = vmatpush.msra.mxu0 %v3545
    %3990 = vmatmul.f32.gmra.mxu0 %v3934
    %v3991 = vpop.f32.mrf.mxu0
    %v3992 = vadd.f32 %v3963, %v3991
    %3993 = vmatmul.f32.gmra.mxu0 %v3937
    %v3994 = vpop.f32.mrf.mxu0
    %v3995 = vadd.f32 %v3966, %v3994
    %3996 = vmatmul.f32.gmra.mxu0 %v3940
    %v3997 = vpop.f32.mrf.mxu0
    %v3998 = vadd.f32 %v3969, %v3997
    %3999 = vmatmul.f32.gmra.mxu0 %v3943
    %v4000 = vpop.f32.mrf.mxu0
    %v4001 = vadd.f32 %v3972, %v4000
    %4002 = vdwg.mxu0
    %v4003 = vld [vmem:[%s53] sm:$0xff]
    %v4004 = vld [vmem:[%s53 + $0x8] sm:$0xff]
    %v4005 = vld [vmem:[%s53 + $0x10] sm:$0xff]
    %v4006 = vld [vmem:[%s53 + $0x18] sm:$0xff]
    %vm4007 = vcmp.gt.f32.partialorder %v3992, 0.0
    %vm4008 = vcmp.gt.f32.partialorder %v3995, 0.0
    %vm4009 = vcmp.gt.f32.partialorder %v3998, 0.0
    %vm4010 = vcmp.gt.f32.partialorder %v4001, 0.0
    %v4011 = vmul.f32 %v3992, 0.2
    %v4012 = vmul.f32 %v3995, 0.2
    %v4013 = vmul.f32 %v3998, 0.2
    %v4014 = vmul.f32 %v4001, 0.2
    %v4015 = vsel %vm4007, %v3992, %v4011
    %v4016 = vsel %vm4008, %v3995, %v4012
    %v4017 = vsel %vm4009, %v3998, %v4013
    %v4018 = vsel %vm4010, %v4001, %v4014
    %v4019 = vld [vmem:[%s55] sm:$0xff]
    %v4020 = vld [vmem:[%s55 + $0x8] sm:$0xff]
    %v4021 = vld [vmem:[%s55 + $0x10] sm:$0xff]
    %v4022 = vld [vmem:[%s55 + $0x18] sm:$0xff]
    %4024 = vset.pattern.permute.xlu0 0
    %4025 = vperm.xlu0 %4024, %v4019
    %v4026 = vpop.permute.xlu0 %4025
    %4029 = vset.pattern.permute.xlu0 0
    %4030 = vperm.xlu0 %4029, %v4020
    %v4031 = vpop.permute.xlu0 %4030
    %4034 = vset.pattern.permute.xlu0 0
    %4035 = vperm.xlu0 %4034, %v4021
    %v4036 = vpop.permute.xlu0 %4035
    %4039 = vset.pattern.permute.xlu0 0
    %4040 = vperm.xlu0 %4039, %v4022
    %v4041 = vpop.permute.xlu0 %4040
    %v4044 = vsel %vm1445, %v4003, 0
    %v4047 = vsel %vm1445, %v4004, 0
    %v4050 = vsel %vm1445, %v4005, 0
    %v4053 = vsel %vm1445, %v4006, 0
    %4055 = vmatpush.msra.mxu0 0.0
    %4056 = vmatpush.msra.mxu0 0.0
    %4057 = vmatpush.msra.mxu0 0.0
    %4058 = vmatpush.msra.mxu0 0.0
    %4059 = vmatpush.msra.mxu0 0.0
    %4060 = vmatpush.msra.mxu0 0.0
    %4061 = vmatpush.msra.mxu0 0.0
    %4062 = vmatpush.msra.mxu0 0.0
    %4063 = vmatpush.msra.mxu0 0.0
    %4064 = vmatpush.msra.mxu0 0.0
    %4065 = vmatpush.msra.mxu0 0.0
    %4066 = vmatpush.msra.mxu0 0.0
    %4067 = vmatpush.msra.mxu0 %v4018
    %4068 = vmatpush.msra.mxu0 %v4017
    %4069 = vmatpush.msra.mxu0 %v4016
    %4070 = vmatpush.msra.mxu0 %v4015
    %4071 = vmatmul.f32.gmra.mxu0 %v4044
    %v4072 = vpop.f32.mrf.mxu0
    %v4073 = vadd.f32 %v4026, %v4072
    %4074 = vmatmul.f32.gmra.mxu0 %v4047
    %v4075 = vpop.f32.mrf.mxu0
    %v4076 = vadd.f32 %v4031, %v4075
    %4077 = vmatmul.f32.gmra.mxu0 %v4050
    %v4078 = vpop.f32.mrf.mxu0
    %v4079 = vadd.f32 %v4036, %v4078
    %4080 = vmatmul.f32.gmra.mxu0 %v4053
    %v4081 = vpop.f32.mrf.mxu0
    %v4082 = vadd.f32 %v4041, %v4081
    %4083 = vdwg.mxu0
    %v4084 = vld [vmem:[%s57] sm:$0xff]
    %v4085 = vld [vmem:[%s57 + $0x8] sm:$0xff]
    %v4086 = vld [vmem:[%s57 + $0x10] sm:$0xff]
    %v4087 = vld [vmem:[%s57 + $0x18] sm:$0xff]
    %vm4088 = vcmp.gt.f32.partialorder %v4073, 0.0
    %vm4089 = vcmp.gt.f32.partialorder %v4076, 0.0
    %vm4090 = vcmp.gt.f32.partialorder %v4079, 0.0
    %vm4091 = vcmp.gt.f32.partialorder %v4082, 0.0
    %v4092 = vmul.f32 %v4073, 0.2
    %v4093 = vmul.f32 %v4076, 0.2
    %v4094 = vmul.f32 %v4079, 0.2
    %v4095 = vmul.f32 %v4082, 0.2
    %v4096 = vsel %vm4088, %v4073, %v4092
    %v4097 = vsel %vm4089, %v4076, %v4093
    %v4098 = vsel %vm4090, %v4079, %v4094
    %v4099 = vsel %vm4091, %v4082, %v4095
    %v4101 = vsel %vm1445, %v4084, 0
    %v4104 = vsel %vm1445, %v4085, 0
    %v4107 = vsel %vm1445, %v4086, 0
    %v4110 = vsel %vm1445, %v4087, 0
    %4112 = vmatpush.msra.mxu0 0.0
    %4113 = vmatpush.msra.mxu0 0.0
    %4114 = vmatpush.msra.mxu0 0.0
    %4115 = vmatpush.msra.mxu0 0.0
    %4116 = vmatpush.msra.mxu0 0.0
    %4117 = vmatpush.msra.mxu0 0.0
    %4118 = vmatpush.msra.mxu0 0.0
    %4119 = vmatpush.msra.mxu0 0.0
    %4120 = vmatpush.msra.mxu0 0.0
    %4121 = vmatpush.msra.mxu0 0.0
    %4122 = vmatpush.msra.mxu0 0.0
    %4123 = vmatpush.msra.mxu0 0.0
    %4124 = vmatpush.msra.mxu0 %v4099
    %4125 = vmatpush.msra.mxu0 %v4098
    %4126 = vmatpush.msra.mxu0 %v4097
    %4127 = vmatpush.msra.mxu0 %v4096
    %4128 = vmatmul.f32.gmra.mxu0 %v4101
    %v4129 = vpop.f32.mrf.mxu0
    %v4130 = vadd.f32 0.0, %v4129
    %4131 = vmatmul.f32.gmra.mxu0 %v4104
    %v4132 = vpop.f32.mrf.mxu0
    %v4133 = vadd.f32 0.0, %v4132
    %4134 = vmatmul.f32.gmra.mxu0 %v4107
    %v4135 = vpop.f32.mrf.mxu0
    %v4136 = vadd.f32 0.0, %v4135
    %4137 = vmatmul.f32.gmra.mxu0 %v4110
    %v4138 = vpop.f32.mrf.mxu0
    %v4139 = vadd.f32 0.0, %v4138
    %4140 = vdwg.mxu0
    %v4141 = vmul.f32 %v4130, 0.1
    %v4142 = vmul.f32 %v4133, 0.1
    %v4143 = vmul.f32 %v4136, 0.1
    %v4144 = vmul.f32 %v4139, 0.1
    %v4145 = vadd.f32 %v3992, %v4141
    %v4146 = vadd.f32 %v3995, %v4142
    %v4147 = vadd.f32 %v3998, %v4143
    %v4148 = vadd.f32 %v4001, %v4144
    %v4149 = vld [vmem:[%s59] sm:$0xff]
    %v4150 = vld [vmem:[%s59 + $0x8] sm:$0xff]
    %v4151 = vld [vmem:[%s59 + $0x10] sm:$0xff]
    %v4152 = vld [vmem:[%s59 + $0x18] sm:$0xff]
    %v4153 = vld [vmem:[%s61] sm:$0xff]
    %v4154 = vld [vmem:[%s61 + $0x8] sm:$0xff]
    %v4155 = vld [vmem:[%s61 + $0x10] sm:$0xff]
    %v4156 = vld [vmem:[%s61 + $0x18] sm:$0xff]
    %4158 = vset.pattern.permute.xlu0 0
    %4159 = vperm.xlu0 %4158, %v4153
    %v4160 = vpop.permute.xlu0 %4159
    %4163 = vset.pattern.permute.xlu0 0
    %4164 = vperm.xlu0 %4163, %v4154
    %v4165 = vpop.permute.xlu0 %4164
    %4168 = vset.pattern.permute.xlu0 0
    %4169 = vperm.xlu0 %4168, %v4155
    %v4170 = vpop.permute.xlu0 %4169
    %4173 = vset.pattern.permute.xlu0 0
    %4174 = vperm.xlu0 %4173, %v4156
    %v4175 = vpop.permute.xlu0 %4174
    %v4178 = vsel %vm1445, %v4149, 0
    %v4181 = vsel %vm1445, %v4150, 0
    %v4184 = vsel %vm1445, %v4151, 0
    %v4187 = vsel %vm1445, %v4152, 0
    %4189 = vmatpush.msra.mxu0 0.0
    %4190 = vmatpush.msra.mxu0 0.0
    %4191 = vmatpush.msra.mxu0 0.0
    %4192 = vmatpush.msra.mxu0 0.0
    %4193 = vmatpush.msra.mxu0 0.0
    %4194 = vmatpush.msra.mxu0 0.0
    %4195 = vmatpush.msra.mxu0 0.0
    %4196 = vmatpush.msra.mxu0 0.0
    %4197 = vmatpush.msra.mxu0 0.0
    %4198 = vmatpush.msra.mxu0 0.0
    %4199 = vmatpush.msra.mxu0 0.0
    %4200 = vmatpush.msra.mxu0 0.0
    %4201 = vmatpush.msra.mxu0 %v4148
    %4202 = vmatpush.msra.mxu0 %v4147
    %4203 = vmatpush.msra.mxu0 %v4146
    %4204 = vmatpush.msra.mxu0 %v4145
    %4205 = vmatmul.f32.gmra.mxu0 %v4178
    %v4206 = vpop.f32.mrf.mxu0
    %v4207 = vadd.f32 %v4160, %v4206
    %4208 = vmatmul.f32.gmra.mxu0 %v4181
    %v4209 = vpop.f32.mrf.mxu0
    %v4210 = vadd.f32 %v4165, %v4209
    %4211 = vmatmul.f32.gmra.mxu0 %v4184
    %v4212 = vpop.f32.mrf.mxu0
    %v4213 = vadd.f32 %v4170, %v4212
    %4214 = vmatmul.f32.gmra.mxu0 %v4187
    %v4215 = vpop.f32.mrf.mxu0
    %v4216 = vadd.f32 %v4175, %v4215
    %4217 = vdwg.mxu0
    %vm4218 = vcmask 15360
    %4219 = vst.msk [vmem:[%s65] sm:$0xff] %vm4218, %v4207
    %4220 = vst.msk [vmem:[%s65 + $0x8] sm:$0xff] %vm4218, %v4210
    %4221 = vst.msk [vmem:[%s65 + $0x10] sm:$0xff] %vm4218, %v4213
    %4222 = vst.msk [vmem:[%s65 + $0x18] sm:$0xff] %vm4218, %v4216
    // Predicated region
    $region134: #{encoder_forward.1} parent=1 // pred_check
      _
    $region135: #{encoder_forward.1} parent=1 // pred_check_branch
      %4224 = sbr.rel (0) target = $region137
    $region136: #{encoder_forward.1} parent=1 // pred_region
      _
    $region137: #{encoder_forward.1} parent=1 // pred_fallthru
      _
    // Predicated region
    $region138: #{encoder_forward.1} parent=1 // pred_check
      _
    $region139: #{encoder_forward.1} parent=1 // pred_check_branch
      %4226 = sbr.rel (0) target = $region141
    $region140: #{encoder_forward.1} parent=1 // pred_region
      _
    $region141: #{encoder_forward.1} parent=1 // pred_fallthru
      _
    // Predicated region
    $region142: #{encoder_forward.1} parent=1 // pred_check
      _
    $region143: #{encoder_forward.1} parent=1 // pred_check_branch
      %4228 = sbr.rel (0) target = $region145
    $region144: #{encoder_forward.1} parent=1 // pred_region
      _
    $region145: #{encoder_forward.1} parent=1 // pred_fallthru
      _
    // Predicated region
    $region146: #{encoder_forward.1} parent=1 // pred_check
      _
    $region147: #{encoder_forward.1} parent=1 // pred_check_branch
      %4230 = sbr.rel (0) target = $region149
    $region148: #{encoder_forward.1} parent=1 // pred_region
      _
    $region149: #{encoder_forward.1} parent=1 // pred_fallthru
      _
    %4231 = vsyncpa [#allocation5], 1
    %4232 = vsyncpa [#allocation7], 1

</llo_original>
